<compile_context>
chip_gen: v6e
topology: v6e:2x2x1
jax: 0.10.0
libtpu: 0.0.40
codegen_flags: <defaults>
</compile_context>

<pallas_src>
import functools

import jax
import jax.numpy as jnp
from jax.experimental import pallas as pl
from jax.experimental.pallas import tpu as pltpu


# -----------------------------------------------------------------------------
# Kernel: one grid step == one LSTM layer.
# Refs: x_flat, w_ih(layer), w_hh(layer), bias(layer), fc_w, fc_b, out, seq_scratch
# -----------------------------------------------------------------------------
def _make_kernel(seq_len, batch_pad):
    T, Bp = seq_len, batch_pad

    def kernel(x_ref, w_ih_ref, w_hh_ref, b_ref, fc_w_ref, fc_b_ref,
               out_ref, seq_ref):
        layer = pl.program_id(0)
        n_layers = pl.num_programs(0)
        H = w_hh_ref.shape[0]

        # Layer 0 consumes the (already time-major, zero-padded) input slab.
        @pl.when(layer == 0)
        def _():
            seq_ref[...] = x_ref[...]

        w_ih = w_ih_ref[...]                      # (H, 4H) bf16
        w_hh = w_hh_ref[...]                      # (H, 4H) bf16
        bias = b_ref[...]                         # (1, 4H) f32

        # Hoisted input projection for ALL T*Bp rows: one MXU matmul per layer,
        # bf16 inputs, f32 accumulate.
        gx = jnp.dot(seq_ref[...].astype(jnp.bfloat16), w_ih,
                     preferred_element_type=jnp.float32) + bias   # (T*Bp, 4H) f32

        h = jnp.zeros((Bp, H), jnp.float32)
        c = jnp.zeros((Bp, H), jnp.float32)
        for t in range(T):                         # static unroll, T small
            gates = gx[t * Bp:(t + 1) * Bp, :]     # 8-sublane aligned slice
            if t > 0:                              # h == 0 at t == 0: skip matmul
                gates = gates + jnp.dot(h.astype(jnp.bfloat16), w_hh,
                                        preferred_element_type=jnp.float32)
            i_g = jax.nn.sigmoid(gates[:, 0 * H:1 * H])   # 128-lane aligned slices
            f_g = jax.nn.sigmoid(gates[:, 1 * H:2 * H])
            g_g = jnp.tanh(gates[:, 2 * H:3 * H])
            o_g = jax.nn.sigmoid(gates[:, 3 * H:4 * H])
            c = f_g * c + i_g * g_g                        # f32 cell update
            h = o_g * jnp.tanh(c)
            # Aligned store; becomes the next layer's input sequence.
            seq_ref[t * Bp:(t + 1) * Bp, :] = h

        # Fused fc head on the final hidden state of the last layer only.
        @pl.when(layer == n_layers - 1)
        def _():
            logits = jnp.dot(h, fc_w_ref[...],
                             preferred_element_type=jnp.float32) + fc_b_ref[...]
            out_ref[...] = logits[:out_ref.shape[0], :out_ref.shape[1]]

    return kernel


@jax.jit
def lstm_classifier_forward(x_btd, lstm_params, fc_w, fc_b):
    """x_btd: (B, T, D) batch-first, as in the PyTorch module. Returns (B, O)."""
    B, T, D = x_btd.shape
    L = len(lstm_params)
    H = lstm_params[0][1].shape[0]            # w_hh: (H, 4H)
    O = fc_w.shape[1]
    Bp = 8                                    # pad batch to one sublane group
    Op = 128                                  # pad fc output to one lane group

    # --- Stack / pad weights (layer 0's w_ih is (D,4H): zero-pad rows to H). ---
    w_ih_all = jnp.stack([
        jnp.zeros((H, 4 * H), jnp.float32).at[:w.shape[0], :].set(w)
        for (w, _, _) in lstm_params
    ]).astype(jnp.bfloat16)                                   # (L, H, 4H) bf16
    w_hh_all = jnp.stack([w for (_, w, _) in lstm_params]
                         ).astype(jnp.bfloat16)               # (L, H, 4H) bf16
    b_all = jnp.stack([b for (_, _, b) in lstm_params])       # (L, 1, 4H) f32

    fc_w_p = jnp.zeros((H, Op), jnp.float32).at[:, :O].set(fc_w)   # (H, 128)
    fc_b_p = jnp.zeros((1, Op), jnp.float32).at[:, :O].set(fc_b)   # (1, 128)

    # --- Time-major, zero-padded input slab: row t*Bp + b = x[b, t, :D]. -------
    x_flat = (jnp.zeros((T, Bp, H), jnp.float32)
              .at[:, :B, :D].set(jnp.transpose(x_btd, (1, 0, 2)))
              .reshape(T * Bp, H))                            # (T*Bp, H)

    # --- Cost hint for the XLA scheduler. --------------------------------------
    flops = L * (2 * (T * Bp) * H * 4 * H + (T - 1) * 2 * Bp * H * 4 * H) \
        + 2 * Bp * H * Op
    transcendentals = L * T * Bp * 5 * H
    bytes_accessed = (x_flat.size * 4 + w_ih_all.size * 2 + w_hh_all.size * 2
                      + b_all.size * 4 + fc_w_p.size * 4 + fc_b_p.size * 4
                      + B * O * 4)

    return pl.pallas_call(
        _make_kernel(T, Bp),
        out_shape=jax.ShapeDtypeStruct((B, O), jnp.float32),
        grid=(L,),
        in_specs=[
            pl.BlockSpec((T * Bp, H), lambda l: (0, 0)),          # input slab (resident)
            pl.BlockSpec((None, H, 4 * H), lambda l: (l, 0, 0)),  # w_ih, double-buffered/layer
            pl.BlockSpec((None, H, 4 * H), lambda l: (l, 0, 0)),  # w_hh, double-buffered/layer
            pl.BlockSpec((None, 1, 4 * H), lambda l: (l, 0, 0)),  # bias per layer
            pl.BlockSpec((H, Op), lambda l: (0, 0)),              # fc_w (resident)
            pl.BlockSpec((1, Op), lambda l: (0, 0)),              # fc_b (resident)
        ],
        out_specs=pl.BlockSpec((B, O), lambda l: (0, 0)),
        scratch_shapes=[pltpu.VMEM((T * Bp, H), jnp.float32)],    # inter-layer activations
        compiler_params=pltpu.CompilerParams(
            dimension_semantics=("arbitrary",),                   # layers are sequential
        ),
        cost_estimate=pl.CostEstimate(flops=flops,
                                      transcendentals=transcendentals,
                                      bytes_accessed=bytes_accessed),
    )(x_flat, w_ih_all, w_hh_all, b_all, fc_w_p, fc_b_p)


# -----------------------------------------------------------------------------
# Pure-JAX f32 reference (lax.scan) for verification.
# -----------------------------------------------------------------------------
def lstm_classifier_ref(x_btd, lstm_params, fc_w, fc_b):
    h_seq = x_btd
    for (w_ih, w_hh, b) in lstm_params:
        B = h_seq.shape[0]
        H = w_hh.shape[0]

        def step(carry, x_t, w_ih=w_ih, w_hh=w_hh, b=b, H=H):
            hp, cp = carry
            gates = x_t @ w_ih + hp @ w_hh + b
            i = jax.nn.sigmoid(gates[:, :H])
            f = jax.nn.sigmoid(gates[:, H:2 * H])
            g = jnp.tanh(gates[:, 2 * H:3 * H])
            o = jax.nn.sigmoid(gates[:, 3 * H:])
            c = f * cp + i * g
            hh = o * jnp.tanh(c)
            return (hh, c), hh

        init = (jnp.zeros((B, H), jnp.float32), jnp.zeros((B, H), jnp.float32))
        _, outs = jax.lax.scan(step, init, jnp.transpose(h_seq, (1, 0, 2)))
        h_seq = jnp.transpose(outs, (1, 0, 2))
    return h_seq[:, -1, :] @ fc_w + fc_b


# -----------------------------------------------------------------------------
# Deterministic parameter init (same shapes as nn.LSTM / nn.Linear, stored
# pre-transposed so the kernel does x @ W; b = b_ih + b_hh).
# -----------------------------------------------------------------------------
def init_params(key, input_dim, hidden_dim, layer_dim, output_dim):
    bound = 1.0 / jnp.sqrt(hidden_dim)
    lstm_params = []
    for layer in range(layer_dim):
        in_dim = input_dim if layer == 0 else hidden_dim
        key, k1, k2, k3, k4 = jax.random.split(key, 5)
        w_ih = jax.random.uniform(k1, (in_dim, 4 * hidden_dim), jnp.float32, -bound, bound)
        w_hh = jax.random.uniform(k2, (hidden_dim, 4 * hidden_dim), jnp.float32, -bound, bound)
        b_ih = jax.random.uniform(k3, (4 * hidden_dim,), jnp.float32, -bound, bound)
        b_hh = jax.random.uniform(k4, (4 * hidden_dim,), jnp.float32, -bound, bound)
        b = (b_ih + b_hh).reshape(1, 4 * hidden_dim)
        lstm_params.append((w_ih, w_hh, b))
    key, k5, k6 = jax.random.split(key, 3)
    fc_bound = 1.0 / jnp.sqrt(hidden_dim)
    fc_w = jax.random.uniform(k5, (hidden_dim, output_dim), jnp.float32, -fc_bound, fc_bound)
    fc_b = jax.random.uniform(k6, (1, output_dim), jnp.float32, -fc_bound, fc_bound)
    return lstm_params, fc_w, fc_b


if __name__ == "__main__":
    # Module hyper-parameters (input_dim=10, hidden_dim=256, layer_dim=5,
    # output_dim=9) with a small batch / sequence.
    B, T = 2, 8
    INPUT_DIM, HIDDEN_DIM, LAYER_DIM, OUTPUT_DIM = 10, 256, 5, 9

    key = jax.random.PRNGKey(0)
    key, kx = jax.random.split(key)
    x = jax.random.normal(kx, (B, T, INPUT_DIM), jnp.float32)

    lstm_params, fc_w, fc_b = init_params(key, INPUT_DIM, HIDDEN_DIM, LAYER_DIM, OUTPUT_DIM)

    out = lstm_classifier_forward(x, lstm_params, fc_w, fc_b)
    out = jax.block_until_ready(out)

    ref = lstm_classifier_ref(x, lstm_params, fc_w, fc_b)
    assert out.shape == (B, OUTPUT_DIM)
    # bf16 weights in the dots (f32 accumulate / gate math) -> loosened tolerance
    # vs. the pure-f32 reference.
    assert jnp.allclose(out, ref, atol=2e-2, rtol=2e-2), (
        f"mismatch vs JAX reference, max abs err = {jnp.max(jnp.abs(out - ref))}")

    print("KERNEL_OK")
</pallas_src>

<mosaic_0001>
module attributes {stable_mosaic.version = 11 : i64} {
  func.func @kernel(%arg0: i32, %arg1: memref<64x256xf32, #tpu.memory_space<vmem>>, %arg2: memref<1x256x1024xbf16, #tpu.memory_space<vmem>>, %arg3: memref<1x256x1024xbf16, #tpu.memory_space<vmem>>, %arg4: memref<1x1x1024xf32, #tpu.memory_space<vmem>>, %arg5: memref<256x128xf32, #tpu.memory_space<vmem>>, %arg6: memref<1x128xf32, #tpu.memory_space<vmem>>, %arg7: memref<2x9xf32, #tpu.memory_space<vmem>>, %arg8: memref<64x256xf32, #tpu.memory_space<vmem>>) attributes {dimension_semantics = [#tpu.dimension_semantics<arbitrary>], iteration_bounds = array<i64: 5>, scalar_prefetch = 0 : i64, scratch_operands = 1 : i64, tpu.core_type = #tpu.core_type<tc>, window_params = [{pipeline_mode = #tpu.pipeline_mode<synchronous>, transform_indices = @transform_0, window_bounds = array<i64: 64, 256>}, {transform_indices = @transform_1, window_bounds = array<i64: 1, 256, 1024>}, {transform_indices = @transform_2, window_bounds = array<i64: 1, 256, 1024>}, {transform_indices = @transform_3, window_bounds = array<i64: 1, 1, 1024>}, {pipeline_mode = #tpu.pipeline_mode<synchronous>, transform_indices = @transform_4, window_bounds = array<i64: 256, 128>}, {pipeline_mode = #tpu.pipeline_mode<synchronous>, transform_indices = @transform_5, window_bounds = array<i64: 1, 128>}, {pipeline_mode = #tpu.pipeline_mode<synchronous>, transform_indices = @transform_6, window_bounds = array<i64: 2, 9>}]} {
    %c0_i32 = arith.constant 0 : i32
    %0 = arith.cmpi eq, %arg0, %c0_i32 : i32
    %1 = arith.extui %0 : i1 to i32
    %c0_i32_0 = arith.constant 0 : i32
    %2 = arith.cmpi ne, %1, %c0_i32_0 : i32
    scf.if %2 {
      %c0_53 = arith.constant 0 : index
      %c0_54 = arith.constant 0 : index
      %255 = vector.load %arg1[%c0_53, %c0_54] : memref<64x256xf32, #tpu.memory_space<vmem>>, vector<64x256xf32>
      %c0_55 = arith.constant 0 : index
      %c0_56 = arith.constant 0 : index
      %256 = vector.load %arg8[%c0_55, %c0_56] : memref<64x256xf32, #tpu.memory_space<vmem>>, vector<64x256xf32>
      tpu.vector_store %arg8[%c0_55, %c0_56], %255 {strides = array<i32>} : memref<64x256xf32, #tpu.memory_space<vmem>>, vector<64x256xf32>,
    } else {
    }
    %c0 = arith.constant 0 : index
    %c0_1 = arith.constant 0 : index
    %c0_2 = arith.constant 0 : index
    %3 = vector.load %arg2[%c0, %c0_1, %c0_2] : memref<1x256x1024xbf16, #tpu.memory_space<vmem>>, vector<1x256x1024xbf16>
    %4 = vector.shape_cast %3 : vector<1x256x1024xbf16> to vector<256x1024xbf16>
    %c0_3 = arith.constant 0 : index
    %c0_4 = arith.constant 0 : index
    %c0_5 = arith.constant 0 : index
    %5 = vector.load %arg3[%c0_3, %c0_4, %c0_5] : memref<1x256x1024xbf16, #tpu.memory_space<vmem>>, vector<1x256x1024xbf16>
    %6 = vector.shape_cast %5 : vector<1x256x1024xbf16> to vector<256x1024xbf16>
    %c0_6 = arith.constant 0 : index
    %c0_7 = arith.constant 0 : index
    %c0_8 = arith.constant 0 : index
    %7 = vector.load %arg4[%c0_6, %c0_7, %c0_8] : memref<1x1x1024xf32, #tpu.memory_space<vmem>>, vector<1x1x1024xf32>
    %8 = vector.shape_cast %7 : vector<1x1x1024xf32> to vector<1x1024xf32>
    %c0_9 = arith.constant 0 : index
    %c0_10 = arith.constant 0 : index
    %9 = vector.load %arg8[%c0_9, %c0_10] : memref<64x256xf32, #tpu.memory_space<vmem>>, vector<64x256xf32>
    %10 = arith.truncf %9 : vector<64x256xf32> to vector<64x256xbf16>
    %cst = arith.constant dense<0.000000e+00> : vector<64x1024xf32>
    %11 = tpu.matmul %10, %4, %cst {dimension_numbers = #tpu.dot_dimension_numbers<[1], [0], [0], [1], [0, 0, 1, 1], [], []>} : vector<64x256xbf16>, vector<256x1024xbf16>, vector<64x1024xf32> -> vector<64x1024xf32>
    %12 = vector.broadcast %8 : vector<1x1024xf32> to vector<64x1024xf32>
    %13 = arith.addf %11, %12 : vector<64x1024xf32>
    %cst_11 = arith.constant 0.000000e+00 : f32
    %14 = vector.broadcast %cst_11 : f32 to vector<8x256xf32>
    %15 = vector.extract_strided_slice %13 {offsets = [0, 0], sizes = [8, 1024], strides = [1, 1]} : vector<64x1024xf32> to vector<8x1024xf32>
    %16 = vector.extract_strided_slice %15 {offsets = [0, 0], sizes = [8, 256], strides = [1, 1]} : vector<8x1024xf32> to vector<8x256xf32>
    %17 = arith.negf %16 : vector<8x256xf32>
    %18 = math.exp %17 : vector<8x256xf32>
    %cst_12 = arith.constant 1.000000e+00 : f32
    %19 = vector.broadcast %cst_12 : f32 to vector<8x256xf32>
    %20 = arith.addf %19, %18 : vector<8x256xf32>
    %21 = arith.divf %19, %20 : vector<8x256xf32>
    %22 = vector.extract_strided_slice %15 {offsets = [0, 256], sizes = [8, 256], strides = [1, 1]} : vector<8x1024xf32> to vector<8x256xf32>
    %23 = arith.negf %22 : vector<8x256xf32>
    %24 = math.exp %23 : vector<8x256xf32>
    %cst_13 = arith.constant 1.000000e+00 : f32
    %25 = vector.broadcast %cst_13 : f32 to vector<8x256xf32>
    %26 = arith.addf %25, %24 : vector<8x256xf32>
    %27 = arith.divf %25, %26 : vector<8x256xf32>
    %28 = vector.extract_strided_slice %15 {offsets = [0, 512], sizes = [8, 256], strides = [1, 1]} : vector<8x1024xf32> to vector<8x256xf32>
    %29 = math.tanh %28 : vector<8x256xf32>
    %30 = vector.extract_strided_slice %15 {offsets = [0, 768], sizes = [8, 256], strides = [1, 1]} : vector<8x1024xf32> to vector<8x256xf32>
    %31 = arith.negf %30 : vector<8x256xf32>
    %32 = math.exp %31 : vector<8x256xf32>
    %cst_14 = arith.constant 1.000000e+00 : f32
    %33 = vector.broadcast %cst_14 : f32 to vector<8x256xf32>
    %34 = arith.addf %33, %32 : vector<8x256xf32>
    %35 = arith.divf %33, %34 : vector<8x256xf32>
    %36 = arith.mulf %27, %14 : vector<8x256xf32>
    %37 = arith.mulf %21, %29 : vector<8x256xf32>
    %38 = arith.addf %36, %37 : vector<8x256xf32>
    %39 = math.tanh %38 : vector<8x256xf32>
    %40 = arith.mulf %35, %39 : vector<8x256xf32>
    %c0_15 = arith.constant 0 : index
    %c0_16 = arith.constant 0 : index
    %41 = vector.load %arg8[%c0_15, %c0_16] : memref<64x256xf32, #tpu.memory_space<vmem>>, vector<8x256xf32>
    tpu.vector_store %arg8[%c0_15, %c0_16], %40 {strides = array<i32>} : memref<64x256xf32, #tpu.memory_space<vmem>>, vector<8x256xf32>,
    %42 = vector.extract_strided_slice %13 {offsets = [8, 0], sizes = [8, 1024], strides = [1, 1]} : vector<64x1024xf32> to vector<8x1024xf32>
    %43 = arith.truncf %40 : vector<8x256xf32> to vector<8x256xbf16>
    %cst_17 = arith.constant dense<0.000000e+00> : vector<8x1024xf32>
    %44 = tpu.matmul %43, %6, %cst_17 {dimension_numbers = #tpu.dot_dimension_numbers<[1], [0], [0], [1], [0, 0, 1, 1], [], []>} : vector<8x256xbf16>, vector<256x1024xbf16>, vector<8x1024xf32> -> vector<8x1024xf32>
    %45 = arith.addf %42, %44 : vector<8x1024xf32>
    %46 = vector.extract_strided_slice %45 {offsets = [0, 0], sizes = [8, 256], strides = [1, 1]} : vector<8x1024xf32> to vector<8x256xf32>
    %47 = arith.negf %46 : vector<8x256xf32>
    %48 = math.exp %47 : vector<8x256xf32>
    %cst_18 = arith.constant 1.000000e+00 : f32
    %49 = vector.broadcast %cst_18 : f32 to vector<8x256xf32>
    %50 = arith.addf %49, %48 : vector<8x256xf32>
    %51 = arith.divf %49, %50 : vector<8x256xf32>
    %52 = vector.extract_strided_slice %45 {offsets = [0, 256], sizes = [8, 256], strides = [1, 1]} : vector<8x1024xf32> to vector<8x256xf32>
    %53 = arith.negf %52 : vector<8x256xf32>
    %54 = math.exp %53 : vector<8x256xf32>
    %cst_19 = arith.constant 1.000000e+00 : f32
    %55 = vector.broadcast %cst_19 : f32 to vector<8x256xf32>
    %56 = arith.addf %55, %54 : vector<8x256xf32>
    %57 = arith.divf %55, %56 : vector<8x256xf32>
    %58 = vector.extract_strided_slice %45 {offsets = [0, 512], sizes = [8, 256], strides = [1, 1]} : vector<8x1024xf32> to vector<8x256xf32>
    %59 = math.tanh %58 : vector<8x256xf32>
    %60 = vector.extract_strided_slice %45 {offsets = [0, 768], sizes = [8, 256], strides = [1, 1]} : vector<8x1024xf32> to vector<8x256xf32>
    %61 = arith.negf %60 : vector<8x256xf32>
    %62 = math.exp %61 : vector<8x256xf32>
    %cst_20 = arith.constant 1.000000e+00 : f32
    %63 = vector.broadcast %cst_20 : f32 to vector<8x256xf32>
    %64 = arith.addf %63, %62 : vector<8x256xf32>
    %65 = arith.divf %63, %64 : vector<8x256xf32>
    %66 = arith.mulf %57, %38 : vector<8x256xf32>
    %67 = arith.mulf %51, %59 : vector<8x256xf32>
    %68 = arith.addf %66, %67 : vector<8x256xf32>
    %69 = math.tanh %68 : vector<8x256xf32>
    %70 = arith.mulf %65, %69 : vector<8x256xf32>
    %c8 = arith.constant 8 : index
    %c0_21 = arith.constant 0 : index
    %71 = vector.load %arg8[%c8, %c0_21] : memref<64x256xf32, #tpu.memory_space<vmem>>, vector<8x256xf32>
    tpu.vector_store %arg8[%c8, %c0_21], %70 {strides = array<i32>} : memref<64x256xf32, #tpu.memory_space<vmem>>, vector<8x256xf32>,
    %72 = vector.extract_strided_slice %13 {offsets = [16, 0], sizes = [8, 1024], strides = [1, 1]} : vector<64x1024xf32> to vector<8x1024xf32>
    %73 = arith.truncf %70 : vector<8x256xf32> to vector<8x256xbf16>
    %cst_22 = arith.constant dense<0.000000e+00> : vector<8x1024xf32>
    %74 = tpu.matmul %73, %6, %cst_22 {dimension_numbers = #tpu.dot_dimension_numbers<[1], [0], [0], [1], [0, 0, 1, 1], [], []>} : vector<8x256xbf16>, vector<256x1024xbf16>, vector<8x1024xf32> -> vector<8x1024xf32>
    %75 = arith.addf %72, %74 : vector<8x1024xf32>
    %76 = vector.extract_strided_slice %75 {offsets = [0, 0], sizes = [8, 256], strides = [1, 1]} : vector<8x1024xf32> to vector<8x256xf32>
    %77 = arith.negf %76 : vector<8x256xf32>
    %78 = math.exp %77 : vector<8x256xf32>
    %cst_23 = arith.constant 1.000000e+00 : f32
    %79 = vector.broadcast %cst_23 : f32 to vector<8x256xf32>
    %80 = arith.addf %79, %78 : vector<8x256xf32>
    %81 = arith.divf %79, %80 : vector<8x256xf32>
    %82 = vector.extract_strided_slice %75 {offsets = [0, 256], sizes = [8, 256], strides = [1, 1]} : vector<8x1024xf32> to vector<8x256xf32>
    %83 = arith.negf %82 : vector<8x256xf32>
    %84 = math.exp %83 : vector<8x256xf32>
    %cst_24 = arith.constant 1.000000e+00 : f32
    %85 = vector.broadcast %cst_24 : f32 to vector<8x256xf32>
    %86 = arith.addf %85, %84 : vector<8x256xf32>
    %87 = arith.divf %85, %86 : vector<8x256xf32>
    %88 = vector.extract_strided_slice %75 {offsets = [0, 512], sizes = [8, 256], strides = [1, 1]} : vector<8x1024xf32> to vector<8x256xf32>
    %89 = math.tanh %88 : vector<8x256xf32>
    %90 = vector.extract_strided_slice %75 {offsets = [0, 768], sizes = [8, 256], strides = [1, 1]} : vector<8x1024xf32> to vector<8x256xf32>
    %91 = arith.negf %90 : vector<8x256xf32>
    %92 = math.exp %91 : vector<8x256xf32>
    %cst_25 = arith.constant 1.000000e+00 : f32
    %93 = vector.broadcast %cst_25 : f32 to vector<8x256xf32>
    %94 = arith.addf %93, %92 : vector<8x256xf32>
    %95 = arith.divf %93, %94 : vector<8x256xf32>
    %96 = arith.mulf %87, %68 : vector<8x256xf32>
    %97 = arith.mulf %81, %89 : vector<8x256xf32>
    %98 = arith.addf %96, %97 : vector<8x256xf32>
    %99 = math.tanh %98 : vector<8x256xf32>
    %100 = arith.mulf %95, %99 : vector<8x256xf32>
    %c16 = arith.constant 16 : index
    %c0_26 = arith.constant 0 : index
    %101 = vector.load %arg8[%c16, %c0_26] : memref<64x256xf32, #tpu.memory_space<vmem>>, vector<8x256xf32>
    tpu.vector_store %arg8[%c16, %c0_26], %100 {strides = array<i32>} : memref<64x256xf32, #tpu.memory_space<vmem>>, vector<8x256xf32>,
    %102 = vector.extract_strided_slice %13 {offsets = [24, 0], sizes = [8, 1024], strides = [1, 1]} : vector<64x1024xf32> to vector<8x1024xf32>
    %103 = arith.truncf %100 : vector<8x256xf32> to vector<8x256xbf16>
    %cst_27 = arith.constant dense<0.000000e+00> : vector<8x1024xf32>
    %104 = tpu.matmul %103, %6, %cst_27 {dimension_numbers = #tpu.dot_dimension_numbers<[1], [0], [0], [1], [0, 0, 1, 1], [], []>} : vector<8x256xbf16>, vector<256x1024xbf16>, vector<8x1024xf32> -> vector<8x1024xf32>
    %105 = arith.addf %102, %104 : vector<8x1024xf32>
    %106 = vector.extract_strided_slice %105 {offsets = [0, 0], sizes = [8, 256], strides = [1, 1]} : vector<8x1024xf32> to vector<8x256xf32>
    %107 = arith.negf %106 : vector<8x256xf32>
    %108 = math.exp %107 : vector<8x256xf32>
    %cst_28 = arith.constant 1.000000e+00 : f32
    %109 = vector.broadcast %cst_28 : f32 to vector<8x256xf32>
    %110 = arith.addf %109, %108 : vector<8x256xf32>
    %111 = arith.divf %109, %110 : vector<8x256xf32>
    %112 = vector.extract_strided_slice %105 {offsets = [0, 256], sizes = [8, 256], strides = [1, 1]} : vector<8x1024xf32> to vector<8x256xf32>
    %113 = arith.negf %112 : vector<8x256xf32>
    %114 = math.exp %113 : vector<8x256xf32>
    %cst_29 = arith.constant 1.000000e+00 : f32
    %115 = vector.broadcast %cst_29 : f32 to vector<8x256xf32>
    %116 = arith.addf %115, %114 : vector<8x256xf32>
    %117 = arith.divf %115, %116 : vector<8x256xf32>
    %118 = vector.extract_strided_slice %105 {offsets = [0, 512], sizes = [8, 256], strides = [1, 1]} : vector<8x1024xf32> to vector<8x256xf32>
    %119 = math.tanh %118 : vector<8x256xf32>
    %120 = vector.extract_strided_slice %105 {offsets = [0, 768], sizes = [8, 256], strides = [1, 1]} : vector<8x1024xf32> to vector<8x256xf32>
    %121 = arith.negf %120 : vector<8x256xf32>
    %122 = math.exp %121 : vector<8x256xf32>
    %cst_30 = arith.constant 1.000000e+00 : f32
    %123 = vector.broadcast %cst_30 : f32 to vector<8x256xf32>
    %124 = arith.addf %123, %122 : vector<8x256xf32>
    %125 = arith.divf %123, %124 : vector<8x256xf32>
    %126 = arith.mulf %117, %98 : vector<8x256xf32>
    %127 = arith.mulf %111, %119 : vector<8x256xf32>
    %128 = arith.addf %126, %127 : vector<8x256xf32>
    %129 = math.tanh %128 : vector<8x256xf32>
    %130 = arith.mulf %125, %129 : vector<8x256xf32>
    %c24 = arith.constant 24 : index
    %c0_31 = arith.constant 0 : index
    %131 = vector.load %arg8[%c24, %c0_31] : memref<64x256xf32, #tpu.memory_space<vmem>>, vector<8x256xf32>
    tpu.vector_store %arg8[%c24, %c0_31], %130 {strides = array<i32>} : memref<64x256xf32, #tpu.memory_space<vmem>>, vector<8x256xf32>,
    %132 = vector.extract_strided_slice %13 {offsets = [32, 0], sizes = [8, 1024], strides = [1, 1]} : vector<64x1024xf32> to vector<8x1024xf32>
    %133 = arith.truncf %130 : vector<8x256xf32> to vector<8x256xbf16>
    %cst_32 = arith.constant dense<0.000000e+00> : vector<8x1024xf32>
    %134 = tpu.matmul %133, %6, %cst_32 {dimension_numbers = #tpu.dot_dimension_numbers<[1], [0], [0], [1], [0, 0, 1, 1], [], []>} : vector<8x256xbf16>, vector<256x1024xbf16>, vector<8x1024xf32> -> vector<8x1024xf32>
    %135 = arith.addf %132, %134 : vector<8x1024xf32>
    %136 = vector.extract_strided_slice %135 {offsets = [0, 0], sizes = [8, 256], strides = [1, 1]} : vector<8x1024xf32> to vector<8x256xf32>
    %137 = arith.negf %136 : vector<8x256xf32>
    %138 = math.exp %137 : vector<8x256xf32>
    %cst_33 = arith.constant 1.000000e+00 : f32
    %139 = vector.broadcast %cst_33 : f32 to vector<8x256xf32>
    %140 = arith.addf %139, %138 : vector<8x256xf32>
    %141 = arith.divf %139, %140 : vector<8x256xf32>
    %142 = vector.extract_strided_slice %135 {offsets = [0, 256], sizes = [8, 256], strides = [1, 1]} : vector<8x1024xf32> to vector<8x256xf32>
    %143 = arith.negf %142 : vector<8x256xf32>
    %144 = math.exp %143 : vector<8x256xf32>
    %cst_34 = arith.constant 1.000000e+00 : f32
    %145 = vector.broadcast %cst_34 : f32 to vector<8x256xf32>
    %146 = arith.addf %145, %144 : vector<8x256xf32>
    %147 = arith.divf %145, %146 : vector<8x256xf32>
    %148 = vector.extract_strided_slice %135 {offsets = [0, 512], sizes = [8, 256], strides = [1, 1]} : vector<8x1024xf32> to vector<8x256xf32>
    %149 = math.tanh %148 : vector<8x256xf32>
    %150 = vector.extract_strided_slice %135 {offsets = [0, 768], sizes = [8, 256], strides = [1, 1]} : vector<8x1024xf32> to vector<8x256xf32>
    %151 = arith.negf %150 : vector<8x256xf32>
    %152 = math.exp %151 : vector<8x256xf32>
    %cst_35 = arith.constant 1.000000e+00 : f32
    %153 = vector.broadcast %cst_35 : f32 to vector<8x256xf32>
    %154 = arith.addf %153, %152 : vector<8x256xf32>
    %155 = arith.divf %153, %154 : vector<8x256xf32>
    %156 = arith.mulf %147, %128 : vector<8x256xf32>
    %157 = arith.mulf %141, %149 : vector<8x256xf32>
    %158 = arith.addf %156, %157 : vector<8x256xf32>
    %159 = math.tanh %158 : vector<8x256xf32>
    %160 = arith.mulf %155, %159 : vector<8x256xf32>
    %c32 = arith.constant 32 : index
    %c0_36 = arith.constant 0 : index
    %161 = vector.load %arg8[%c32, %c0_36] : memref<64x256xf32, #tpu.memory_space<vmem>>, vector<8x256xf32>
    tpu.vector_store %arg8[%c32, %c0_36], %160 {strides = array<i32>} : memref<64x256xf32, #tpu.memory_space<vmem>>, vector<8x256xf32>,
    %162 = vector.extract_strided_slice %13 {offsets = [40, 0], sizes = [8, 1024], strides = [1, 1]} : vector<64x1024xf32> to vector<8x1024xf32>
    %163 = arith.truncf %160 : vector<8x256xf32> to vector<8x256xbf16>
    %cst_37 = arith.constant dense<0.000000e+00> : vector<8x1024xf32>
    %164 = tpu.matmul %163, %6, %cst_37 {dimension_numbers = #tpu.dot_dimension_numbers<[1], [0], [0], [1], [0, 0, 1, 1], [], []>} : vector<8x256xbf16>, vector<256x1024xbf16>, vector<8x1024xf32> -> vector<8x1024xf32>
    %165 = arith.addf %162, %164 : vector<8x1024xf32>
    %166 = vector.extract_strided_slice %165 {offsets = [0, 0], sizes = [8, 256], strides = [1, 1]} : vector<8x1024xf32> to vector<8x256xf32>
    %167 = arith.negf %166 : vector<8x256xf32>
    %168 = math.exp %167 : vector<8x256xf32>
    %cst_38 = arith.constant 1.000000e+00 : f32
    %169 = vector.broadcast %cst_38 : f32 to vector<8x256xf32>
    %170 = arith.addf %169, %168 : vector<8x256xf32>
    %171 = arith.divf %169, %170 : vector<8x256xf32>
    %172 = vector.extract_strided_slice %165 {offsets = [0, 256], sizes = [8, 256], strides = [1, 1]} : vector<8x1024xf32> to vector<8x256xf32>
    %173 = arith.negf %172 : vector<8x256xf32>
    %174 = math.exp %173 : vector<8x256xf32>
    %cst_39 = arith.constant 1.000000e+00 : f32
    %175 = vector.broadcast %cst_39 : f32 to vector<8x256xf32>
    %176 = arith.addf %175, %174 : vector<8x256xf32>
    %177 = arith.divf %175, %176 : vector<8x256xf32>
    %178 = vector.extract_strided_slice %165 {offsets = [0, 512], sizes = [8, 256], strides = [1, 1]} : vector<8x1024xf32> to vector<8x256xf32>
    %179 = math.tanh %178 : vector<8x256xf32>
    %180 = vector.extract_strided_slice %165 {offsets = [0, 768], sizes = [8, 256], strides = [1, 1]} : vector<8x1024xf32> to vector<8x256xf32>
    %181 = arith.negf %180 : vector<8x256xf32>
    %182 = math.exp %181 : vector<8x256xf32>
    %cst_40 = arith.constant 1.000000e+00 : f32
    %183 = vector.broadcast %cst_40 : f32 to vector<8x256xf32>
    %184 = arith.addf %183, %182 : vector<8x256xf32>
    %185 = arith.divf %183, %184 : vector<8x256xf32>
    %186 = arith.mulf %177, %158 : vector<8x256xf32>
    %187 = arith.mulf %171, %179 : vector<8x256xf32>
    %188 = arith.addf %186, %187 : vector<8x256xf32>
    %189 = math.tanh %188 : vector<8x256xf32>
    %190 = arith.mulf %185, %189 : vector<8x256xf32>
    %c40 = arith.constant 40 : index
    %c0_41 = arith.constant 0 : index
    %191 = vector.load %arg8[%c40, %c0_41] : memref<64x256xf32, #tpu.memory_space<vmem>>, vector<8x256xf32>
    tpu.vector_store %arg8[%c40, %c0_41], %190 {strides = array<i32>} : memref<64x256xf32, #tpu.memory_space<vmem>>, vector<8x256xf32>,
    %192 = vector.extract_strided_slice %13 {offsets = [48, 0], sizes = [8, 1024], strides = [1, 1]} : vector<64x1024xf32> to vector<8x1024xf32>
    %193 = arith.truncf %190 : vector<8x256xf32> to vector<8x256xbf16>
    %cst_42 = arith.constant dense<0.000000e+00> : vector<8x1024xf32>
    %194 = tpu.matmul %193, %6, %cst_42 {dimension_numbers = #tpu.dot_dimension_numbers<[1], [0], [0], [1], [0, 0, 1, 1], [], []>} : vector<8x256xbf16>, vector<256x1024xbf16>, vector<8x1024xf32> -> vector<8x1024xf32>
    %195 = arith.addf %192, %194 : vector<8x1024xf32>
    %196 = vector.extract_strided_slice %195 {offsets = [0, 0], sizes = [8, 256], strides = [1, 1]} : vector<8x1024xf32> to vector<8x256xf32>
    %197 = arith.negf %196 : vector<8x256xf32>
    %198 = math.exp %197 : vector<8x256xf32>
    %cst_43 = arith.constant 1.000000e+00 : f32
    %199 = vector.broadcast %cst_43 : f32 to vector<8x256xf32>
    %200 = arith.addf %199, %198 : vector<8x256xf32>
    %201 = arith.divf %199, %200 : vector<8x256xf32>
    %202 = vector.extract_strided_slice %195 {offsets = [0, 256], sizes = [8, 256], strides = [1, 1]} : vector<8x1024xf32> to vector<8x256xf32>
    %203 = arith.negf %202 : vector<8x256xf32>
    %204 = math.exp %203 : vector<8x256xf32>
    %cst_44 = arith.constant 1.000000e+00 : f32
    %205 = vector.broadcast %cst_44 : f32 to vector<8x256xf32>
    %206 = arith.addf %205, %204 : vector<8x256xf32>
    %207 = arith.divf %205, %206 : vector<8x256xf32>
    %208 = vector.extract_strided_slice %195 {offsets = [0, 512], sizes = [8, 256], strides = [1, 1]} : vector<8x1024xf32> to vector<8x256xf32>
    %209 = math.tanh %208 : vector<8x256xf32>
    %210 = vector.extract_strided_slice %195 {offsets = [0, 768], sizes = [8, 256], strides = [1, 1]} : vector<8x1024xf32> to vector<8x256xf32>
    %211 = arith.negf %210 : vector<8x256xf32>
    %212 = math.exp %211 : vector<8x256xf32>
    %cst_45 = arith.constant 1.000000e+00 : f32
    %213 = vector.broadcast %cst_45 : f32 to vector<8x256xf32>
    %214 = arith.addf %213, %212 : vector<8x256xf32>
    %215 = arith.divf %213, %214 : vector<8x256xf32>
    %216 = arith.mulf %207, %188 : vector<8x256xf32>
    %217 = arith.mulf %201, %209 : vector<8x256xf32>
    %218 = arith.addf %216, %217 : vector<8x256xf32>
    %219 = math.tanh %218 : vector<8x256xf32>
    %220 = arith.mulf %215, %219 : vector<8x256xf32>
    %c48 = arith.constant 48 : index
    %c0_46 = arith.constant 0 : index
    %221 = vector.load %arg8[%c48, %c0_46] : memref<64x256xf32, #tpu.memory_space<vmem>>, vector<8x256xf32>
    tpu.vector_store %arg8[%c48, %c0_46], %220 {strides = array<i32>} : memref<64x256xf32, #tpu.memory_space<vmem>>, vector<8x256xf32>,
    %222 = vector.extract_strided_slice %13 {offsets = [56, 0], sizes = [8, 1024], strides = [1, 1]} : vector<64x1024xf32> to vector<8x1024xf32>
    %223 = arith.truncf %220 : vector<8x256xf32> to vector<8x256xbf16>
    %cst_47 = arith.constant dense<0.000000e+00> : vector<8x1024xf32>
    %224 = tpu.matmul %223, %6, %cst_47 {dimension_numbers = #tpu.dot_dimension_numbers<[1], [0], [0], [1], [0, 0, 1, 1], [], []>} : vector<8x256xbf16>, vector<256x1024xbf16>, vector<8x1024xf32> -> vector<8x1024xf32>
    %225 = arith.addf %222, %224 : vector<8x1024xf32>
    %226 = vector.extract_strided_slice %225 {offsets = [0, 0], sizes = [8, 256], strides = [1, 1]} : vector<8x1024xf32> to vector<8x256xf32>
    %227 = arith.negf %226 : vector<8x256xf32>
    %228 = math.exp %227 : vector<8x256xf32>
    %cst_48 = arith.constant 1.000000e+00 : f32
    %229 = vector.broadcast %cst_48 : f32 to vector<8x256xf32>
    %230 = arith.addf %229, %228 : vector<8x256xf32>
    %231 = arith.divf %229, %230 : vector<8x256xf32>
    %232 = vector.extract_strided_slice %225 {offsets = [0, 256], sizes = [8, 256], strides = [1, 1]} : vector<8x1024xf32> to vector<8x256xf32>
    %233 = arith.negf %232 : vector<8x256xf32>
    %234 = math.exp %233 : vector<8x256xf32>
    %cst_49 = arith.constant 1.000000e+00 : f32
    %235 = vector.broadcast %cst_49 : f32 to vector<8x256xf32>
    %236 = arith.addf %235, %234 : vector<8x256xf32>
    %237 = arith.divf %235, %236 : vector<8x256xf32>
    %238 = vector.extract_strided_slice %225 {offsets = [0, 512], sizes = [8, 256], strides = [1, 1]} : vector<8x1024xf32> to vector<8x256xf32>
    %239 = math.tanh %238 : vector<8x256xf32>
    %240 = vector.extract_strided_slice %225 {offsets = [0, 768], sizes = [8, 256], strides = [1, 1]} : vector<8x1024xf32> to vector<8x256xf32>
    %241 = arith.negf %240 : vector<8x256xf32>
    %242 = math.exp %241 : vector<8x256xf32>
    %cst_50 = arith.constant 1.000000e+00 : f32
    %243 = vector.broadcast %cst_50 : f32 to vector<8x256xf32>
    %244 = arith.addf %243, %242 : vector<8x256xf32>
    %245 = arith.divf %243, %244 : vector<8x256xf32>
    %246 = arith.mulf %237, %218 : vector<8x256xf32>
    %247 = arith.mulf %231, %239 : vector<8x256xf32>
    %248 = arith.addf %246, %247 : vector<8x256xf32>
    %249 = math.tanh %248 : vector<8x256xf32>
    %250 = arith.mulf %245, %249 : vector<8x256xf32>
    %c56 = arith.constant 56 : index
    %c0_51 = arith.constant 0 : index
    %251 = vector.load %arg8[%c56, %c0_51] : memref<64x256xf32, #tpu.memory_space<vmem>>, vector<8x256xf32>
    tpu.vector_store %arg8[%c56, %c0_51], %250 {strides = array<i32>} : memref<64x256xf32, #tpu.memory_space<vmem>>, vector<8x256xf32>,
    %c4_i32 = arith.constant 4 : i32
    %252 = arith.cmpi eq, %arg0, %c4_i32 : i32
    %253 = arith.extui %252 : i1 to i32
    %c0_i32_52 = arith.constant 0 : i32
    %254 = arith.cmpi ne, %253, %c0_i32_52 : i32
    scf.if %254 {
      %c0_53 = arith.constant 0 : index
      %c0_54 = arith.constant 0 : index
      %255 = vector.load %arg5[%c0_53, %c0_54] : memref<256x128xf32, #tpu.memory_space<vmem>>, vector<256x128xf32>
      %cst_55 = arith.constant dense<0.000000e+00> : vector<8x128xf32>
      %256 = tpu.matmul %250, %255, %cst_55 {dimension_numbers = #tpu.dot_dimension_numbers<[1], [0], [0], [1], [0, 0, 1, 1], [], []>} : vector<8x256xf32>, vector<256x128xf32>, vector<8x128xf32> -> vector<8x128xf32>
      %c0_56 = arith.constant 0 : index
      %c0_57 = arith.constant 0 : index
      %257 = vector.load %arg6[%c0_56, %c0_57] : memref<1x128xf32, #tpu.memory_space<vmem>>, vector<1x128xf32>
      %258 = vector.broadcast %257 : vector<1x128xf32> to vector<8x128xf32>
      %259 = arith.addf %256, %258 : vector<8x128xf32>
      %260 = vector.extract_strided_slice %259 {offsets = [0, 0], sizes = [2, 9], strides = [1, 1]} : vector<8x128xf32> to vector<2x9xf32>
      %c0_58 = arith.constant 0 : index
      %c0_59 = arith.constant 0 : index
      %261 = vector.load %arg7[%c0_58, %c0_59] : memref<2x9xf32, #tpu.memory_space<vmem>>, vector<2x9xf32>
      tpu.vector_store %arg7[%c0_58, %c0_59], %260 {strides = array<i32>} : memref<2x9xf32, #tpu.memory_space<vmem>>, vector<2x9xf32>,
    } else {
    }
    return
  }
  func.func @transform_0(%arg0: i32) -> (i32, i32) {
    %c0_i32 = arith.constant 0 : i32
    %c0_i32_0 = arith.constant 0 : i32
    %c0_i32_1 = arith.constant 0 : i32
    return %c0_i32, %c0_i32_0 : i32, i32
  }
  func.func @transform_1(%arg0: i32) -> (i32, i32, i32) {
    %c0_i32 = arith.constant 0 : i32
    %c0_i32_0 = arith.constant 0 : i32
    %c0_i32_1 = arith.constant 0 : i32
    return %arg0, %c0_i32, %c0_i32_0 : i32, i32, i32
  }
  func.func @transform_2(%arg0: i32) -> (i32, i32, i32) {
    %c0_i32 = arith.constant 0 : i32
    %c0_i32_0 = arith.constant 0 : i32
    %c0_i32_1 = arith.constant 0 : i32
    return %arg0, %c0_i32, %c0_i32_0 : i32, i32, i32
  }
  func.func @transform_3(%arg0: i32) -> (i32, i32, i32) {
    %c0_i32 = arith.constant 0 : i32
    %c0_i32_0 = arith.constant 0 : i32
    %c0_i32_1 = arith.constant 0 : i32
    return %arg0, %c0_i32, %c0_i32_0 : i32, i32, i32
  }
  func.func @transform_4(%arg0: i32) -> (i32, i32) {
    %c0_i32 = arith.constant 0 : i32
    %c0_i32_0 = arith.constant 0 : i32
    %c0_i32_1 = arith.constant 0 : i32
    return %c0_i32, %c0_i32_0 : i32, i32
  }
  func.func @transform_5(%arg0: i32) -> (i32, i32) {
    %c0_i32 = arith.constant 0 : i32
    %c0_i32_0 = arith.constant 0 : i32
    %c0_i32_1 = arith.constant 0 : i32
    return %c0_i32, %c0_i32_0 : i32, i32
  }
  func.func @transform_6(%arg0: i32) -> (i32, i32) {
    %c0_i32 = arith.constant 0 : i32
    %c0_i32_0 = arith.constant 0 : i32
    %c0_i32_1 = arith.constant 0 : i32
    return %c0_i32, %c0_i32_0 : i32, i32
  }
}

</mosaic_0001>

<llo_original>
// kernel: lstm_classifier_forward.1
$region0: #{lstm_classifier_forward.1}
  #allocation0 [shape = 'u32[]', space=smem, size = 0x4, offset = 0x4, fixed_abs, tag = 'smem constant byte address 0x4 - core index']
  #allocation1 [shape = 'u32[144,128]{1,0:T(1,128)}', space=vmem, size = 0x12000, scoped, tag = 'internal scratch']
  #allocation2 [shape = 'f32[64,256]{1,0:T(8,128)}', space=vmem, size = 0x10000, scoped, tag = 'scratch operand']
  %s0 = inlined_call_operand.vmem [shape: f32[64,256], index: 0, kind: input, shape index: {}]
  %s1 = inlined_call_operand.vmem [shape: bf16[5,256,1024], index: 1, kind: input, shape index: {}]
  %s2 = inlined_call_operand.vmem [shape: bf16[5,256,1024], index: 2, kind: input, shape index: {}]
  %s3 = inlined_call_operand.vmem [shape: f32[5,1,1024], index: 3, kind: input, shape index: {}]
  %s4 = inlined_call_operand.vmem [shape: f32[256,128], index: 4, kind: input, shape index: {}]
  %s5 = inlined_call_operand.vmem [shape: f32[1,128], index: 5, kind: input, shape index: {}]
  %s6 = inlined_call_operand.hbm [shape: f32[2,9], index: 6, kind: output, shape index: {}]
  %s7 = sld [smem:[#allocation0]]
  $region65: #{lstm_classifier_forward.1} parent=0
    _
  %s9 = ssub.s32 1, %s7
  %s10 = scalar_select 0, %s9, %s7
  $region1: #{lstm_classifier_forward.1} parent=0
    #allocation3 [shape = 'u8[1024]{0}', space=vmem, size = 0x400, scoped, tag = 'output window, operand 0, single buffered']
    #allocation4 [shape = 's32[2]{0}', space=sflag, size = 0x8, scoped, tag = 'scoped memory for lstm_classifier_forward.1']
    %11 = vsyncpa [#allocation4], 0
    loop: start=0, step=1, limit=7
    $region2: #{lstm_classifier_forward.1} parent=1 // loop_pre_header
      _
    $region3: #{lstm_classifier_forward.1} parent=1 // loop_header
      %s13 = sphi 0, %s17
      %p14 = scmp.ge.s32.totalorder %s13, 7
      %s21 = sphi 0, %s21
      %s23 = sphi 0, %s21
      %s24 = sphi 0, %s23
      %s38 = sphi 0, %s24
      %s44 = sphi 0, %s46
      %s47 = sphi 0, %s44
      %s48 = sphi 0, %s47
      %s64 = sphi 0, %s48
      %s70 = sphi 0, %s72
      %s73 = sphi 0, %s70
      %s74 = sphi 0, %s73
      %s90 = sphi 0, %s74
      %s96 = sphi 0, %s98
      %s99 = sphi 0, %s96
      %s100 = sphi 0, %s99
      %s116 = sphi 0, %s100
      %s120 = sphi 0, %s120
      %s122 = sphi 0, %s120
      %s123 = sphi 0, %s122
      %s137 = sphi 0, %s123
      %s141 = sphi 0, %s141
      %s143 = sphi 0, %s141
      %s144 = sphi 0, %s143
      %s158 = sphi 0, %s144
      %s162 = sphi 0, %s162
      %s164 = sphi 0, %s162
      %s165 = sphi 0, %s164
      %s179 = sphi 0, %s165
    $region4: #{lstm_classifier_forward.1} parent=1 // loop_header_branch
      %16 = sbr.rel (%p14) target = $region8
    $region5: #{lstm_classifier_forward.1} parent=1 // loop_body
      %s18 = ssub.s32 %s13, 1
      %s19 = ssub.s32 %s13, 2
      %s20 = sadd.s32 %s13, 1
      %s22 = sadd.s32 %s21, 1
      %p25 = scmp.eq.s32.totalorder %s13, 4
      %p26 = scmp.ne.s32.totalorder %s21, %s23
      %p27 = scmp.eq.s32.totalorder %s13, 0
      %p28 = por %p26, %p27
      %p29 = scmp.ne.s32.totalorder %s21, %s23
      %p30 = scmp.eq.s32.totalorder %s18, 4
      %p31 = por %p29, %p30
      %p32 = scmp.ne.s32.totalorder %s23, %s24
      %p33 = scmp.eq.s32.totalorder %s18, 0
      %p34 = por %p32, %p33
      %p35 = scmp.ne.s32.totalorder %s23, %s24
      %p36 = scmp.eq.s32.totalorder %s19, 4
      %p37 = por %p35, %p36
      %p39 = scmp.ne.s32.totalorder %s24, %s38
      %p40 = scmp.eq.s32.totalorder %s19, 0
      %p41 = por %p39, %p40
      %s42 = ssub.s32 %s13, %s20
      %p43 = scmp.eq.s32.totalorder %s42, 0
      %s45 = sadd.s32 %s44, 1
      %s46 = scalar_select %p43, %s44, %s45
      %p49 = pneg %p43
      %p50 = scmp.eq.s32.totalorder %s13, 4
      %p51 = por %p49, %p50
      %p52 = scmp.ne.s32.totalorder %s44, %s47
      %p53 = scmp.eq.s32.totalorder %s13, 0
      %p54 = por %p52, %p53
      %p55 = scmp.ne.s32.totalorder %s44, %s47
      %p56 = scmp.eq.s32.totalorder %s18, 4
      %p57 = por %p55, %p56
      %p58 = scmp.ne.s32.totalorder %s47, %s48
      %p59 = scmp.eq.s32.totalorder %s18, 0
      %p60 = por %p58, %p59
      %p61 = scmp.ne.s32.totalorder %s47, %s48
      %p62 = scmp.eq.s32.totalorder %s19, 4
      %p63 = por %p61, %p62
      %p65 = scmp.ne.s32.totalorder %s48, %s64
      %p66 = scmp.eq.s32.totalorder %s19, 0
      %p67 = por %p65, %p66
      %s68 = ssub.s32 %s13, %s20
      %p69 = scmp.eq.s32.totalorder %s68, 0
      %s71 = sadd.s32 %s70, 1
      %s72 = scalar_select %p69, %s70, %s71
      %p75 = pneg %p69
      %p76 = scmp.eq.s32.totalorder %s13, 4
      %p77 = por %p75, %p76
      %p78 = scmp.ne.s32.totalorder %s70, %s73
      %p79 = scmp.eq.s32.totalorder %s13, 0
      %p80 = por %p78, %p79
      %p81 = scmp.ne.s32.totalorder %s70, %s73
      %p82 = scmp.eq.s32.totalorder %s18, 4
      %p83 = por %p81, %p82
      %p84 = scmp.ne.s32.totalorder %s73, %s74
      %p85 = scmp.eq.s32.totalorder %s18, 0
      %p86 = por %p84, %p85
      %p87 = scmp.ne.s32.totalorder %s73, %s74
      %p88 = scmp.eq.s32.totalorder %s19, 4
      %p89 = por %p87, %p88
      %p91 = scmp.ne.s32.totalorder %s74, %s90
      %p92 = scmp.eq.s32.totalorder %s19, 0
      %p93 = por %p91, %p92
      %s94 = ssub.s32 %s13, %s20
      %p95 = scmp.eq.s32.totalorder %s94, 0
      %s97 = sadd.s32 %s96, 1
      %s98 = scalar_select %p95, %s96, %s97
      %p101 = pneg %p95
      %p102 = scmp.eq.s32.totalorder %s13, 4
      %p103 = por %p101, %p102
      %p104 = scmp.ne.s32.totalorder %s96, %s99
      %p105 = scmp.eq.s32.totalorder %s13, 0
      %p106 = por %p104, %p105
      %p107 = scmp.ne.s32.totalorder %s96, %s99
      %p108 = scmp.eq.s32.totalorder %s18, 4
      %p109 = por %p107, %p108
      %p110 = scmp.ne.s32.totalorder %s99, %s100
      %p111 = scmp.eq.s32.totalorder %s18, 0
      %p112 = por %p110, %p111
      %p113 = scmp.ne.s32.totalorder %s99, %s100
      %p114 = scmp.eq.s32.totalorder %s19, 4
      %p115 = por %p113, %p114
      %p117 = scmp.ne.s32.totalorder %s100, %s116
      %p118 = scmp.eq.s32.totalorder %s19, 0
      %p119 = por %p117, %p118
      %s121 = sadd.s32 %s120, 1
      %p124 = scmp.eq.s32.totalorder %s13, 4
      %p125 = scmp.ne.s32.totalorder %s120, %s122
      %p126 = scmp.eq.s32.totalorder %s13, 0
      %p127 = por %p125, %p126
      %p128 = scmp.ne.s32.totalorder %s120, %s122
      %p129 = scmp.eq.s32.totalorder %s18, 4
      %p130 = por %p128, %p129
      %p131 = scmp.ne.s32.totalorder %s122, %s123
      %p132 = scmp.eq.s32.totalorder %s18, 0
      %p133 = por %p131, %p132
      %p134 = scmp.ne.s32.totalorder %s122, %s123
      %p135 = scmp.eq.s32.totalorder %s19, 4
      %p136 = por %p134, %p135
      %p138 = scmp.ne.s32.totalorder %s123, %s137
      %p139 = scmp.eq.s32.totalorder %s19, 0
      %p140 = por %p138, %p139
      %s142 = sadd.s32 %s141, 1
      %p145 = scmp.eq.s32.totalorder %s13, 4
      %p146 = scmp.ne.s32.totalorder %s141, %s143
      %p147 = scmp.eq.s32.totalorder %s13, 0
      %p148 = por %p146, %p147
      %p149 = scmp.ne.s32.totalorder %s141, %s143
      %p150 = scmp.eq.s32.totalorder %s18, 4
      %p151 = por %p149, %p150
      %p152 = scmp.ne.s32.totalorder %s143, %s144
      %p153 = scmp.eq.s32.totalorder %s18, 0
      %p154 = por %p152, %p153
      %p155 = scmp.ne.s32.totalorder %s143, %s144
      %p156 = scmp.eq.s32.totalorder %s19, 4
      %p157 = por %p155, %p156
      %p159 = scmp.ne.s32.totalorder %s144, %s158
      %p160 = scmp.eq.s32.totalorder %s19, 0
      %p161 = por %p159, %p160
      %s163 = sadd.s32 %s162, 1
      %p166 = scmp.eq.s32.totalorder %s13, 4
      %p167 = scmp.ne.s32.totalorder %s162, %s164
      %p168 = scmp.eq.s32.totalorder %s13, 0
      %p169 = por %p167, %p168
      %p170 = scmp.ne.s32.totalorder %s162, %s164
      %p171 = scmp.eq.s32.totalorder %s18, 4
      %p172 = por %p170, %p171
      %p173 = scmp.ne.s32.totalorder %s164, %s165
      %p174 = scmp.eq.s32.totalorder %s18, 0
      %p175 = por %p173, %p174
      %p176 = scmp.ne.s32.totalorder %s164, %s165
      %p177 = scmp.eq.s32.totalorder %s19, 4
      %p178 = por %p176, %p177
      %p180 = scmp.ne.s32.totalorder %s165, %s179
      %p181 = scmp.eq.s32.totalorder %s19, 0
      %p182 = por %p180, %p181
      %p183 = scmp.le.s32.totalorder 1, %s13
      %p184 = scmp.lt.s32.totalorder %s13, 6
      %p185 = pnand %p183, %p184
      %p186 = pneg %p185
      // Predicated region
      $region9: #{lstm_classifier_forward.1} parent=5 // pred_check
        _
      $region10: #{lstm_classifier_forward.1} parent=5 // pred_check_branch
        %188 = sbr.rel (%p185) target = $region12
      $region11: #{lstm_classifier_forward.1} parent=5 // pred_region
        %s189 = ssub.s32 %s13, 1
        // Predicated region
        $region13: #{lstm_classifier_forward.1} parent=11 // pred_check
          %p190 = pneg %p34
        $region14: #{lstm_classifier_forward.1} parent=11 // pred_check_branch
          %192 = sbr.rel (%p190) target = $region16
        $region15: #{lstm_classifier_forward.1} parent=11 // pred_region
          _
        $region16: #{lstm_classifier_forward.1} parent=11 // pred_fallthru
          _
        // Predicated region
        $region17: #{lstm_classifier_forward.1} parent=11 // pred_check
          %p193 = pneg %p133
        $region18: #{lstm_classifier_forward.1} parent=11 // pred_check_branch
          %195 = sbr.rel (%p193) target = $region20
        $region19: #{lstm_classifier_forward.1} parent=11 // pred_region
          _
        $region20: #{lstm_classifier_forward.1} parent=11 // pred_fallthru
          _
        // Predicated region
        $region21: #{lstm_classifier_forward.1} parent=11 // pred_check
          %p196 = pneg %p154
        $region22: #{lstm_classifier_forward.1} parent=11 // pred_check_branch
          %198 = sbr.rel (%p196) target = $region24
        $region23: #{lstm_classifier_forward.1} parent=11 // pred_region
          _
        $region24: #{lstm_classifier_forward.1} parent=11 // pred_fallthru
          _
      $region12: #{lstm_classifier_forward.1} parent=5 // pred_fallthru
        _
      %p199 = scmp.lt.s32.totalorder %s13, 5
      // Predicated region
      $region25: #{lstm_classifier_forward.1} parent=5 // pred_check
        %p200 = pneg %p199
      $region26: #{lstm_classifier_forward.1} parent=5 // pred_check_branch
        %202 = sbr.rel (%p200) target = $region28
      $region27: #{lstm_classifier_forward.1} parent=5 // pred_region
        // Predicated region
        $region29: #{lstm_classifier_forward.1} parent=27 // pred_check
          %p203 = pneg %p54
        $region30: #{lstm_classifier_forward.1} parent=27 // pred_check_branch
          %205 = sbr.rel (%p203) target = $region32
        $region31: #{lstm_classifier_forward.1} parent=27 // pred_region
          %p206 = scmp.lt.s32.totalorder %s13, 4
          %s207 = scalar_select %p206, %s13, 4
          %s208 = smul.addr %s207, 256
          %s209 = smul.addr %s208, 4
          %s210 = scalar_lea.vmem %s1, %s209
        $region32: #{lstm_classifier_forward.1} parent=27 // pred_fallthru
          _
        // Predicated region
        $region33: #{lstm_classifier_forward.1} parent=27 // pred_check
          %p211 = pneg %p80
        $region34: #{lstm_classifier_forward.1} parent=27 // pred_check_branch
          %213 = sbr.rel (%p211) target = $region36
        $region35: #{lstm_classifier_forward.1} parent=27 // pred_region
          %p214 = scmp.lt.s32.totalorder %s13, 4
          %s215 = scalar_select %p214, %s13, 4
          %s216 = smul.addr %s215, 256
          %s217 = smul.addr %s216, 4
          %s218 = scalar_lea.vmem %s2, %s217
        $region36: #{lstm_classifier_forward.1} parent=27 // pred_fallthru
          _
        // Predicated region
        $region37: #{lstm_classifier_forward.1} parent=27 // pred_check
          %p219 = pneg %p106
        $region38: #{lstm_classifier_forward.1} parent=27 // pred_check_branch
          %221 = sbr.rel (%p219) target = $region40
        $region39: #{lstm_classifier_forward.1} parent=27 // pred_region
          %p222 = scmp.lt.s32.totalorder %s13, 4
          %s223 = scalar_select %p222, %s13, 4
          %s224 = smul.addr %s223, 8
          %s225 = scalar_lea.vmem %s3, %s224
        $region40: #{lstm_classifier_forward.1} parent=27 // pred_fallthru
          _
      $region28: #{lstm_classifier_forward.1} parent=5 // pred_fallthru
        _
      %p226 = scmp.le.s32.totalorder 1, %s13
      %p227 = scmp.lt.s32.totalorder %s13, 6
      %p228 = pnand %p226, %p227
      %p229 = pneg %p228
      // Predicated region
      $region41: #{lstm_classifier_forward.1} parent=5 // pred_check
        _
      $region42: #{lstm_classifier_forward.1} parent=5 // pred_check_branch
        %231 = sbr.rel (%p228) target = $region44
      $region43: #{lstm_classifier_forward.1} parent=5 // pred_region
        %s232 = ssub.s32 %s13, 1
        %p233 = pneg %p34
        %p234 = pneg %p31
        %p235 = scmp.lt.s32.totalorder %s18, 4
        %s236 = scalar_select %p235, %s18, 4
        %s237 = smul.addr %s236, 256
        %s238 = smul.addr %s237, 4
        %s239 = scalar_lea.vmem %s1, %s238
        %p240 = pneg %p60
        %p241 = pneg %p57
        %p242 = scmp.lt.s32.totalorder %s18, 4
        %s243 = scalar_select %p242, %s18, 4
        %s244 = smul.addr %s243, 256
        %s245 = smul.addr %s244, 4
        %s246 = scalar_lea.vmem %s2, %s245
        %p247 = pneg %p86
        %p248 = pneg %p83
        %p249 = scmp.lt.s32.totalorder %s18, 4
        %s250 = scalar_select %p249, %s18, 4
        %s251 = smul.addr %s250, 8
        %s252 = scalar_lea.vmem %s3, %s251
        %p253 = pneg %p112
        %p254 = pneg %p109
        %p255 = pneg %p133
        %p256 = pneg %p130
        %p257 = pneg %p154
        %p258 = pneg %p151
        %p259 = pneg %p175
        %p260 = pneg %p172
        %p261 = scmp.lt.s32.totalorder %s18, 4
        %s262 = scalar_select %p261, %s18, 4
        %s263 = smul.addr %s262, 256
        %s264 = smul.addr %s263, 4
        %s265 = scalar_lea.vmem %s1, %s264
        %p266 = scmp.lt.s32.totalorder %s18, 4
        %s267 = scalar_select %p266, %s18, 4
        %s268 = smul.addr %s267, 256
        %s269 = smul.addr %s268, 4
        %s270 = scalar_lea.vmem %s2, %s269
        %p271 = scmp.lt.s32.totalorder %s18, 4
        %s272 = scalar_select %p271, %s18, 4
        %s273 = smul.addr %s272, 8
        %s274 = scalar_lea.vmem %s3, %s273
        %p275 = scmp.eq.s32.totalorder %s18, 0
        // Predicated region
        $region45: #{lstm_classifier_forward.1} parent=43 // pred_check
          %p276 = pneg %p275
        $region46: #{lstm_classifier_forward.1} parent=43 // pred_check_branch
          %278 = sbr.rel (%p276) target = $region48
        $region47: #{lstm_classifier_forward.1} parent=43 // pred_region
          %v279 = vld [vmem:[%s0] sm:$0xff]
          %v280 = vld [vmem:[%s0 + $0x8] sm:$0xff]
          %v281 = vld [vmem:[%s0 + $0x10] sm:$0xff]
          %v282 = vld [vmem:[%s0 + $0x18] sm:$0xff]
          %v283 = vld [vmem:[%s0 + $0x20] sm:$0xff]
          %v284 = vld [vmem:[%s0 + $0x28] sm:$0xff]
          %v285 = vld [vmem:[%s0 + $0x30] sm:$0xff]
          %v286 = vld [vmem:[%s0 + $0x38] sm:$0xff]
          %v287 = vld [vmem:[%s0 + $0x40] sm:$0xff]
          %v288 = vld [vmem:[%s0 + $0x48] sm:$0xff]
          %v289 = vld [vmem:[%s0 + $0x50] sm:$0xff]
          %v290 = vld [vmem:[%s0 + $0x58] sm:$0xff]
          %v291 = vld [vmem:[%s0 + $0x60] sm:$0xff]
          %v292 = vld [vmem:[%s0 + $0x68] sm:$0xff]
          %v293 = vld [vmem:[%s0 + $0x70] sm:$0xff]
          %v294 = vld [vmem:[%s0 + $0x78] sm:$0xff]
          %295 = vst [vmem:[#allocation2] sm:$0xff] %v279
          %296 = vst [vmem:[#allocation2 + $0x8] sm:$0xff] %v280
          %297 = vst [vmem:[#allocation2 + $0x10] sm:$0xff] %v281
          %298 = vst [vmem:[#allocation2 + $0x18] sm:$0xff] %v282
          %299 = vst [vmem:[#allocation2 + $0x20] sm:$0xff] %v283
          %300 = vst [vmem:[#allocation2 + $0x28] sm:$0xff] %v284
          %301 = vst [vmem:[#allocation2 + $0x30] sm:$0xff] %v285
          %302 = vst [vmem:[#allocation2 + $0x38] sm:$0xff] %v286
          %303 = vst [vmem:[#allocation2 + $0x40] sm:$0xff] %v287
          %304 = vst [vmem:[#allocation2 + $0x48] sm:$0xff] %v288
          %305 = vst [vmem:[#allocation2 + $0x50] sm:$0xff] %v289
          %306 = vst [vmem:[#allocation2 + $0x58] sm:$0xff] %v290
          %307 = vst [vmem:[#allocation2 + $0x60] sm:$0xff] %v291
          %308 = vst [vmem:[#allocation2 + $0x68] sm:$0xff] %v292
          %309 = vst [vmem:[#allocation2 + $0x70] sm:$0xff] %v293
          %310 = vst [vmem:[#allocation2 + $0x78] sm:$0xff] %v294
        $region48: #{lstm_classifier_forward.1} parent=43 // pred_fallthru
          _
        %v311 = vld [vmem:[%s265] sm:$0xff]
        %v312 = vld [vmem:[%s265 + $0x8] sm:$0xff]
        %v313 = vld [vmem:[%s265 + $0x10] sm:$0xff]
        %v314 = vld [vmem:[%s265 + $0x18] sm:$0xff]
        %v315 = vld [vmem:[%s265 + $0x20] sm:$0xff]
        %v316 = vld [vmem:[%s265 + $0x28] sm:$0xff]
        %v317 = vld [vmem:[%s265 + $0x30] sm:$0xff]
        %v318 = vld [vmem:[%s265 + $0x38] sm:$0xff]
        %v319 = vld [vmem:[%s265 + $0x40] sm:$0xff]
        %v320 = vld [vmem:[%s265 + $0x48] sm:$0xff]
        %v321 = vld [vmem:[%s265 + $0x50] sm:$0xff]
        %v322 = vld [vmem:[%s265 + $0x58] sm:$0xff]
        %v323 = vld [vmem:[%s265 + $0x60] sm:$0xff]
        %v324 = vld [vmem:[%s265 + $0x68] sm:$0xff]
        %v325 = vld [vmem:[%s265 + $0x70] sm:$0xff]
        %v326 = vld [vmem:[%s265 + $0x78] sm:$0xff]
        %v327 = vld [vmem:[%s265 + $0x80] sm:$0xff]
        %v328 = vld [vmem:[%s265 + $0x88] sm:$0xff]
        %v329 = vld [vmem:[%s265 + $0x90] sm:$0xff]
        %v330 = vld [vmem:[%s265 + $0x98] sm:$0xff]
        %v331 = vld [vmem:[%s265 + $0xa0] sm:$0xff]
        %v332 = vld [vmem:[%s265 + $0xa8] sm:$0xff]
        %v333 = vld [vmem:[%s265 + $0xb0] sm:$0xff]
        %v334 = vld [vmem:[%s265 + $0xb8] sm:$0xff]
        %v335 = vld [vmem:[%s265 + $0xc0] sm:$0xff]
        %v336 = vld [vmem:[%s265 + $0xc8] sm:$0xff]
        %v337 = vld [vmem:[%s265 + $0xd0] sm:$0xff]
        %v338 = vld [vmem:[%s265 + $0xd8] sm:$0xff]
        %v339 = vld [vmem:[%s265 + $0xe0] sm:$0xff]
        %v340 = vld [vmem:[%s265 + $0xe8] sm:$0xff]
        %v341 = vld [vmem:[%s265 + $0xf0] sm:$0xff]
        %v342 = vld [vmem:[%s265 + $0xf8] sm:$0xff]
        %v343 = vld [vmem:[%s265 + $0x100] sm:$0xff]
        %v344 = vld [vmem:[%s265 + $0x108] sm:$0xff]
        %v345 = vld [vmem:[%s265 + $0x110] sm:$0xff]
        %v346 = vld [vmem:[%s265 + $0x118] sm:$0xff]
        %v347 = vld [vmem:[%s265 + $0x120] sm:$0xff]
        %v348 = vld [vmem:[%s265 + $0x128] sm:$0xff]
        %v349 = vld [vmem:[%s265 + $0x130] sm:$0xff]
        %v350 = vld [vmem:[%s265 + $0x138] sm:$0xff]
        %v351 = vld [vmem:[%s265 + $0x140] sm:$0xff]
        %v352 = vld [vmem:[%s265 + $0x148] sm:$0xff]
        %v353 = vld [vmem:[%s265 + $0x150] sm:$0xff]
        %v354 = vld [vmem:[%s265 + $0x158] sm:$0xff]
        %v355 = vld [vmem:[%s265 + $0x160] sm:$0xff]
        %v356 = vld [vmem:[%s265 + $0x168] sm:$0xff]
        %v357 = vld [vmem:[%s265 + $0x170] sm:$0xff]
        %v358 = vld [vmem:[%s265 + $0x178] sm:$0xff]
        %v359 = vld [vmem:[%s265 + $0x180] sm:$0xff]
        %v360 = vld [vmem:[%s265 + $0x188] sm:$0xff]
        %v361 = vld [vmem:[%s265 + $0x190] sm:$0xff]
        %v362 = vld [vmem:[%s265 + $0x198] sm:$0xff]
        %v363 = vld [vmem:[%s265 + $0x1a0] sm:$0xff]
        %v364 = vld [vmem:[%s265 + $0x1a8] sm:$0xff]
        %v365 = vld [vmem:[%s265 + $0x1b0] sm:$0xff]
        %v366 = vld [vmem:[%s265 + $0x1b8] sm:$0xff]
        %v367 = vld [vmem:[%s265 + $0x1c0] sm:$0xff]
        %v368 = vld [vmem:[%s265 + $0x1c8] sm:$0xff]
        %v369 = vld [vmem:[%s265 + $0x1d0] sm:$0xff]
        %v370 = vld [vmem:[%s265 + $0x1d8] sm:$0xff]
        %v371 = vld [vmem:[%s265 + $0x1e0] sm:$0xff]
        %v372 = vld [vmem:[%s265 + $0x1e8] sm:$0xff]
        %v373 = vld [vmem:[%s265 + $0x1f0] sm:$0xff]
        %v374 = vld [vmem:[%s265 + $0x1f8] sm:$0xff]
        %v375 = vld [vmem:[%s265 + $0x200] sm:$0xff]
        %v376 = vld [vmem:[%s265 + $0x208] sm:$0xff]
        %v377 = vld [vmem:[%s265 + $0x210] sm:$0xff]
        %v378 = vld [vmem:[%s265 + $0x218] sm:$0xff]
        %v379 = vld [vmem:[%s265 + $0x220] sm:$0xff]
        %v380 = vld [vmem:[%s265 + $0x228] sm:$0xff]
        %v381 = vld [vmem:[%s265 + $0x230] sm:$0xff]
        %v382 = vld [vmem:[%s265 + $0x238] sm:$0xff]
        %v383 = vld [vmem:[%s265 + $0x240] sm:$0xff]
        %v384 = vld [vmem:[%s265 + $0x248] sm:$0xff]
        %v385 = vld [vmem:[%s265 + $0x250] sm:$0xff]
        %v386 = vld [vmem:[%s265 + $0x258] sm:$0xff]
        %v387 = vld [vmem:[%s265 + $0x260] sm:$0xff]
        %v388 = vld [vmem:[%s265 + $0x268] sm:$0xff]
        %v389 = vld [vmem:[%s265 + $0x270] sm:$0xff]
        %v390 = vld [vmem:[%s265 + $0x278] sm:$0xff]
        %v391 = vld [vmem:[%s265 + $0x280] sm:$0xff]
        %v392 = vld [vmem:[%s265 + $0x288] sm:$0xff]
        %v393 = vld [vmem:[%s265 + $0x290] sm:$0xff]
        %v394 = vld [vmem:[%s265 + $0x298] sm:$0xff]
        %v395 = vld [vmem:[%s265 + $0x2a0] sm:$0xff]
        %v396 = vld [vmem:[%s265 + $0x2a8] sm:$0xff]
        %v397 = vld [vmem:[%s265 + $0x2b0] sm:$0xff]
        %v398 = vld [vmem:[%s265 + $0x2b8] sm:$0xff]
        %v399 = vld [vmem:[%s265 + $0x2c0] sm:$0xff]
        %v400 = vld [vmem:[%s265 + $0x2c8] sm:$0xff]
        %v401 = vld [vmem:[%s265 + $0x2d0] sm:$0xff]
        %v402 = vld [vmem:[%s265 + $0x2d8] sm:$0xff]
        %v403 = vld [vmem:[%s265 + $0x2e0] sm:$0xff]
        %v404 = vld [vmem:[%s265 + $0x2e8] sm:$0xff]
        %v405 = vld [vmem:[%s265 + $0x2f0] sm:$0xff]
        %v406 = vld [vmem:[%s265 + $0x2f8] sm:$0xff]
        %v407 = vld [vmem:[%s265 + $0x300] sm:$0xff]
        %v408 = vld [vmem:[%s265 + $0x308] sm:$0xff]
        %v409 = vld [vmem:[%s265 + $0x310] sm:$0xff]
        %v410 = vld [vmem:[%s265 + $0x318] sm:$0xff]
        %v411 = vld [vmem:[%s265 + $0x320] sm:$0xff]
        %v412 = vld [vmem:[%s265 + $0x328] sm:$0xff]
        %v413 = vld [vmem:[%s265 + $0x330] sm:$0xff]
        %v414 = vld [vmem:[%s265 + $0x338] sm:$0xff]
        %v415 = vld [vmem:[%s265 + $0x340] sm:$0xff]
        %v416 = vld [vmem:[%s265 + $0x348] sm:$0xff]
        %v417 = vld [vmem:[%s265 + $0x350] sm:$0xff]
        %v418 = vld [vmem:[%s265 + $0x358] sm:$0xff]
        %v419 = vld [vmem:[%s265 + $0x360] sm:$0xff]
        %v420 = vld [vmem:[%s265 + $0x368] sm:$0xff]
        %v421 = vld [vmem:[%s265 + $0x370] sm:$0xff]
        %v422 = vld [vmem:[%s265 + $0x378] sm:$0xff]
        %v423 = vld [vmem:[%s265 + $0x380] sm:$0xff]
        %v424 = vld [vmem:[%s265 + $0x388] sm:$0xff]
        %v425 = vld [vmem:[%s265 + $0x390] sm:$0xff]
        %v426 = vld [vmem:[%s265 + $0x398] sm:$0xff]
        %v427 = vld [vmem:[%s265 + $0x3a0] sm:$0xff]
        %v428 = vld [vmem:[%s265 + $0x3a8] sm:$0xff]
        %v429 = vld [vmem:[%s265 + $0x3b0] sm:$0xff]
        %v430 = vld [vmem:[%s265 + $0x3b8] sm:$0xff]
        %v431 = vld [vmem:[%s265 + $0x3c0] sm:$0xff]
        %v432 = vld [vmem:[%s265 + $0x3c8] sm:$0xff]
        %v433 = vld [vmem:[%s265 + $0x3d0] sm:$0xff]
        %v434 = vld [vmem:[%s265 + $0x3d8] sm:$0xff]
        %v435 = vld [vmem:[%s265 + $0x3e0] sm:$0xff]
        %v436 = vld [vmem:[%s265 + $0x3e8] sm:$0xff]
        %v437 = vld [vmem:[%s265 + $0x3f0] sm:$0xff]
        %v438 = vld [vmem:[%s265 + $0x3f8] sm:$0xff]
        %v439 = vld [vmem:[%s270] sm:$0xff]
        %v440 = vld [vmem:[%s270 + $0x8] sm:$0xff]
        %v441 = vld [vmem:[%s270 + $0x10] sm:$0xff]
        %v442 = vld [vmem:[%s270 + $0x18] sm:$0xff]
        %v443 = vld [vmem:[%s270 + $0x20] sm:$0xff]
        %v444 = vld [vmem:[%s270 + $0x28] sm:$0xff]
        %v445 = vld [vmem:[%s270 + $0x30] sm:$0xff]
        %v446 = vld [vmem:[%s270 + $0x38] sm:$0xff]
        %v447 = vld [vmem:[%s270 + $0x40] sm:$0xff]
        %v448 = vld [vmem:[%s270 + $0x48] sm:$0xff]
        %v449 = vld [vmem:[%s270 + $0x50] sm:$0xff]
        %v450 = vld [vmem:[%s270 + $0x58] sm:$0xff]
        %v451 = vld [vmem:[%s270 + $0x60] sm:$0xff]
        %v452 = vld [vmem:[%s270 + $0x68] sm:$0xff]
        %v453 = vld [vmem:[%s270 + $0x70] sm:$0xff]
        %v454 = vld [vmem:[%s270 + $0x78] sm:$0xff]
        %v455 = vld [vmem:[%s270 + $0x80] sm:$0xff]
        %v456 = vld [vmem:[%s270 + $0x88] sm:$0xff]
        %v457 = vld [vmem:[%s270 + $0x90] sm:$0xff]
        %v458 = vld [vmem:[%s270 + $0x98] sm:$0xff]
        %v459 = vld [vmem:[%s270 + $0xa0] sm:$0xff]
        %v460 = vld [vmem:[%s270 + $0xa8] sm:$0xff]
        %v461 = vld [vmem:[%s270 + $0xb0] sm:$0xff]
        %v462 = vld [vmem:[%s270 + $0xb8] sm:$0xff]
        %v463 = vld [vmem:[%s270 + $0xc0] sm:$0xff]
        %v464 = vld [vmem:[%s270 + $0xc8] sm:$0xff]
        %v465 = vld [vmem:[%s270 + $0xd0] sm:$0xff]
        %v466 = vld [vmem:[%s270 + $0xd8] sm:$0xff]
        %v467 = vld [vmem:[%s270 + $0xe0] sm:$0xff]
        %v468 = vld [vmem:[%s270 + $0xe8] sm:$0xff]
        %v469 = vld [vmem:[%s270 + $0xf0] sm:$0xff]
        %v470 = vld [vmem:[%s270 + $0xf8] sm:$0xff]
        %v471 = vld [vmem:[%s270 + $0x100] sm:$0xff]
        %v472 = vld [vmem:[%s270 + $0x108] sm:$0xff]
        %v473 = vld [vmem:[%s270 + $0x110] sm:$0xff]
        %v474 = vld [vmem:[%s270 + $0x118] sm:$0xff]
        %v475 = vld [vmem:[%s270 + $0x120] sm:$0xff]
        %v476 = vld [vmem:[%s270 + $0x128] sm:$0xff]
        %v477 = vld [vmem:[%s270 + $0x130] sm:$0xff]
        %v478 = vld [vmem:[%s270 + $0x138] sm:$0xff]
        %v479 = vld [vmem:[%s270 + $0x140] sm:$0xff]
        %v480 = vld [vmem:[%s270 + $0x148] sm:$0xff]
        %v481 = vld [vmem:[%s270 + $0x150] sm:$0xff]
        %v482 = vld [vmem:[%s270 + $0x158] sm:$0xff]
        %v483 = vld [vmem:[%s270 + $0x160] sm:$0xff]
        %v484 = vld [vmem:[%s270 + $0x168] sm:$0xff]
        %v485 = vld [vmem:[%s270 + $0x170] sm:$0xff]
        %v486 = vld [vmem:[%s270 + $0x178] sm:$0xff]
        %v487 = vld [vmem:[%s270 + $0x180] sm:$0xff]
        %v488 = vld [vmem:[%s270 + $0x188] sm:$0xff]
        %v489 = vld [vmem:[%s270 + $0x190] sm:$0xff]
        %v490 = vld [vmem:[%s270 + $0x198] sm:$0xff]
        %v491 = vld [vmem:[%s270 + $0x1a0] sm:$0xff]
        %v492 = vld [vmem:[%s270 + $0x1a8] sm:$0xff]
        %v493 = vld [vmem:[%s270 + $0x1b0] sm:$0xff]
        %v494 = vld [vmem:[%s270 + $0x1b8] sm:$0xff]
        %v495 = vld [vmem:[%s270 + $0x1c0] sm:$0xff]
        %v496 = vld [vmem:[%s270 + $0x1c8] sm:$0xff]
        %v497 = vld [vmem:[%s270 + $0x1d0] sm:$0xff]
        %v498 = vld [vmem:[%s270 + $0x1d8] sm:$0xff]
        %v499 = vld [vmem:[%s270 + $0x1e0] sm:$0xff]
        %v500 = vld [vmem:[%s270 + $0x1e8] sm:$0xff]
        %v501 = vld [vmem:[%s270 + $0x1f0] sm:$0xff]
        %v502 = vld [vmem:[%s270 + $0x1f8] sm:$0xff]
        %v503 = vld [vmem:[%s270 + $0x200] sm:$0xff]
        %v504 = vld [vmem:[%s270 + $0x208] sm:$0xff]
        %v505 = vld [vmem:[%s270 + $0x210] sm:$0xff]
        %v506 = vld [vmem:[%s270 + $0x218] sm:$0xff]
        %v507 = vld [vmem:[%s270 + $0x220] sm:$0xff]
        %v508 = vld [vmem:[%s270 + $0x228] sm:$0xff]
        %v509 = vld [vmem:[%s270 + $0x230] sm:$0xff]
        %v510 = vld [vmem:[%s270 + $0x238] sm:$0xff]
        %v511 = vld [vmem:[%s270 + $0x240] sm:$0xff]
        %v512 = vld [vmem:[%s270 + $0x248] sm:$0xff]
        %v513 = vld [vmem:[%s270 + $0x250] sm:$0xff]
        %v514 = vld [vmem:[%s270 + $0x258] sm:$0xff]
        %v515 = vld [vmem:[%s270 + $0x260] sm:$0xff]
        %v516 = vld [vmem:[%s270 + $0x268] sm:$0xff]
        %v517 = vld [vmem:[%s270 + $0x270] sm:$0xff]
        %v518 = vld [vmem:[%s270 + $0x278] sm:$0xff]
        %v519 = vld [vmem:[%s270 + $0x280] sm:$0xff]
        %v520 = vld [vmem:[%s270 + $0x288] sm:$0xff]
        %v521 = vld [vmem:[%s270 + $0x290] sm:$0xff]
        %v522 = vld [vmem:[%s270 + $0x298] sm:$0xff]
        %v523 = vld [vmem:[%s270 + $0x2a0] sm:$0xff]
        %v524 = vld [vmem:[%s270 + $0x2a8] sm:$0xff]
        %v525 = vld [vmem:[%s270 + $0x2b0] sm:$0xff]
        %v526 = vld [vmem:[%s270 + $0x2b8] sm:$0xff]
        %v527 = vld [vmem:[%s270 + $0x2c0] sm:$0xff]
        %v528 = vld [vmem:[%s270 + $0x2c8] sm:$0xff]
        %v529 = vld [vmem:[%s270 + $0x2d0] sm:$0xff]
        %v530 = vld [vmem:[%s270 + $0x2d8] sm:$0xff]
        %v531 = vld [vmem:[%s270 + $0x2e0] sm:$0xff]
        %v532 = vld [vmem:[%s270 + $0x2e8] sm:$0xff]
        %v533 = vld [vmem:[%s270 + $0x2f0] sm:$0xff]
        %v534 = vld [vmem:[%s270 + $0x2f8] sm:$0xff]
        %v535 = vld [vmem:[%s270 + $0x300] sm:$0xff]
        %v536 = vld [vmem:[%s270 + $0x308] sm:$0xff]
        %v537 = vld [vmem:[%s270 + $0x310] sm:$0xff]
        %v538 = vld [vmem:[%s270 + $0x318] sm:$0xff]
        %v539 = vld [vmem:[%s270 + $0x320] sm:$0xff]
        %v540 = vld [vmem:[%s270 + $0x328] sm:$0xff]
        %v541 = vld [vmem:[%s270 + $0x330] sm:$0xff]
        %v542 = vld [vmem:[%s270 + $0x338] sm:$0xff]
        %v543 = vld [vmem:[%s270 + $0x340] sm:$0xff]
        %v544 = vld [vmem:[%s270 + $0x348] sm:$0xff]
        %v545 = vld [vmem:[%s270 + $0x350] sm:$0xff]
        %v546 = vld [vmem:[%s270 + $0x358] sm:$0xff]
        %v547 = vld [vmem:[%s270 + $0x360] sm:$0xff]
        %v548 = vld [vmem:[%s270 + $0x368] sm:$0xff]
        %v549 = vld [vmem:[%s270 + $0x370] sm:$0xff]
        %v550 = vld [vmem:[%s270 + $0x378] sm:$0xff]
        %v551 = vld [vmem:[%s270 + $0x380] sm:$0xff]
        %v552 = vld [vmem:[%s270 + $0x388] sm:$0xff]
        %v553 = vld [vmem:[%s270 + $0x390] sm:$0xff]
        %v554 = vld [vmem:[%s270 + $0x398] sm:$0xff]
        %v555 = vld [vmem:[%s270 + $0x3a0] sm:$0xff]
        %v556 = vld [vmem:[%s270 + $0x3a8] sm:$0xff]
        %v557 = vld [vmem:[%s270 + $0x3b0] sm:$0xff]
        %v558 = vld [vmem:[%s270 + $0x3b8] sm:$0xff]
        %v559 = vld [vmem:[%s270 + $0x3c0] sm:$0xff]
        %v560 = vld [vmem:[%s270 + $0x3c8] sm:$0xff]
        %v561 = vld [vmem:[%s270 + $0x3d0] sm:$0xff]
        %v562 = vld [vmem:[%s270 + $0x3d8] sm:$0xff]
        %v563 = vld [vmem:[%s270 + $0x3e0] sm:$0xff]
        %v564 = vld [vmem:[%s270 + $0x3e8] sm:$0xff]
        %v565 = vld [vmem:[%s270 + $0x3f0] sm:$0xff]
        %v566 = vld [vmem:[%s270 + $0x3f8] sm:$0xff]
        %v567 = vld [vmem:[%s274] sm:$0xff]
        %v568 = vld [vmem:[#allocation2] sm:$0xff]
        %v569 = vld [vmem:[#allocation2 + $0x8] sm:$0xff]
        %v570 = vld [vmem:[#allocation2 + $0x10] sm:$0xff]
        %v571 = vld [vmem:[#allocation2 + $0x18] sm:$0xff]
        %v572 = vld [vmem:[#allocation2 + $0x20] sm:$0xff]
        %v573 = vld [vmem:[#allocation2 + $0x28] sm:$0xff]
        %v574 = vld [vmem:[#allocation2 + $0x30] sm:$0xff]
        %v575 = vld [vmem:[#allocation2 + $0x38] sm:$0xff]
        %v576 = vld [vmem:[#allocation2 + $0x40] sm:$0xff]
        %v577 = vld [vmem:[#allocation2 + $0x48] sm:$0xff]
        %v578 = vld [vmem:[#allocation2 + $0x50] sm:$0xff]
        %v579 = vld [vmem:[#allocation2 + $0x58] sm:$0xff]
        %v580 = vld [vmem:[#allocation2 + $0x60] sm:$0xff]
        %v581 = vld [vmem:[#allocation2 + $0x68] sm:$0xff]
        %v582 = vld [vmem:[#allocation2 + $0x70] sm:$0xff]
        %v583 = vld [vmem:[#allocation2 + $0x78] sm:$0xff]
        %v584 = vpack.c.bf16 %v570, %v568
        %v585 = vpack.c.bf16 %v571, %v569
        %v586 = vpack.c.bf16 %v574, %v572
        %v587 = vpack.c.bf16 %v575, %v573
        %v588 = vpack.c.bf16 %v578, %v576
        %v589 = vpack.c.bf16 %v579, %v577
        %v590 = vpack.c.bf16 %v582, %v580
        %v591 = vpack.c.bf16 %v583, %v581
        %v593 = vlaneseq
        %v594 = vshrl.u32 %v593, 7
        %v595 = vsub.s32 0, %v594
        %v596 = vrot.slane %v567, %v595
        %v597 = vlaneseq
        %v598 = vshrl.u32 %v597, 7
        %v599 = vsub.s32 1, %v598
        %v600 = vrot.slane %v567, %v599
        %v601 = vlaneseq
        %v602 = vshrl.u32 %v601, 7
        %v603 = vsub.s32 2, %v602
        %v604 = vrot.slane %v567, %v603
        %v605 = vlaneseq
        %v606 = vshrl.u32 %v605, 7
        %v607 = vsub.s32 3, %v606
        %v608 = vrot.slane %v567, %v607
        %v609 = vlaneseq
        %v610 = vshrl.u32 %v609, 7
        %v611 = vsub.s32 4, %v610
        %v612 = vrot.slane %v567, %v611
        %v613 = vlaneseq
        %v614 = vshrl.u32 %v613, 7
        %v615 = vsub.s32 5, %v614
        %v616 = vrot.slane %v567, %v615
        %v617 = vlaneseq
        %v618 = vshrl.u32 %v617, 7
        %v619 = vsub.s32 6, %v618
        %v620 = vrot.slane %v567, %v619
        %v621 = vlaneseq
        %v622 = vshrl.u32 %v621, 7
        %v623 = vsub.s32 7, %v622
        %v624 = vrot.slane %v567, %v623
        %v761 = vunpack.c.l.b16 %v311
        %v762 = vunpack.c.h.b16 %v311
        %v763 = vunpack.c.l.b16 %v312
        %v764 = vunpack.c.h.b16 %v312
        %v765 = vunpack.c.l.b16 %v313
        %v766 = vunpack.c.h.b16 %v313
        %v767 = vunpack.c.l.b16 %v314
        %v768 = vunpack.c.h.b16 %v314
        %v769 = vunpack.c.l.b16 %v315
        %v770 = vunpack.c.h.b16 %v315
        %v771 = vunpack.c.l.b16 %v316
        %v772 = vunpack.c.h.b16 %v316
        %v773 = vunpack.c.l.b16 %v317
        %v774 = vunpack.c.h.b16 %v317
        %v775 = vunpack.c.l.b16 %v318
        %v776 = vunpack.c.h.b16 %v318
        %v777 = vunpack.c.l.b16 %v319
        %v778 = vunpack.c.h.b16 %v319
        %v779 = vunpack.c.l.b16 %v320
        %v780 = vunpack.c.h.b16 %v320
        %v781 = vunpack.c.l.b16 %v321
        %v782 = vunpack.c.h.b16 %v321
        %v783 = vunpack.c.l.b16 %v322
        %v784 = vunpack.c.h.b16 %v322
        %v785 = vunpack.c.l.b16 %v323
        %v786 = vunpack.c.h.b16 %v323
        %v787 = vunpack.c.l.b16 %v324
        %v788 = vunpack.c.h.b16 %v324
        %v789 = vunpack.c.l.b16 %v325
        %v790 = vunpack.c.h.b16 %v325
        %v791 = vunpack.c.l.b16 %v326
        %v792 = vunpack.c.h.b16 %v326
        %v793 = vunpack.c.l.b16 %v327
        %v794 = vunpack.c.h.b16 %v327
        %v795 = vunpack.c.l.b16 %v328
        %v796 = vunpack.c.h.b16 %v328
        %v797 = vunpack.c.l.b16 %v329
        %v798 = vunpack.c.h.b16 %v329
        %v799 = vunpack.c.l.b16 %v330
        %v800 = vunpack.c.h.b16 %v330
        %v801 = vunpack.c.l.b16 %v331
        %v802 = vunpack.c.h.b16 %v331
        %v803 = vunpack.c.l.b16 %v332
        %v804 = vunpack.c.h.b16 %v332
        %v805 = vunpack.c.l.b16 %v333
        %v806 = vunpack.c.h.b16 %v333
        %v807 = vunpack.c.l.b16 %v334
        %v808 = vunpack.c.h.b16 %v334
        %v809 = vunpack.c.l.b16 %v335
        %v810 = vunpack.c.h.b16 %v335
        %v811 = vunpack.c.l.b16 %v336
        %v812 = vunpack.c.h.b16 %v336
        %v813 = vunpack.c.l.b16 %v337
        %v814 = vunpack.c.h.b16 %v337
        %v815 = vunpack.c.l.b16 %v338
        %v816 = vunpack.c.h.b16 %v338
        %v817 = vunpack.c.l.b16 %v339
        %v818 = vunpack.c.h.b16 %v339
        %v819 = vunpack.c.l.b16 %v340
        %v820 = vunpack.c.h.b16 %v340
        %v821 = vunpack.c.l.b16 %v341
        %v822 = vunpack.c.h.b16 %v341
        %v823 = vunpack.c.l.b16 %v342
        %v824 = vunpack.c.h.b16 %v342
        %v825 = vunpack.c.l.b16 %v343
        %v826 = vunpack.c.h.b16 %v343
        %v827 = vunpack.c.l.b16 %v344
        %v828 = vunpack.c.h.b16 %v344
        %v829 = vunpack.c.l.b16 %v345
        %v830 = vunpack.c.h.b16 %v345
        %v831 = vunpack.c.l.b16 %v346
        %v832 = vunpack.c.h.b16 %v346
        %v833 = vunpack.c.l.b16 %v347
        %v834 = vunpack.c.h.b16 %v347
        %v835 = vunpack.c.l.b16 %v348
        %v836 = vunpack.c.h.b16 %v348
        %v837 = vunpack.c.l.b16 %v349
        %v838 = vunpack.c.h.b16 %v349
        %v839 = vunpack.c.l.b16 %v350
        %v840 = vunpack.c.h.b16 %v350
        %v841 = vunpack.c.l.b16 %v351
        %v842 = vunpack.c.h.b16 %v351
        %v843 = vunpack.c.l.b16 %v352
        %v844 = vunpack.c.h.b16 %v352
        %v845 = vunpack.c.l.b16 %v353
        %v846 = vunpack.c.h.b16 %v353
        %v847 = vunpack.c.l.b16 %v354
        %v848 = vunpack.c.h.b16 %v354
        %v849 = vunpack.c.l.b16 %v355
        %v850 = vunpack.c.h.b16 %v355
        %v851 = vunpack.c.l.b16 %v356
        %v852 = vunpack.c.h.b16 %v356
        %v853 = vunpack.c.l.b16 %v357
        %v854 = vunpack.c.h.b16 %v357
        %v855 = vunpack.c.l.b16 %v358
        %v856 = vunpack.c.h.b16 %v358
        %v857 = vunpack.c.l.b16 %v359
        %v858 = vunpack.c.h.b16 %v359
        %v859 = vunpack.c.l.b16 %v360
        %v860 = vunpack.c.h.b16 %v360
        %v861 = vunpack.c.l.b16 %v361
        %v862 = vunpack.c.h.b16 %v361
        %v863 = vunpack.c.l.b16 %v362
        %v864 = vunpack.c.h.b16 %v362
        %v865 = vunpack.c.l.b16 %v363
        %v866 = vunpack.c.h.b16 %v363
        %v867 = vunpack.c.l.b16 %v364
        %v868 = vunpack.c.h.b16 %v364
        %v869 = vunpack.c.l.b16 %v365
        %v870 = vunpack.c.h.b16 %v365
        %v871 = vunpack.c.l.b16 %v366
        %v872 = vunpack.c.h.b16 %v366
        %v873 = vunpack.c.l.b16 %v367
        %v874 = vunpack.c.h.b16 %v367
        %v875 = vunpack.c.l.b16 %v368
        %v876 = vunpack.c.h.b16 %v368
        %v877 = vunpack.c.l.b16 %v369
        %v878 = vunpack.c.h.b16 %v369
        %v879 = vunpack.c.l.b16 %v370
        %v880 = vunpack.c.h.b16 %v370
        %v881 = vunpack.c.l.b16 %v371
        %v882 = vunpack.c.h.b16 %v371
        %v883 = vunpack.c.l.b16 %v372
        %v884 = vunpack.c.h.b16 %v372
        %v885 = vunpack.c.l.b16 %v373
        %v886 = vunpack.c.h.b16 %v373
        %v887 = vunpack.c.l.b16 %v374
        %v888 = vunpack.c.h.b16 %v374
        %v889 = vunpack.c.l.b16 %v375
        %v890 = vunpack.c.h.b16 %v375
        %v891 = vunpack.c.l.b16 %v376
        %v892 = vunpack.c.h.b16 %v376
        %v893 = vunpack.c.l.b16 %v377
        %v894 = vunpack.c.h.b16 %v377
        %v895 = vunpack.c.l.b16 %v378
        %v896 = vunpack.c.h.b16 %v378
        %v897 = vunpack.c.l.b16 %v379
        %v898 = vunpack.c.h.b16 %v379
        %v899 = vunpack.c.l.b16 %v380
        %v900 = vunpack.c.h.b16 %v380
        %v901 = vunpack.c.l.b16 %v381
        %v902 = vunpack.c.h.b16 %v381
        %v903 = vunpack.c.l.b16 %v382
        %v904 = vunpack.c.h.b16 %v382
        %v905 = vunpack.c.l.b16 %v383
        %v906 = vunpack.c.h.b16 %v383
        %v907 = vunpack.c.l.b16 %v384
        %v908 = vunpack.c.h.b16 %v384
        %v909 = vunpack.c.l.b16 %v385
        %v910 = vunpack.c.h.b16 %v385
        %v911 = vunpack.c.l.b16 %v386
        %v912 = vunpack.c.h.b16 %v386
        %v913 = vunpack.c.l.b16 %v387
        %v914 = vunpack.c.h.b16 %v387
        %v915 = vunpack.c.l.b16 %v388
        %v916 = vunpack.c.h.b16 %v388
        %v917 = vunpack.c.l.b16 %v389
        %v918 = vunpack.c.h.b16 %v389
        %v919 = vunpack.c.l.b16 %v390
        %v920 = vunpack.c.h.b16 %v390
        %v921 = vunpack.c.l.b16 %v391
        %v922 = vunpack.c.h.b16 %v391
        %v923 = vunpack.c.l.b16 %v392
        %v924 = vunpack.c.h.b16 %v392
        %v925 = vunpack.c.l.b16 %v393
        %v926 = vunpack.c.h.b16 %v393
        %v927 = vunpack.c.l.b16 %v394
        %v928 = vunpack.c.h.b16 %v394
        %v929 = vunpack.c.l.b16 %v395
        %v930 = vunpack.c.h.b16 %v395
        %v931 = vunpack.c.l.b16 %v396
        %v932 = vunpack.c.h.b16 %v396
        %v933 = vunpack.c.l.b16 %v397
        %v934 = vunpack.c.h.b16 %v397
        %v935 = vunpack.c.l.b16 %v398
        %v936 = vunpack.c.h.b16 %v398
        %v937 = vunpack.c.l.b16 %v399
        %v938 = vunpack.c.h.b16 %v399
        %v939 = vunpack.c.l.b16 %v400
        %v940 = vunpack.c.h.b16 %v400
        %v941 = vunpack.c.l.b16 %v401
        %v942 = vunpack.c.h.b16 %v401
        %v943 = vunpack.c.l.b16 %v402
        %v944 = vunpack.c.h.b16 %v402
        %v945 = vunpack.c.l.b16 %v403
        %v946 = vunpack.c.h.b16 %v403
        %v947 = vunpack.c.l.b16 %v404
        %v948 = vunpack.c.h.b16 %v404
        %v949 = vunpack.c.l.b16 %v405
        %v950 = vunpack.c.h.b16 %v405
        %v951 = vunpack.c.l.b16 %v406
        %v952 = vunpack.c.h.b16 %v406
        %v953 = vunpack.c.l.b16 %v407
        %v954 = vunpack.c.h.b16 %v407
        %v955 = vunpack.c.l.b16 %v408
        %v956 = vunpack.c.h.b16 %v408
        %v957 = vunpack.c.l.b16 %v409
        %v958 = vunpack.c.h.b16 %v409
        %v959 = vunpack.c.l.b16 %v410
        %v960 = vunpack.c.h.b16 %v410
        %v961 = vunpack.c.l.b16 %v411
        %v962 = vunpack.c.h.b16 %v411
        %v963 = vunpack.c.l.b16 %v412
        %v964 = vunpack.c.h.b16 %v412
        %v965 = vunpack.c.l.b16 %v413
        %v966 = vunpack.c.h.b16 %v413
        %v967 = vunpack.c.l.b16 %v414
        %v968 = vunpack.c.h.b16 %v414
        %v969 = vunpack.c.l.b16 %v415
        %v970 = vunpack.c.h.b16 %v415
        %v971 = vunpack.c.l.b16 %v416
        %v972 = vunpack.c.h.b16 %v416
        %v973 = vunpack.c.l.b16 %v417
        %v974 = vunpack.c.h.b16 %v417
        %v975 = vunpack.c.l.b16 %v418
        %v976 = vunpack.c.h.b16 %v418
        %v977 = vunpack.c.l.b16 %v419
        %v978 = vunpack.c.h.b16 %v419
        %v979 = vunpack.c.l.b16 %v420
        %v980 = vunpack.c.h.b16 %v420
        %v981 = vunpack.c.l.b16 %v421
        %v982 = vunpack.c.h.b16 %v421
        %v983 = vunpack.c.l.b16 %v422
        %v984 = vunpack.c.h.b16 %v422
        %v985 = vunpack.c.l.b16 %v423
        %v986 = vunpack.c.h.b16 %v423
        %v987 = vunpack.c.l.b16 %v424
        %v988 = vunpack.c.h.b16 %v424
        %v989 = vunpack.c.l.b16 %v425
        %v990 = vunpack.c.h.b16 %v425
        %v991 = vunpack.c.l.b16 %v426
        %v992 = vunpack.c.h.b16 %v426
        %v993 = vunpack.c.l.b16 %v427
        %v994 = vunpack.c.h.b16 %v427
        %v995 = vunpack.c.l.b16 %v428
        %v996 = vunpack.c.h.b16 %v428
        %v997 = vunpack.c.l.b16 %v429
        %v998 = vunpack.c.h.b16 %v429
        %v999 = vunpack.c.l.b16 %v430
        %v1000 = vunpack.c.h.b16 %v430
        %v1001 = vunpack.c.l.b16 %v431
        %v1002 = vunpack.c.h.b16 %v431
        %v1003 = vunpack.c.l.b16 %v432
        %v1004 = vunpack.c.h.b16 %v432
        %v1005 = vunpack.c.l.b16 %v433
        %v1006 = vunpack.c.h.b16 %v433
        %v1007 = vunpack.c.l.b16 %v434
        %v1008 = vunpack.c.h.b16 %v434
        %v1009 = vunpack.c.l.b16 %v435
        %v1010 = vunpack.c.h.b16 %v435
        %v1011 = vunpack.c.l.b16 %v436
        %v1012 = vunpack.c.h.b16 %v436
        %v1013 = vunpack.c.l.b16 %v437
        %v1014 = vunpack.c.h.b16 %v437
        %v1015 = vunpack.c.l.b16 %v438
        %v1016 = vunpack.c.h.b16 %v438
        %v1017 = vpack.c.b16 %v769, %v761
        %v1018 = vpack.c.b16 %v770, %v762
        %v1019 = vpack.c.b16 %v771, %v763
        %v1020 = vpack.c.b16 %v772, %v764
        %v1021 = vpack.c.b16 %v773, %v765
        %v1022 = vpack.c.b16 %v774, %v766
        %v1023 = vpack.c.b16 %v775, %v767
        %v1024 = vpack.c.b16 %v776, %v768
        %v1025 = vpack.c.b16 %v785, %v777
        %v1026 = vpack.c.b16 %v786, %v778
        %v1027 = vpack.c.b16 %v787, %v779
        %v1028 = vpack.c.b16 %v788, %v780
        %v1029 = vpack.c.b16 %v789, %v781
        %v1030 = vpack.c.b16 %v790, %v782
        %v1031 = vpack.c.b16 %v791, %v783
        %v1032 = vpack.c.b16 %v792, %v784
        %v1033 = vpack.c.b16 %v801, %v793
        %v1034 = vpack.c.b16 %v802, %v794
        %v1035 = vpack.c.b16 %v803, %v795
        %v1036 = vpack.c.b16 %v804, %v796
        %v1037 = vpack.c.b16 %v805, %v797
        %v1038 = vpack.c.b16 %v806, %v798
        %v1039 = vpack.c.b16 %v807, %v799
        %v1040 = vpack.c.b16 %v808, %v800
        %v1041 = vpack.c.b16 %v817, %v809
        %v1042 = vpack.c.b16 %v818, %v810
        %v1043 = vpack.c.b16 %v819, %v811
        %v1044 = vpack.c.b16 %v820, %v812
        %v1045 = vpack.c.b16 %v821, %v813
        %v1046 = vpack.c.b16 %v822, %v814
        %v1047 = vpack.c.b16 %v823, %v815
        %v1048 = vpack.c.b16 %v824, %v816
        %v1049 = vpack.c.b16 %v833, %v825
        %v1050 = vpack.c.b16 %v834, %v826
        %v1051 = vpack.c.b16 %v835, %v827
        %v1052 = vpack.c.b16 %v836, %v828
        %v1053 = vpack.c.b16 %v837, %v829
        %v1054 = vpack.c.b16 %v838, %v830
        %v1055 = vpack.c.b16 %v839, %v831
        %v1056 = vpack.c.b16 %v840, %v832
        %v1057 = vpack.c.b16 %v849, %v841
        %v1058 = vpack.c.b16 %v850, %v842
        %v1059 = vpack.c.b16 %v851, %v843
        %v1060 = vpack.c.b16 %v852, %v844
        %v1061 = vpack.c.b16 %v853, %v845
        %v1062 = vpack.c.b16 %v854, %v846
        %v1063 = vpack.c.b16 %v855, %v847
        %v1064 = vpack.c.b16 %v856, %v848
        %v1065 = vpack.c.b16 %v865, %v857
        %v1066 = vpack.c.b16 %v866, %v858
        %v1067 = vpack.c.b16 %v867, %v859
        %v1068 = vpack.c.b16 %v868, %v860
        %v1069 = vpack.c.b16 %v869, %v861
        %v1070 = vpack.c.b16 %v870, %v862
        %v1071 = vpack.c.b16 %v871, %v863
        %v1072 = vpack.c.b16 %v872, %v864
        %v1073 = vpack.c.b16 %v881, %v873
        %v1074 = vpack.c.b16 %v882, %v874
        %v1075 = vpack.c.b16 %v883, %v875
        %v1076 = vpack.c.b16 %v884, %v876
        %v1077 = vpack.c.b16 %v885, %v877
        %v1078 = vpack.c.b16 %v886, %v878
        %v1079 = vpack.c.b16 %v887, %v879
        %v1080 = vpack.c.b16 %v888, %v880
        %v1081 = vpack.c.b16 %v897, %v889
        %v1082 = vpack.c.b16 %v898, %v890
        %v1083 = vpack.c.b16 %v899, %v891
        %v1084 = vpack.c.b16 %v900, %v892
        %v1085 = vpack.c.b16 %v901, %v893
        %v1086 = vpack.c.b16 %v902, %v894
        %v1087 = vpack.c.b16 %v903, %v895
        %v1088 = vpack.c.b16 %v904, %v896
        %v1089 = vpack.c.b16 %v913, %v905
        %v1090 = vpack.c.b16 %v914, %v906
        %v1091 = vpack.c.b16 %v915, %v907
        %v1092 = vpack.c.b16 %v916, %v908
        %v1093 = vpack.c.b16 %v917, %v909
        %v1094 = vpack.c.b16 %v918, %v910
        %v1095 = vpack.c.b16 %v919, %v911
        %v1096 = vpack.c.b16 %v920, %v912
        %v1097 = vpack.c.b16 %v929, %v921
        %v1098 = vpack.c.b16 %v930, %v922
        %v1099 = vpack.c.b16 %v931, %v923
        %v1100 = vpack.c.b16 %v932, %v924
        %v1101 = vpack.c.b16 %v933, %v925
        %v1102 = vpack.c.b16 %v934, %v926
        %v1103 = vpack.c.b16 %v935, %v927
        %v1104 = vpack.c.b16 %v936, %v928
        %v1105 = vpack.c.b16 %v945, %v937
        %v1106 = vpack.c.b16 %v946, %v938
        %v1107 = vpack.c.b16 %v947, %v939
        %v1108 = vpack.c.b16 %v948, %v940
        %v1109 = vpack.c.b16 %v949, %v941
        %v1110 = vpack.c.b16 %v950, %v942
        %v1111 = vpack.c.b16 %v951, %v943
        %v1112 = vpack.c.b16 %v952, %v944
        %v1113 = vpack.c.b16 %v961, %v953
        %v1114 = vpack.c.b16 %v962, %v954
        %v1115 = vpack.c.b16 %v963, %v955
        %v1116 = vpack.c.b16 %v964, %v956
        %v1117 = vpack.c.b16 %v965, %v957
        %v1118 = vpack.c.b16 %v966, %v958
        %v1119 = vpack.c.b16 %v967, %v959
        %v1120 = vpack.c.b16 %v968, %v960
        %v1121 = vpack.c.b16 %v977, %v969
        %v1122 = vpack.c.b16 %v978, %v970
        %v1123 = vpack.c.b16 %v979, %v971
        %v1124 = vpack.c.b16 %v980, %v972
        %v1125 = vpack.c.b16 %v981, %v973
        %v1126 = vpack.c.b16 %v982, %v974
        %v1127 = vpack.c.b16 %v983, %v975
        %v1128 = vpack.c.b16 %v984, %v976
        %v1129 = vpack.c.b16 %v993, %v985
        %v1130 = vpack.c.b16 %v994, %v986
        %v1131 = vpack.c.b16 %v995, %v987
        %v1132 = vpack.c.b16 %v996, %v988
        %v1133 = vpack.c.b16 %v997, %v989
        %v1134 = vpack.c.b16 %v998, %v990
        %v1135 = vpack.c.b16 %v999, %v991
        %v1136 = vpack.c.b16 %v1000, %v992
        %v1137 = vpack.c.b16 %v1009, %v1001
        %v1138 = vpack.c.b16 %v1010, %v1002
        %v1139 = vpack.c.b16 %v1011, %v1003
        %v1140 = vpack.c.b16 %v1012, %v1004
        %v1141 = vpack.c.b16 %v1013, %v1005
        %v1142 = vpack.c.b16 %v1014, %v1006
        %v1143 = vpack.c.b16 %v1015, %v1007
        %v1144 = vpack.c.b16 %v1016, %v1008
        %1273 = vmatprep.subr.bf16.mxu0 %v1074
        %1274 = vmatpush1.bf16.msra.mxu0 %v1073
        %1275 = vmatprep.subr.bf16.mxu0 %v1066
        %1276 = vmatpush1.bf16.msra.mxu0 %v1065
        %1277 = vmatprep.subr.bf16.mxu0 %v1058
        %1278 = vmatpush1.bf16.msra.mxu0 %v1057
        %1279 = vmatprep.subr.bf16.mxu0 %v1050
        %1280 = vmatpush1.bf16.msra.mxu0 %v1049
        %1281 = vmatprep.subr.bf16.mxu0 %v1042
        %1282 = vmatpush1.bf16.msra.mxu0 %v1041
        %1283 = vmatprep.subr.bf16.mxu0 %v1034
        %1284 = vmatpush1.bf16.msra.mxu0 %v1033
        %1285 = vmatprep.subr.bf16.mxu0 %v1026
        %1286 = vmatpush1.bf16.msra.mxu0 %v1025
        %1287 = vmatprep.subr.bf16.mxu0 %v1018
        %1288 = vmatpush1.bf16.msra.mxu0 %v1017
        %1289 = vmatprep.subr.bf16.mxu0 %v1138
        %1290 = vmatpush2.bf16.msra.mxu0 %v1137
        %1291 = vmatprep.subr.bf16.mxu0 %v1130
        %1292 = vmatpush2.bf16.msra.mxu0 %v1129
        %1293 = vmatprep.subr.bf16.mxu0 %v1122
        %1294 = vmatpush2.bf16.msra.mxu0 %v1121
        %1295 = vmatprep.subr.bf16.mxu0 %v1114
        %1296 = vmatpush2.bf16.msra.mxu0 %v1113
        %1297 = vmatprep.subr.bf16.mxu0 %v1106
        %1298 = vmatpush2.bf16.msra.mxu0 %v1105
        %1299 = vmatprep.subr.bf16.mxu0 %v1098
        %1300 = vmatpush2.bf16.msra.mxu0 %v1097
        %1301 = vmatprep.subr.bf16.mxu0 %v1090
        %1302 = vmatpush2.bf16.msra.mxu0 %v1089
        %1303 = vmatprep.subr.bf16.mxu0 %v1082
        %1304 = vmatpush2.bf16.msra.mxu0 %v1081
        %1305 = vmatprep.mubr.bf16.mxu0 %v585
        %1306 = vmatmul.mubr.bf16.gmra.mxu0 %v584
        %v1307 = vpop.f32.mrf.mxu0
        %v1308 = vadd.f32 %v596, %v1307
        %v1309 = vpop.f32.mrf.mxu0
        %v1310 = vadd.f32 %v600, %v1309
        %v1311 = vpop.f32.mrf.mxu0
        %v1312 = vadd.f32 %v596, %v1311
        %v1313 = vpop.f32.mrf.mxu0
        %v1314 = vadd.f32 %v600, %v1313
        %1315 = vmatprep.mubr.bf16.mxu0 %v587
        %1316 = vmatmul.mubr.bf16.gmra.mxu0 %v586
        %v1317 = vpop.f32.mrf.mxu0
        %v1318 = vadd.f32 %v596, %v1317
        %v1319 = vpop.f32.mrf.mxu0
        %v1320 = vadd.f32 %v600, %v1319
        %v1321 = vpop.f32.mrf.mxu0
        %v1322 = vadd.f32 %v596, %v1321
        %v1323 = vpop.f32.mrf.mxu0
        %v1324 = vadd.f32 %v600, %v1323
        %1325 = vmatprep.mubr.bf16.mxu0 %v589
        %1326 = vmatmul.mubr.bf16.gmra.mxu0 %v588
        %v1327 = vpop.f32.mrf.mxu0
        %v1328 = vadd.f32 %v596, %v1327
        %v1329 = vpop.f32.mrf.mxu0
        %v1330 = vadd.f32 %v600, %v1329
        %v1331 = vpop.f32.mrf.mxu0
        %v1332 = vadd.f32 %v596, %v1331
        %v1333 = vpop.f32.mrf.mxu0
        %v1334 = vadd.f32 %v600, %v1333
        %1335 = vmatprep.mubr.bf16.mxu0 %v591
        %1336 = vmatmul.mubr.bf16.gmra.mxu0 %v590
        %v1337 = vpop.f32.mrf.mxu0
        %v1338 = vadd.f32 %v596, %v1337
        %v1339 = vpop.f32.mrf.mxu0
        %v1340 = vadd.f32 %v600, %v1339
        %v1341 = vpop.f32.mrf.mxu0
        %v1342 = vadd.f32 %v596, %v1341
        %v1343 = vpop.f32.mrf.mxu0
        %v1344 = vadd.f32 %v600, %v1343
        %1345 = vdwg.mxu0
        %1346 = vmatprep.subr.bf16.mxu0 %v1076
        %1347 = vmatpush1.bf16.msra.mxu0 %v1075
        %1348 = vmatprep.subr.bf16.mxu0 %v1068
        %1349 = vmatpush1.bf16.msra.mxu0 %v1067
        %1350 = vmatprep.subr.bf16.mxu0 %v1060
        %1351 = vmatpush1.bf16.msra.mxu0 %v1059
        %1352 = vmatprep.subr.bf16.mxu0 %v1052
        %1353 = vmatpush1.bf16.msra.mxu0 %v1051
        %1354 = vmatprep.subr.bf16.mxu0 %v1044
        %1355 = vmatpush1.bf16.msra.mxu0 %v1043
        %1356 = vmatprep.subr.bf16.mxu0 %v1036
        %1357 = vmatpush1.bf16.msra.mxu0 %v1035
        %1358 = vmatprep.subr.bf16.mxu0 %v1028
        %1359 = vmatpush1.bf16.msra.mxu0 %v1027
        %1360 = vmatprep.subr.bf16.mxu0 %v1020
        %1361 = vmatpush1.bf16.msra.mxu0 %v1019
        %1362 = vmatprep.subr.bf16.mxu0 %v1140
        %1363 = vmatpush2.bf16.msra.mxu0 %v1139
        %1364 = vmatprep.subr.bf16.mxu0 %v1132
        %1365 = vmatpush2.bf16.msra.mxu0 %v1131
        %1366 = vmatprep.subr.bf16.mxu0 %v1124
        %1367 = vmatpush2.bf16.msra.mxu0 %v1123
        %1368 = vmatprep.subr.bf16.mxu0 %v1116
        %1369 = vmatpush2.bf16.msra.mxu0 %v1115
        %1370 = vmatprep.subr.bf16.mxu0 %v1108
        %1371 = vmatpush2.bf16.msra.mxu0 %v1107
        %1372 = vmatprep.subr.bf16.mxu0 %v1100
        %1373 = vmatpush2.bf16.msra.mxu0 %v1099
        %1374 = vmatprep.subr.bf16.mxu0 %v1092
        %1375 = vmatpush2.bf16.msra.mxu0 %v1091
        %1376 = vmatprep.subr.bf16.mxu0 %v1084
        %1377 = vmatpush2.bf16.msra.mxu0 %v1083
        %1378 = vmatprep.mubr.bf16.mxu0 %v585
        %1379 = vmatmul.mubr.bf16.gmra.mxu0 %v584
        %v1380 = vpop.f32.mrf.mxu0
        %v1381 = vadd.f32 %v604, %v1380
        %v1382 = vpop.f32.mrf.mxu0
        %v1383 = vadd.f32 %v608, %v1382
        %v1384 = vpop.f32.mrf.mxu0
        %v1385 = vadd.f32 %v604, %v1384
        %v1386 = vpop.f32.mrf.mxu0
        %v1387 = vadd.f32 %v608, %v1386
        %1388 = vmatprep.mubr.bf16.mxu0 %v587
        %1389 = vmatmul.mubr.bf16.gmra.mxu0 %v586
        %v1390 = vpop.f32.mrf.mxu0
        %v1391 = vadd.f32 %v604, %v1390
        %v1392 = vpop.f32.mrf.mxu0
        %v1393 = vadd.f32 %v608, %v1392
        %v1394 = vpop.f32.mrf.mxu0
        %v1395 = vadd.f32 %v604, %v1394
        %v1396 = vpop.f32.mrf.mxu0
        %v1397 = vadd.f32 %v608, %v1396
        %1398 = vmatprep.mubr.bf16.mxu0 %v589
        %1399 = vmatmul.mubr.bf16.gmra.mxu0 %v588
        %v1400 = vpop.f32.mrf.mxu0
        %v1401 = vadd.f32 %v604, %v1400
        %v1402 = vpop.f32.mrf.mxu0
        %v1403 = vadd.f32 %v608, %v1402
        %v1404 = vpop.f32.mrf.mxu0
        %v1405 = vadd.f32 %v604, %v1404
        %v1406 = vpop.f32.mrf.mxu0
        %v1407 = vadd.f32 %v608, %v1406
        %1408 = vmatprep.mubr.bf16.mxu0 %v591
        %1409 = vmatmul.mubr.bf16.gmra.mxu0 %v590
        %v1410 = vpop.f32.mrf.mxu0
        %v1411 = vadd.f32 %v604, %v1410
        %v1412 = vpop.f32.mrf.mxu0
        %v1413 = vadd.f32 %v608, %v1412
        %v1414 = vpop.f32.mrf.mxu0
        %v1415 = vadd.f32 %v604, %v1414
        %v1416 = vpop.f32.mrf.mxu0
        %v1417 = vadd.f32 %v608, %v1416
        %1418 = vdwg.mxu0
        %1419 = vmatprep.subr.bf16.mxu0 %v1078
        %1420 = vmatpush1.bf16.msra.mxu0 %v1077
        %1421 = vmatprep.subr.bf16.mxu0 %v1070
        %1422 = vmatpush1.bf16.msra.mxu0 %v1069
        %1423 = vmatprep.subr.bf16.mxu0 %v1062
        %1424 = vmatpush1.bf16.msra.mxu0 %v1061
        %1425 = vmatprep.subr.bf16.mxu0 %v1054
        %1426 = vmatpush1.bf16.msra.mxu0 %v1053
        %1427 = vmatprep.subr.bf16.mxu0 %v1046
        %1428 = vmatpush1.bf16.msra.mxu0 %v1045
        %1429 = vmatprep.subr.bf16.mxu0 %v1038
        %1430 = vmatpush1.bf16.msra.mxu0 %v1037
        %1431 = vmatprep.subr.bf16.mxu0 %v1030
        %1432 = vmatpush1.bf16.msra.mxu0 %v1029
        %1433 = vmatprep.subr.bf16.mxu0 %v1022
        %1434 = vmatpush1.bf16.msra.mxu0 %v1021
        %1435 = vmatprep.subr.bf16.mxu0 %v1142
        %1436 = vmatpush2.bf16.msra.mxu0 %v1141
        %1437 = vmatprep.subr.bf16.mxu0 %v1134
        %1438 = vmatpush2.bf16.msra.mxu0 %v1133
        %1439 = vmatprep.subr.bf16.mxu0 %v1126
        %1440 = vmatpush2.bf16.msra.mxu0 %v1125
        %1441 = vmatprep.subr.bf16.mxu0 %v1118
        %1442 = vmatpush2.bf16.msra.mxu0 %v1117
        %1443 = vmatprep.subr.bf16.mxu0 %v1110
        %1444 = vmatpush2.bf16.msra.mxu0 %v1109
        %1445 = vmatprep.subr.bf16.mxu0 %v1102
        %1446 = vmatpush2.bf16.msra.mxu0 %v1101
        %1447 = vmatprep.subr.bf16.mxu0 %v1094
        %1448 = vmatpush2.bf16.msra.mxu0 %v1093
        %1449 = vmatprep.subr.bf16.mxu0 %v1086
        %1450 = vmatpush2.bf16.msra.mxu0 %v1085
        %1451 = vmatprep.mubr.bf16.mxu0 %v585
        %1452 = vmatmul.mubr.bf16.gmra.mxu0 %v584
        %v1453 = vpop.f32.mrf.mxu0
        %v1454 = vadd.f32 %v612, %v1453
        %v1455 = vpop.f32.mrf.mxu0
        %v1456 = vadd.f32 %v616, %v1455
        %v1457 = vpop.f32.mrf.mxu0
        %v1458 = vadd.f32 %v612, %v1457
        %v1459 = vpop.f32.mrf.mxu0
        %v1460 = vadd.f32 %v616, %v1459
        %1461 = vmatprep.mubr.bf16.mxu0 %v587
        %1462 = vmatmul.mubr.bf16.gmra.mxu0 %v586
        %v1463 = vpop.f32.mrf.mxu0
        %v1464 = vadd.f32 %v612, %v1463
        %v1465 = vpop.f32.mrf.mxu0
        %v1466 = vadd.f32 %v616, %v1465
        %v1467 = vpop.f32.mrf.mxu0
        %v1468 = vadd.f32 %v612, %v1467
        %v1469 = vpop.f32.mrf.mxu0
        %v1470 = vadd.f32 %v616, %v1469
        %1471 = vmatprep.mubr.bf16.mxu0 %v589
        %1472 = vmatmul.mubr.bf16.gmra.mxu0 %v588
        %v1473 = vpop.f32.mrf.mxu0
        %v1474 = vadd.f32 %v612, %v1473
        %v1475 = vpop.f32.mrf.mxu0
        %v1476 = vadd.f32 %v616, %v1475
        %v1477 = vpop.f32.mrf.mxu0
        %v1478 = vadd.f32 %v612, %v1477
        %v1479 = vpop.f32.mrf.mxu0
        %v1480 = vadd.f32 %v616, %v1479
        %1481 = vmatprep.mubr.bf16.mxu0 %v591
        %1482 = vmatmul.mubr.bf16.gmra.mxu0 %v590
        %v1483 = vpop.f32.mrf.mxu0
        %v1484 = vadd.f32 %v612, %v1483
        %v1485 = vpop.f32.mrf.mxu0
        %v1486 = vadd.f32 %v616, %v1485
        %v1487 = vpop.f32.mrf.mxu0
        %v1488 = vadd.f32 %v612, %v1487
        %v1489 = vpop.f32.mrf.mxu0
        %v1490 = vadd.f32 %v616, %v1489
        %1491 = vdwg.mxu0
        %1492 = vmatprep.subr.bf16.mxu0 %v1080
        %1493 = vmatpush1.bf16.msra.mxu0 %v1079
        %1494 = vmatprep.subr.bf16.mxu0 %v1072
        %1495 = vmatpush1.bf16.msra.mxu0 %v1071
        %1496 = vmatprep.subr.bf16.mxu0 %v1064
        %1497 = vmatpush1.bf16.msra.mxu0 %v1063
        %1498 = vmatprep.subr.bf16.mxu0 %v1056
        %1499 = vmatpush1.bf16.msra.mxu0 %v1055
        %1500 = vmatprep.subr.bf16.mxu0 %v1048
        %1501 = vmatpush1.bf16.msra.mxu0 %v1047
        %1502 = vmatprep.subr.bf16.mxu0 %v1040
        %1503 = vmatpush1.bf16.msra.mxu0 %v1039
        %1504 = vmatprep.subr.bf16.mxu0 %v1032
        %1505 = vmatpush1.bf16.msra.mxu0 %v1031
        %1506 = vmatprep.subr.bf16.mxu0 %v1024
        %1507 = vmatpush1.bf16.msra.mxu0 %v1023
        %1508 = vmatprep.subr.bf16.mxu0 %v1144
        %1509 = vmatpush2.bf16.msra.mxu0 %v1143
        %1510 = vmatprep.subr.bf16.mxu0 %v1136
        %1511 = vmatpush2.bf16.msra.mxu0 %v1135
        %1512 = vmatprep.subr.bf16.mxu0 %v1128
        %1513 = vmatpush2.bf16.msra.mxu0 %v1127
        %1514 = vmatprep.subr.bf16.mxu0 %v1120
        %1515 = vmatpush2.bf16.msra.mxu0 %v1119
        %1516 = vmatprep.subr.bf16.mxu0 %v1112
        %1517 = vmatpush2.bf16.msra.mxu0 %v1111
        %1518 = vmatprep.subr.bf16.mxu0 %v1104
        %1519 = vmatpush2.bf16.msra.mxu0 %v1103
        %1520 = vmatprep.subr.bf16.mxu0 %v1096
        %1521 = vmatpush2.bf16.msra.mxu0 %v1095
        %1522 = vmatprep.subr.bf16.mxu0 %v1088
        %1523 = vmatpush2.bf16.msra.mxu0 %v1087
        %1524 = vmatprep.mubr.bf16.mxu0 %v585
        %1525 = vmatmul.mubr.bf16.gmra.mxu0 %v584
        %v1526 = vpop.f32.mrf.mxu0
        %v1527 = vadd.f32 %v620, %v1526
        %v1528 = vpop.f32.mrf.mxu0
        %v1529 = vadd.f32 %v624, %v1528
        %v1530 = vpop.f32.mrf.mxu0
        %v1531 = vadd.f32 %v620, %v1530
        %v1532 = vpop.f32.mrf.mxu0
        %v1533 = vadd.f32 %v624, %v1532
        %1534 = vmatprep.mubr.bf16.mxu0 %v587
        %1535 = vmatmul.mubr.bf16.gmra.mxu0 %v586
        %v1536 = vpop.f32.mrf.mxu0
        %v1537 = vadd.f32 %v620, %v1536
        %v1538 = vpop.f32.mrf.mxu0
        %v1539 = vadd.f32 %v624, %v1538
        %v1540 = vpop.f32.mrf.mxu0
        %v1541 = vadd.f32 %v620, %v1540
        %v1542 = vpop.f32.mrf.mxu0
        %v1543 = vadd.f32 %v624, %v1542
        %1544 = vmatprep.mubr.bf16.mxu0 %v589
        %1545 = vmatmul.mubr.bf16.gmra.mxu0 %v588
        %v1546 = vpop.f32.mrf.mxu0
        %v1547 = vadd.f32 %v620, %v1546
        %v1548 = vpop.f32.mrf.mxu0
        %v1549 = vadd.f32 %v624, %v1548
        %v1550 = vpop.f32.mrf.mxu0
        %v1551 = vadd.f32 %v620, %v1550
        %v1552 = vpop.f32.mrf.mxu0
        %v1553 = vadd.f32 %v624, %v1552
        %1554 = vmatprep.mubr.bf16.mxu0 %v591
        %1555 = vmatmul.mubr.bf16.gmra.mxu0 %v590
        %v1556 = vpop.f32.mrf.mxu0
        %v1557 = vadd.f32 %v620, %v1556
        %v1558 = vpop.f32.mrf.mxu0
        %v1559 = vadd.f32 %v624, %v1558
        %v1560 = vpop.f32.mrf.mxu0
        %v1561 = vadd.f32 %v620, %v1560
        %v1562 = vpop.f32.mrf.mxu0
        %v1563 = vadd.f32 %v624, %v1562
        %1564 = vdwg.mxu0
        %v1565 = vxor.u32 %v1308, 2147483648
        %v1566 = vxor.u32 %v1310, 2147483648
        %v1567 = vmul.f32 %v1565, 1.442695
        %v1568 = vpow.pop %v1567
        %v1569 = vmul.f32 %v1566, 1.442695
        %v1570 = vpow.pop %v1569
        %v1571 = vadd.f32 %v1568, 1.0
        %v1572 = vadd.f32 %v1570, 1.0
        %v1573 = vrcp.pop %v1571
        %v1574 = vmul.f32 1.0, %v1573
        %v1575 = vrcp.pop %v1572
        %v1576 = vmul.f32 1.0, %v1575
        %v1577 = vxor.u32 %v1381, 2147483648
        %v1578 = vxor.u32 %v1383, 2147483648
        %v1579 = vmul.f32 %v1577, 1.442695
        %v1580 = vpow.pop %v1579
        %v1581 = vmul.f32 %v1578, 1.442695
        %v1582 = vpow.pop %v1581
        %v1583 = vadd.f32 %v1580, 1.0
        %v1584 = vadd.f32 %v1582, 1.0
        %v1585 = vrcp.pop %v1583
        %v1586 = vmul.f32 1.0, %v1585
        %v1587 = vrcp.pop %v1584
        %v1588 = vmul.f32 1.0, %v1587
        %v1589 = vtanh.pop %v1454
        %v1590 = vtanh.pop %v1456
        %v1591 = vxor.u32 %v1527, 2147483648
        %v1592 = vxor.u32 %v1529, 2147483648
        %v1593 = vmul.f32 %v1591, 1.442695
        %v1594 = vpow.pop %v1593
        %v1595 = vmul.f32 %v1592, 1.442695
        %v1596 = vpow.pop %v1595
        %v1597 = vadd.f32 %v1594, 1.0
        %v1598 = vadd.f32 %v1596, 1.0
        %v1599 = vrcp.pop %v1597
        %v1600 = vmul.f32 1.0, %v1599
        %v1601 = vrcp.pop %v1598
        %v1602 = vmul.f32 1.0, %v1601
        %v1603 = vmul.f32 %v1586, 0.0
        %v1604 = vmul.f32 %v1588, 0.0
        %v1605 = vmul.f32 %v1574, %v1589
        %v1606 = vmul.f32 %v1576, %v1590
        %v1607 = vadd.f32 %v1603, %v1605
        %v1608 = vadd.f32 %v1604, %v1606
        %v1609 = vtanh.pop %v1607
        %v1610 = vtanh.pop %v1608
        %v1611 = vmul.f32 %v1600, %v1609
        %v1612 = vmul.f32 %v1602, %v1610
        %1613 = vst [vmem:[#allocation2] sm:$0xff] %v1611
        %1614 = vst [vmem:[#allocation2 + $0x8] sm:$0xff] %v1612
        %v1615 = vpack.c.bf16 %v1611, %v1611
        %v1616 = vpack.c.bf16 %v1612, %v1612
        %v1745 = vunpack.c.l.b16 %v439
        %v1746 = vunpack.c.h.b16 %v439
        %v1747 = vunpack.c.l.b16 %v440
        %v1748 = vunpack.c.h.b16 %v440
        %v1749 = vunpack.c.l.b16 %v441
        %v1750 = vunpack.c.h.b16 %v441
        %v1751 = vunpack.c.l.b16 %v442
        %v1752 = vunpack.c.h.b16 %v442
        %v1753 = vunpack.c.l.b16 %v443
        %v1754 = vunpack.c.h.b16 %v443
        %v1755 = vunpack.c.l.b16 %v444
        %v1756 = vunpack.c.h.b16 %v444
        %v1757 = vunpack.c.l.b16 %v445
        %v1758 = vunpack.c.h.b16 %v445
        %v1759 = vunpack.c.l.b16 %v446
        %v1760 = vunpack.c.h.b16 %v446
        %v1761 = vunpack.c.l.b16 %v447
        %v1762 = vunpack.c.h.b16 %v447
        %v1763 = vunpack.c.l.b16 %v448
        %v1764 = vunpack.c.h.b16 %v448
        %v1765 = vunpack.c.l.b16 %v449
        %v1766 = vunpack.c.h.b16 %v449
        %v1767 = vunpack.c.l.b16 %v450
        %v1768 = vunpack.c.h.b16 %v450
        %v1769 = vunpack.c.l.b16 %v451
        %v1770 = vunpack.c.h.b16 %v451
        %v1771 = vunpack.c.l.b16 %v452
        %v1772 = vunpack.c.h.b16 %v452
        %v1773 = vunpack.c.l.b16 %v453
        %v1774 = vunpack.c.h.b16 %v453
        %v1775 = vunpack.c.l.b16 %v454
        %v1776 = vunpack.c.h.b16 %v454
        %v1777 = vunpack.c.l.b16 %v455
        %v1778 = vunpack.c.h.b16 %v455
        %v1779 = vunpack.c.l.b16 %v456
        %v1780 = vunpack.c.h.b16 %v456
        %v1781 = vunpack.c.l.b16 %v457
        %v1782 = vunpack.c.h.b16 %v457
        %v1783 = vunpack.c.l.b16 %v458
        %v1784 = vunpack.c.h.b16 %v458
        %v1785 = vunpack.c.l.b16 %v459
        %v1786 = vunpack.c.h.b16 %v459
        %v1787 = vunpack.c.l.b16 %v460
        %v1788 = vunpack.c.h.b16 %v460
        %v1789 = vunpack.c.l.b16 %v461
        %v1790 = vunpack.c.h.b16 %v461
        %v1791 = vunpack.c.l.b16 %v462
        %v1792 = vunpack.c.h.b16 %v462
        %v1793 = vunpack.c.l.b16 %v463
        %v1794 = vunpack.c.h.b16 %v463
        %v1795 = vunpack.c.l.b16 %v464
        %v1796 = vunpack.c.h.b16 %v464
        %v1797 = vunpack.c.l.b16 %v465
        %v1798 = vunpack.c.h.b16 %v465
        %v1799 = vunpack.c.l.b16 %v466
        %v1800 = vunpack.c.h.b16 %v466
        %v1801 = vunpack.c.l.b16 %v467
        %v1802 = vunpack.c.h.b16 %v467
        %v1803 = vunpack.c.l.b16 %v468
        %v1804 = vunpack.c.h.b16 %v468
        %v1805 = vunpack.c.l.b16 %v469
        %v1806 = vunpack.c.h.b16 %v469
        %v1807 = vunpack.c.l.b16 %v470
        %v1808 = vunpack.c.h.b16 %v470
        %v1809 = vunpack.c.l.b16 %v471
        %v1810 = vunpack.c.h.b16 %v471
        %v1811 = vunpack.c.l.b16 %v472
        %v1812 = vunpack.c.h.b16 %v472
        %v1813 = vunpack.c.l.b16 %v473
        %v1814 = vunpack.c.h.b16 %v473
        %v1815 = vunpack.c.l.b16 %v474
        %v1816 = vunpack.c.h.b16 %v474
        %v1817 = vunpack.c.l.b16 %v475
        %v1818 = vunpack.c.h.b16 %v475
        %v1819 = vunpack.c.l.b16 %v476
        %v1820 = vunpack.c.h.b16 %v476
        %v1821 = vunpack.c.l.b16 %v477
        %v1822 = vunpack.c.h.b16 %v477
        %v1823 = vunpack.c.l.b16 %v478
        %v1824 = vunpack.c.h.b16 %v478
        %v1825 = vunpack.c.l.b16 %v479
        %v1826 = vunpack.c.h.b16 %v479
        %v1827 = vunpack.c.l.b16 %v480
        %v1828 = vunpack.c.h.b16 %v480
        %v1829 = vunpack.c.l.b16 %v481
        %v1830 = vunpack.c.h.b16 %v481
        %v1831 = vunpack.c.l.b16 %v482
        %v1832 = vunpack.c.h.b16 %v482
        %v1833 = vunpack.c.l.b16 %v483
        %v1834 = vunpack.c.h.b16 %v483
        %v1835 = vunpack.c.l.b16 %v484
        %v1836 = vunpack.c.h.b16 %v484
        %v1837 = vunpack.c.l.b16 %v485
        %v1838 = vunpack.c.h.b16 %v485
        %v1839 = vunpack.c.l.b16 %v486
        %v1840 = vunpack.c.h.b16 %v486
        %v1841 = vunpack.c.l.b16 %v487
        %v1842 = vunpack.c.h.b16 %v487
        %v1843 = vunpack.c.l.b16 %v488
        %v1844 = vunpack.c.h.b16 %v488
        %v1845 = vunpack.c.l.b16 %v489
        %v1846 = vunpack.c.h.b16 %v489
        %v1847 = vunpack.c.l.b16 %v490
        %v1848 = vunpack.c.h.b16 %v490
        %v1849 = vunpack.c.l.b16 %v491
        %v1850 = vunpack.c.h.b16 %v491
        %v1851 = vunpack.c.l.b16 %v492
        %v1852 = vunpack.c.h.b16 %v492
        %v1853 = vunpack.c.l.b16 %v493
        %v1854 = vunpack.c.h.b16 %v493
        %v1855 = vunpack.c.l.b16 %v494
        %v1856 = vunpack.c.h.b16 %v494
        %v1857 = vunpack.c.l.b16 %v495
        %v1858 = vunpack.c.h.b16 %v495
        %v1859 = vunpack.c.l.b16 %v496
        %v1860 = vunpack.c.h.b16 %v496
        %v1861 = vunpack.c.l.b16 %v497
        %v1862 = vunpack.c.h.b16 %v497
        %v1863 = vunpack.c.l.b16 %v498
        %v1864 = vunpack.c.h.b16 %v498
        %v1865 = vunpack.c.l.b16 %v499
        %v1866 = vunpack.c.h.b16 %v499
        %v1867 = vunpack.c.l.b16 %v500
        %v1868 = vunpack.c.h.b16 %v500
        %v1869 = vunpack.c.l.b16 %v501
        %v1870 = vunpack.c.h.b16 %v501
        %v1871 = vunpack.c.l.b16 %v502
        %v1872 = vunpack.c.h.b16 %v502
        %v1873 = vunpack.c.l.b16 %v503
        %v1874 = vunpack.c.h.b16 %v503
        %v1875 = vunpack.c.l.b16 %v504
        %v1876 = vunpack.c.h.b16 %v504
        %v1877 = vunpack.c.l.b16 %v505
        %v1878 = vunpack.c.h.b16 %v505
        %v1879 = vunpack.c.l.b16 %v506
        %v1880 = vunpack.c.h.b16 %v506
        %v1881 = vunpack.c.l.b16 %v507
        %v1882 = vunpack.c.h.b16 %v507
        %v1883 = vunpack.c.l.b16 %v508
        %v1884 = vunpack.c.h.b16 %v508
        %v1885 = vunpack.c.l.b16 %v509
        %v1886 = vunpack.c.h.b16 %v509
        %v1887 = vunpack.c.l.b16 %v510
        %v1888 = vunpack.c.h.b16 %v510
        %v1889 = vunpack.c.l.b16 %v511
        %v1890 = vunpack.c.h.b16 %v511
        %v1891 = vunpack.c.l.b16 %v512
        %v1892 = vunpack.c.h.b16 %v512
        %v1893 = vunpack.c.l.b16 %v513
        %v1894 = vunpack.c.h.b16 %v513
        %v1895 = vunpack.c.l.b16 %v514
        %v1896 = vunpack.c.h.b16 %v514
        %v1897 = vunpack.c.l.b16 %v515
        %v1898 = vunpack.c.h.b16 %v515
        %v1899 = vunpack.c.l.b16 %v516
        %v1900 = vunpack.c.h.b16 %v516
        %v1901 = vunpack.c.l.b16 %v517
        %v1902 = vunpack.c.h.b16 %v517
        %v1903 = vunpack.c.l.b16 %v518
        %v1904 = vunpack.c.h.b16 %v518
        %v1905 = vunpack.c.l.b16 %v519
        %v1906 = vunpack.c.h.b16 %v519
        %v1907 = vunpack.c.l.b16 %v520
        %v1908 = vunpack.c.h.b16 %v520
        %v1909 = vunpack.c.l.b16 %v521
        %v1910 = vunpack.c.h.b16 %v521
        %v1911 = vunpack.c.l.b16 %v522
        %v1912 = vunpack.c.h.b16 %v522
        %v1913 = vunpack.c.l.b16 %v523
        %v1914 = vunpack.c.h.b16 %v523
        %v1915 = vunpack.c.l.b16 %v524
        %v1916 = vunpack.c.h.b16 %v524
        %v1917 = vunpack.c.l.b16 %v525
        %v1918 = vunpack.c.h.b16 %v525
        %v1919 = vunpack.c.l.b16 %v526
        %v1920 = vunpack.c.h.b16 %v526
        %v1921 = vunpack.c.l.b16 %v527
        %v1922 = vunpack.c.h.b16 %v527
        %v1923 = vunpack.c.l.b16 %v528
        %v1924 = vunpack.c.h.b16 %v528
        %v1925 = vunpack.c.l.b16 %v529
        %v1926 = vunpack.c.h.b16 %v529
        %v1927 = vunpack.c.l.b16 %v530
        %v1928 = vunpack.c.h.b16 %v530
        %v1929 = vunpack.c.l.b16 %v531
        %v1930 = vunpack.c.h.b16 %v531
        %v1931 = vunpack.c.l.b16 %v532
        %v1932 = vunpack.c.h.b16 %v532
        %v1933 = vunpack.c.l.b16 %v533
        %v1934 = vunpack.c.h.b16 %v533
        %v1935 = vunpack.c.l.b16 %v534
        %v1936 = vunpack.c.h.b16 %v534
        %v1937 = vunpack.c.l.b16 %v535
        %v1938 = vunpack.c.h.b16 %v535
        %v1939 = vunpack.c.l.b16 %v536
        %v1940 = vunpack.c.h.b16 %v536
        %v1941 = vunpack.c.l.b16 %v537
        %v1942 = vunpack.c.h.b16 %v537
        %v1943 = vunpack.c.l.b16 %v538
        %v1944 = vunpack.c.h.b16 %v538
        %v1945 = vunpack.c.l.b16 %v539
        %v1946 = vunpack.c.h.b16 %v539
        %v1947 = vunpack.c.l.b16 %v540
        %v1948 = vunpack.c.h.b16 %v540
        %v1949 = vunpack.c.l.b16 %v541
        %v1950 = vunpack.c.h.b16 %v541
        %v1951 = vunpack.c.l.b16 %v542
        %v1952 = vunpack.c.h.b16 %v542
        %v1953 = vunpack.c.l.b16 %v543
        %v1954 = vunpack.c.h.b16 %v543
        %v1955 = vunpack.c.l.b16 %v544
        %v1956 = vunpack.c.h.b16 %v544
        %v1957 = vunpack.c.l.b16 %v545
        %v1958 = vunpack.c.h.b16 %v545
        %v1959 = vunpack.c.l.b16 %v546
        %v1960 = vunpack.c.h.b16 %v546
        %v1961 = vunpack.c.l.b16 %v547
        %v1962 = vunpack.c.h.b16 %v547
        %v1963 = vunpack.c.l.b16 %v548
        %v1964 = vunpack.c.h.b16 %v548
        %v1965 = vunpack.c.l.b16 %v549
        %v1966 = vunpack.c.h.b16 %v549
        %v1967 = vunpack.c.l.b16 %v550
        %v1968 = vunpack.c.h.b16 %v550
        %v1969 = vunpack.c.l.b16 %v551
        %v1970 = vunpack.c.h.b16 %v551
        %v1971 = vunpack.c.l.b16 %v552
        %v1972 = vunpack.c.h.b16 %v552
        %v1973 = vunpack.c.l.b16 %v553
        %v1974 = vunpack.c.h.b16 %v553
        %v1975 = vunpack.c.l.b16 %v554
        %v1976 = vunpack.c.h.b16 %v554
        %v1977 = vunpack.c.l.b16 %v555
        %v1978 = vunpack.c.h.b16 %v555
        %v1979 = vunpack.c.l.b16 %v556
        %v1980 = vunpack.c.h.b16 %v556
        %v1981 = vunpack.c.l.b16 %v557
        %v1982 = vunpack.c.h.b16 %v557
        %v1983 = vunpack.c.l.b16 %v558
        %v1984 = vunpack.c.h.b16 %v558
        %v1985 = vunpack.c.l.b16 %v559
        %v1986 = vunpack.c.h.b16 %v559
        %v1987 = vunpack.c.l.b16 %v560
        %v1988 = vunpack.c.h.b16 %v560
        %v1989 = vunpack.c.l.b16 %v561
        %v1990 = vunpack.c.h.b16 %v561
        %v1991 = vunpack.c.l.b16 %v562
        %v1992 = vunpack.c.h.b16 %v562
        %v1993 = vunpack.c.l.b16 %v563
        %v1994 = vunpack.c.h.b16 %v563
        %v1995 = vunpack.c.l.b16 %v564
        %v1996 = vunpack.c.h.b16 %v564
        %v1997 = vunpack.c.l.b16 %v565
        %v1998 = vunpack.c.h.b16 %v565
        %v1999 = vunpack.c.l.b16 %v566
        %v2000 = vunpack.c.h.b16 %v566
        %v2001 = vpack.c.b16 %v1753, %v1745
        %v2002 = vpack.c.b16 %v1754, %v1746
        %v2003 = vpack.c.b16 %v1755, %v1747
        %v2004 = vpack.c.b16 %v1756, %v1748
        %v2005 = vpack.c.b16 %v1757, %v1749
        %v2006 = vpack.c.b16 %v1758, %v1750
        %v2007 = vpack.c.b16 %v1759, %v1751
        %v2008 = vpack.c.b16 %v1760, %v1752
        %v2009 = vpack.c.b16 %v1769, %v1761
        %v2010 = vpack.c.b16 %v1770, %v1762
        %v2011 = vpack.c.b16 %v1771, %v1763
        %v2012 = vpack.c.b16 %v1772, %v1764
        %v2013 = vpack.c.b16 %v1773, %v1765
        %v2014 = vpack.c.b16 %v1774, %v1766
        %v2015 = vpack.c.b16 %v1775, %v1767
        %v2016 = vpack.c.b16 %v1776, %v1768
        %v2017 = vpack.c.b16 %v1785, %v1777
        %v2018 = vpack.c.b16 %v1786, %v1778
        %v2019 = vpack.c.b16 %v1787, %v1779
        %v2020 = vpack.c.b16 %v1788, %v1780
        %v2021 = vpack.c.b16 %v1789, %v1781
        %v2022 = vpack.c.b16 %v1790, %v1782
        %v2023 = vpack.c.b16 %v1791, %v1783
        %v2024 = vpack.c.b16 %v1792, %v1784
        %v2025 = vpack.c.b16 %v1801, %v1793
        %v2026 = vpack.c.b16 %v1802, %v1794
        %v2027 = vpack.c.b16 %v1803, %v1795
        %v2028 = vpack.c.b16 %v1804, %v1796
        %v2029 = vpack.c.b16 %v1805, %v1797
        %v2030 = vpack.c.b16 %v1806, %v1798
        %v2031 = vpack.c.b16 %v1807, %v1799
        %v2032 = vpack.c.b16 %v1808, %v1800
        %v2033 = vpack.c.b16 %v1817, %v1809
        %v2034 = vpack.c.b16 %v1818, %v1810
        %v2035 = vpack.c.b16 %v1819, %v1811
        %v2036 = vpack.c.b16 %v1820, %v1812
        %v2037 = vpack.c.b16 %v1821, %v1813
        %v2038 = vpack.c.b16 %v1822, %v1814
        %v2039 = vpack.c.b16 %v1823, %v1815
        %v2040 = vpack.c.b16 %v1824, %v1816
        %v2041 = vpack.c.b16 %v1833, %v1825
        %v2042 = vpack.c.b16 %v1834, %v1826
        %v2043 = vpack.c.b16 %v1835, %v1827
        %v2044 = vpack.c.b16 %v1836, %v1828
        %v2045 = vpack.c.b16 %v1837, %v1829
        %v2046 = vpack.c.b16 %v1838, %v1830
        %v2047 = vpack.c.b16 %v1839, %v1831
        %v2048 = vpack.c.b16 %v1840, %v1832
        %v2049 = vpack.c.b16 %v1849, %v1841
        %v2050 = vpack.c.b16 %v1850, %v1842
        %v2051 = vpack.c.b16 %v1851, %v1843
        %v2052 = vpack.c.b16 %v1852, %v1844
        %v2053 = vpack.c.b16 %v1853, %v1845
        %v2054 = vpack.c.b16 %v1854, %v1846
        %v2055 = vpack.c.b16 %v1855, %v1847
        %v2056 = vpack.c.b16 %v1856, %v1848
        %v2057 = vpack.c.b16 %v1865, %v1857
        %v2058 = vpack.c.b16 %v1866, %v1858
        %v2059 = vpack.c.b16 %v1867, %v1859
        %v2060 = vpack.c.b16 %v1868, %v1860
        %v2061 = vpack.c.b16 %v1869, %v1861
        %v2062 = vpack.c.b16 %v1870, %v1862
        %v2063 = vpack.c.b16 %v1871, %v1863
        %v2064 = vpack.c.b16 %v1872, %v1864
        %v2065 = vpack.c.b16 %v1881, %v1873
        %v2066 = vpack.c.b16 %v1882, %v1874
        %v2067 = vpack.c.b16 %v1883, %v1875
        %v2068 = vpack.c.b16 %v1884, %v1876
        %v2069 = vpack.c.b16 %v1885, %v1877
        %v2070 = vpack.c.b16 %v1886, %v1878
        %v2071 = vpack.c.b16 %v1887, %v1879
        %v2072 = vpack.c.b16 %v1888, %v1880
        %v2073 = vpack.c.b16 %v1897, %v1889
        %v2074 = vpack.c.b16 %v1898, %v1890
        %v2075 = vpack.c.b16 %v1899, %v1891
        %v2076 = vpack.c.b16 %v1900, %v1892
        %v2077 = vpack.c.b16 %v1901, %v1893
        %v2078 = vpack.c.b16 %v1902, %v1894
        %v2079 = vpack.c.b16 %v1903, %v1895
        %v2080 = vpack.c.b16 %v1904, %v1896
        %v2081 = vpack.c.b16 %v1913, %v1905
        %v2082 = vpack.c.b16 %v1914, %v1906
        %v2083 = vpack.c.b16 %v1915, %v1907
        %v2084 = vpack.c.b16 %v1916, %v1908
        %v2085 = vpack.c.b16 %v1917, %v1909
        %v2086 = vpack.c.b16 %v1918, %v1910
        %v2087 = vpack.c.b16 %v1919, %v1911
        %v2088 = vpack.c.b16 %v1920, %v1912
        %v2089 = vpack.c.b16 %v1929, %v1921
        %v2090 = vpack.c.b16 %v1930, %v1922
        %v2091 = vpack.c.b16 %v1931, %v1923
        %v2092 = vpack.c.b16 %v1932, %v1924
        %v2093 = vpack.c.b16 %v1933, %v1925
        %v2094 = vpack.c.b16 %v1934, %v1926
        %v2095 = vpack.c.b16 %v1935, %v1927
        %v2096 = vpack.c.b16 %v1936, %v1928
        %v2097 = vpack.c.b16 %v1945, %v1937
        %v2098 = vpack.c.b16 %v1946, %v1938
        %v2099 = vpack.c.b16 %v1947, %v1939
        %v2100 = vpack.c.b16 %v1948, %v1940
        %v2101 = vpack.c.b16 %v1949, %v1941
        %v2102 = vpack.c.b16 %v1950, %v1942
        %v2103 = vpack.c.b16 %v1951, %v1943
        %v2104 = vpack.c.b16 %v1952, %v1944
        %v2105 = vpack.c.b16 %v1961, %v1953
        %v2106 = vpack.c.b16 %v1962, %v1954
        %v2107 = vpack.c.b16 %v1963, %v1955
        %v2108 = vpack.c.b16 %v1964, %v1956
        %v2109 = vpack.c.b16 %v1965, %v1957
        %v2110 = vpack.c.b16 %v1966, %v1958
        %v2111 = vpack.c.b16 %v1967, %v1959
        %v2112 = vpack.c.b16 %v1968, %v1960
        %v2113 = vpack.c.b16 %v1977, %v1969
        %v2114 = vpack.c.b16 %v1978, %v1970
        %v2115 = vpack.c.b16 %v1979, %v1971
        %v2116 = vpack.c.b16 %v1980, %v1972
        %v2117 = vpack.c.b16 %v1981, %v1973
        %v2118 = vpack.c.b16 %v1982, %v1974
        %v2119 = vpack.c.b16 %v1983, %v1975
        %v2120 = vpack.c.b16 %v1984, %v1976
        %v2121 = vpack.c.b16 %v1993, %v1985
        %v2122 = vpack.c.b16 %v1994, %v1986
        %v2123 = vpack.c.b16 %v1995, %v1987
        %v2124 = vpack.c.b16 %v1996, %v1988
        %v2125 = vpack.c.b16 %v1997, %v1989
        %v2126 = vpack.c.b16 %v1998, %v1990
        %v2127 = vpack.c.b16 %v1999, %v1991
        %v2128 = vpack.c.b16 %v2000, %v1992
        %2257 = vmatprep.subr.bf16.mxu0 %v2058
        %2258 = vmatpush1.bf16.msra.mxu0 %v2057
        %2259 = vmatprep.subr.bf16.mxu0 %v2050
        %2260 = vmatpush1.bf16.msra.mxu0 %v2049
        %2261 = vmatprep.subr.bf16.mxu0 %v2042
        %2262 = vmatpush1.bf16.msra.mxu0 %v2041
        %2263 = vmatprep.subr.bf16.mxu0 %v2034
        %2264 = vmatpush1.bf16.msra.mxu0 %v2033
        %2265 = vmatprep.subr.bf16.mxu0 %v2026
        %2266 = vmatpush1.bf16.msra.mxu0 %v2025
        %2267 = vmatprep.subr.bf16.mxu0 %v2018
        %2268 = vmatpush1.bf16.msra.mxu0 %v2017
        %2269 = vmatprep.subr.bf16.mxu0 %v2010
        %2270 = vmatpush1.bf16.msra.mxu0 %v2009
        %2271 = vmatprep.subr.bf16.mxu0 %v2002
        %2272 = vmatpush1.bf16.msra.mxu0 %v2001
        %2273 = vmatprep.subr.bf16.mxu0 %v2122
        %2274 = vmatpush2.bf16.msra.mxu0 %v2121
        %2275 = vmatprep.subr.bf16.mxu0 %v2114
        %2276 = vmatpush2.bf16.msra.mxu0 %v2113
        %2277 = vmatprep.subr.bf16.mxu0 %v2106
        %2278 = vmatpush2.bf16.msra.mxu0 %v2105
        %2279 = vmatprep.subr.bf16.mxu0 %v2098
        %2280 = vmatpush2.bf16.msra.mxu0 %v2097
        %2281 = vmatprep.subr.bf16.mxu0 %v2090
        %2282 = vmatpush2.bf16.msra.mxu0 %v2089
        %2283 = vmatprep.subr.bf16.mxu0 %v2082
        %2284 = vmatpush2.bf16.msra.mxu0 %v2081
        %2285 = vmatprep.subr.bf16.mxu0 %v2074
        %2286 = vmatpush2.bf16.msra.mxu0 %v2073
        %2287 = vmatprep.subr.bf16.mxu0 %v2066
        %2288 = vmatpush2.bf16.msra.mxu0 %v2065
        %2289 = vmatprep.mubr.bf16.mxu0 %v1616
        %2290 = vmatmul.mubr.bf16.gmra.mxu0 %v1615
        %v2291 = vpop.f32.mrf.mxu0
        %v2292 = vadd.f32 0.0, %v2291
        %v2293 = vpop.f32.mrf.mxu0
        %v2294 = vadd.f32 0.0, %v2293
        %v2295 = vpop.f32.mrf.mxu0
        %v2296 = vpop.f32.mrf.mxu0
        %2297 = vdwg.mxu0
        %2298 = vmatprep.subr.bf16.mxu0 %v2060
        %2299 = vmatpush1.bf16.msra.mxu0 %v2059
        %2300 = vmatprep.subr.bf16.mxu0 %v2052
        %2301 = vmatpush1.bf16.msra.mxu0 %v2051
        %2302 = vmatprep.subr.bf16.mxu0 %v2044
        %2303 = vmatpush1.bf16.msra.mxu0 %v2043
        %2304 = vmatprep.subr.bf16.mxu0 %v2036
        %2305 = vmatpush1.bf16.msra.mxu0 %v2035
        %2306 = vmatprep.subr.bf16.mxu0 %v2028
        %2307 = vmatpush1.bf16.msra.mxu0 %v2027
        %2308 = vmatprep.subr.bf16.mxu0 %v2020
        %2309 = vmatpush1.bf16.msra.mxu0 %v2019
        %2310 = vmatprep.subr.bf16.mxu0 %v2012
        %2311 = vmatpush1.bf16.msra.mxu0 %v2011
        %2312 = vmatprep.subr.bf16.mxu0 %v2004
        %2313 = vmatpush1.bf16.msra.mxu0 %v2003
        %2314 = vmatprep.subr.bf16.mxu0 %v2124
        %2315 = vmatpush2.bf16.msra.mxu0 %v2123
        %2316 = vmatprep.subr.bf16.mxu0 %v2116
        %2317 = vmatpush2.bf16.msra.mxu0 %v2115
        %2318 = vmatprep.subr.bf16.mxu0 %v2108
        %2319 = vmatpush2.bf16.msra.mxu0 %v2107
        %2320 = vmatprep.subr.bf16.mxu0 %v2100
        %2321 = vmatpush2.bf16.msra.mxu0 %v2099
        %2322 = vmatprep.subr.bf16.mxu0 %v2092
        %2323 = vmatpush2.bf16.msra.mxu0 %v2091
        %2324 = vmatprep.subr.bf16.mxu0 %v2084
        %2325 = vmatpush2.bf16.msra.mxu0 %v2083
        %2326 = vmatprep.subr.bf16.mxu0 %v2076
        %2327 = vmatpush2.bf16.msra.mxu0 %v2075
        %2328 = vmatprep.subr.bf16.mxu0 %v2068
        %2329 = vmatpush2.bf16.msra.mxu0 %v2067
        %2330 = vmatprep.mubr.bf16.mxu0 %v1616
        %2331 = vmatmul.mubr.bf16.gmra.mxu0 %v1615
        %v2332 = vpop.f32.mrf.mxu0
        %v2333 = vadd.f32 0.0, %v2332
        %v2334 = vpop.f32.mrf.mxu0
        %v2335 = vadd.f32 0.0, %v2334
        %v2336 = vpop.f32.mrf.mxu0
        %v2337 = vpop.f32.mrf.mxu0
        %2338 = vdwg.mxu0
        %2339 = vmatprep.subr.bf16.mxu0 %v2062
        %2340 = vmatpush1.bf16.msra.mxu0 %v2061
        %2341 = vmatprep.subr.bf16.mxu0 %v2054
        %2342 = vmatpush1.bf16.msra.mxu0 %v2053
        %2343 = vmatprep.subr.bf16.mxu0 %v2046
        %2344 = vmatpush1.bf16.msra.mxu0 %v2045
        %2345 = vmatprep.subr.bf16.mxu0 %v2038
        %2346 = vmatpush1.bf16.msra.mxu0 %v2037
        %2347 = vmatprep.subr.bf16.mxu0 %v2030
        %2348 = vmatpush1.bf16.msra.mxu0 %v2029
        %2349 = vmatprep.subr.bf16.mxu0 %v2022
        %2350 = vmatpush1.bf16.msra.mxu0 %v2021
        %2351 = vmatprep.subr.bf16.mxu0 %v2014
        %2352 = vmatpush1.bf16.msra.mxu0 %v2013
        %2353 = vmatprep.subr.bf16.mxu0 %v2006
        %2354 = vmatpush1.bf16.msra.mxu0 %v2005
        %2355 = vmatprep.subr.bf16.mxu0 %v2126
        %2356 = vmatpush2.bf16.msra.mxu0 %v2125
        %2357 = vmatprep.subr.bf16.mxu0 %v2118
        %2358 = vmatpush2.bf16.msra.mxu0 %v2117
        %2359 = vmatprep.subr.bf16.mxu0 %v2110
        %2360 = vmatpush2.bf16.msra.mxu0 %v2109
        %2361 = vmatprep.subr.bf16.mxu0 %v2102
        %2362 = vmatpush2.bf16.msra.mxu0 %v2101
        %2363 = vmatprep.subr.bf16.mxu0 %v2094
        %2364 = vmatpush2.bf16.msra.mxu0 %v2093
        %2365 = vmatprep.subr.bf16.mxu0 %v2086
        %2366 = vmatpush2.bf16.msra.mxu0 %v2085
        %2367 = vmatprep.subr.bf16.mxu0 %v2078
        %2368 = vmatpush2.bf16.msra.mxu0 %v2077
        %2369 = vmatprep.subr.bf16.mxu0 %v2070
        %2370 = vmatpush2.bf16.msra.mxu0 %v2069
        %2371 = vmatprep.mubr.bf16.mxu0 %v1616
        %2372 = vmatmul.mubr.bf16.gmra.mxu0 %v1615
        %v2373 = vpop.f32.mrf.mxu0
        %v2374 = vadd.f32 0.0, %v2373
        %v2375 = vpop.f32.mrf.mxu0
        %v2376 = vadd.f32 0.0, %v2375
        %v2377 = vpop.f32.mrf.mxu0
        %v2378 = vpop.f32.mrf.mxu0
        %2379 = vdwg.mxu0
        %2380 = vmatprep.subr.bf16.mxu0 %v2064
        %2381 = vmatpush1.bf16.msra.mxu0 %v2063
        %2382 = vmatprep.subr.bf16.mxu0 %v2056
        %2383 = vmatpush1.bf16.msra.mxu0 %v2055
        %2384 = vmatprep.subr.bf16.mxu0 %v2048
        %2385 = vmatpush1.bf16.msra.mxu0 %v2047
        %2386 = vmatprep.subr.bf16.mxu0 %v2040
        %2387 = vmatpush1.bf16.msra.mxu0 %v2039
        %2388 = vmatprep.subr.bf16.mxu0 %v2032
        %2389 = vmatpush1.bf16.msra.mxu0 %v2031
        %2390 = vmatprep.subr.bf16.mxu0 %v2024
        %2391 = vmatpush1.bf16.msra.mxu0 %v2023
        %2392 = vmatprep.subr.bf16.mxu0 %v2016
        %2393 = vmatpush1.bf16.msra.mxu0 %v2015
        %2394 = vmatprep.subr.bf16.mxu0 %v2008
        %2395 = vmatpush1.bf16.msra.mxu0 %v2007
        %2396 = vmatprep.subr.bf16.mxu0 %v2128
        %2397 = vmatpush2.bf16.msra.mxu0 %v2127
        %2398 = vmatprep.subr.bf16.mxu0 %v2120
        %2399 = vmatpush2.bf16.msra.mxu0 %v2119
        %2400 = vmatprep.subr.bf16.mxu0 %v2112
        %2401 = vmatpush2.bf16.msra.mxu0 %v2111
        %2402 = vmatprep.subr.bf16.mxu0 %v2104
        %2403 = vmatpush2.bf16.msra.mxu0 %v2103
        %2404 = vmatprep.subr.bf16.mxu0 %v2096
        %2405 = vmatpush2.bf16.msra.mxu0 %v2095
        %2406 = vmatprep.subr.bf16.mxu0 %v2088
        %2407 = vmatpush2.bf16.msra.mxu0 %v2087
        %2408 = vmatprep.subr.bf16.mxu0 %v2080
        %2409 = vmatpush2.bf16.msra.mxu0 %v2079
        %2410 = vmatprep.subr.bf16.mxu0 %v2072
        %2411 = vmatpush2.bf16.msra.mxu0 %v2071
        %2412 = vmatprep.mubr.bf16.mxu0 %v1616
        %2413 = vmatmul.mubr.bf16.gmra.mxu0 %v1615
        %v2414 = vpop.f32.mrf.mxu0
        %v2415 = vadd.f32 0.0, %v2414
        %v2416 = vpop.f32.mrf.mxu0
        %v2417 = vadd.f32 0.0, %v2416
        %v2418 = vpop.f32.mrf.mxu0
        %v2419 = vpop.f32.mrf.mxu0
        %2420 = vdwg.mxu0
        %v2421 = vadd.f32 %v1312, %v2292
        %v2422 = vadd.f32 %v1314, %v2294
        %v2423 = vadd.f32 %v1385, %v2333
        %v2424 = vadd.f32 %v1387, %v2335
        %v2425 = vadd.f32 %v1458, %v2374
        %v2426 = vadd.f32 %v1460, %v2376
        %v2427 = vadd.f32 %v1531, %v2415
        %v2428 = vadd.f32 %v1533, %v2417
        %v2429 = vxor.u32 %v2421, 2147483648
        %v2430 = vxor.u32 %v2422, 2147483648
        %v2431 = vmul.f32 %v2429, 1.442695
        %v2432 = vpow.pop %v2431
        %v2433 = vmul.f32 %v2430, 1.442695
        %v2434 = vpow.pop %v2433
        %v2435 = vadd.f32 %v2432, 1.0
        %v2436 = vadd.f32 %v2434, 1.0
        %v2437 = vrcp.pop %v2435
        %v2438 = vmul.f32 1.0, %v2437
        %v2439 = vrcp.pop %v2436
        %v2440 = vmul.f32 1.0, %v2439
        %v2441 = vxor.u32 %v2423, 2147483648
        %v2442 = vxor.u32 %v2424, 2147483648
        %v2443 = vmul.f32 %v2441, 1.442695
        %v2444 = vpow.pop %v2443
        %v2445 = vmul.f32 %v2442, 1.442695
        %v2446 = vpow.pop %v2445
        %v2447 = vadd.f32 %v2444, 1.0
        %v2448 = vadd.f32 %v2446, 1.0
        %v2449 = vrcp.pop %v2447
        %v2450 = vmul.f32 1.0, %v2449
        %v2451 = vrcp.pop %v2448
        %v2452 = vmul.f32 1.0, %v2451
        %v2453 = vtanh.pop %v2425
        %v2454 = vtanh.pop %v2426
        %v2455 = vxor.u32 %v2427, 2147483648
        %v2456 = vxor.u32 %v2428, 2147483648
        %v2457 = vmul.f32 %v2455, 1.442695
        %v2458 = vpow.pop %v2457
        %v2459 = vmul.f32 %v2456, 1.442695
        %v2460 = vpow.pop %v2459
        %v2461 = vadd.f32 %v2458, 1.0
        %v2462 = vadd.f32 %v2460, 1.0
        %v2463 = vrcp.pop %v2461
        %v2464 = vmul.f32 1.0, %v2463
        %v2465 = vrcp.pop %v2462
        %v2466 = vmul.f32 1.0, %v2465
        %v2467 = vmul.f32 %v2450, %v1607
        %v2468 = vmul.f32 %v2452, %v1608
        %v2469 = vmul.f32 %v2438, %v2453
        %v2470 = vmul.f32 %v2440, %v2454
        %v2471 = vadd.f32 %v2467, %v2469
        %v2472 = vadd.f32 %v2468, %v2470
        %v2473 = vtanh.pop %v2471
        %v2474 = vtanh.pop %v2472
        %v2475 = vmul.f32 %v2464, %v2473
        %v2476 = vmul.f32 %v2466, %v2474
        %2477 = vst [vmem:[#allocation2 + $0x10] sm:$0xff] %v2475
        %2478 = vst [vmem:[#allocation2 + $0x18] sm:$0xff] %v2476
        %v2479 = vpack.c.bf16 %v2475, %v2475
        %v2480 = vpack.c.bf16 %v2476, %v2476
        %2481 = vmatprep.subr.bf16.mxu0 %v2058
        %2482 = vmatpush1.bf16.msra.mxu0 %v2057
        %2483 = vmatprep.subr.bf16.mxu0 %v2050
        %2484 = vmatpush1.bf16.msra.mxu0 %v2049
        %2485 = vmatprep.subr.bf16.mxu0 %v2042
        %2486 = vmatpush1.bf16.msra.mxu0 %v2041
        %2487 = vmatprep.subr.bf16.mxu0 %v2034
        %2488 = vmatpush1.bf16.msra.mxu0 %v2033
        %2489 = vmatprep.subr.bf16.mxu0 %v2026
        %2490 = vmatpush1.bf16.msra.mxu0 %v2025
        %2491 = vmatprep.subr.bf16.mxu0 %v2018
        %2492 = vmatpush1.bf16.msra.mxu0 %v2017
        %2493 = vmatprep.subr.bf16.mxu0 %v2010
        %2494 = vmatpush1.bf16.msra.mxu0 %v2009
        %2495 = vmatprep.subr.bf16.mxu0 %v2002
        %2496 = vmatpush1.bf16.msra.mxu0 %v2001
        %2497 = vmatprep.subr.bf16.mxu0 %v2122
        %2498 = vmatpush2.bf16.msra.mxu0 %v2121
        %2499 = vmatprep.subr.bf16.mxu0 %v2114
        %2500 = vmatpush2.bf16.msra.mxu0 %v2113
        %2501 = vmatprep.subr.bf16.mxu0 %v2106
        %2502 = vmatpush2.bf16.msra.mxu0 %v2105
        %2503 = vmatprep.subr.bf16.mxu0 %v2098
        %2504 = vmatpush2.bf16.msra.mxu0 %v2097
        %2505 = vmatprep.subr.bf16.mxu0 %v2090
        %2506 = vmatpush2.bf16.msra.mxu0 %v2089
        %2507 = vmatprep.subr.bf16.mxu0 %v2082
        %2508 = vmatpush2.bf16.msra.mxu0 %v2081
        %2509 = vmatprep.subr.bf16.mxu0 %v2074
        %2510 = vmatpush2.bf16.msra.mxu0 %v2073
        %2511 = vmatprep.subr.bf16.mxu0 %v2066
        %2512 = vmatpush2.bf16.msra.mxu0 %v2065
        %2513 = vmatprep.mubr.bf16.mxu0 %v2480
        %2514 = vmatmul.mubr.bf16.gmra.mxu0 %v2479
        %v2515 = vpop.f32.mrf.mxu0
        %v2516 = vadd.f32 0.0, %v2515
        %v2517 = vpop.f32.mrf.mxu0
        %v2518 = vadd.f32 0.0, %v2517
        %v2519 = vpop.f32.mrf.mxu0
        %v2520 = vpop.f32.mrf.mxu0
        %2521 = vdwg.mxu0
        %2522 = vmatprep.subr.bf16.mxu0 %v2060
        %2523 = vmatpush1.bf16.msra.mxu0 %v2059
        %2524 = vmatprep.subr.bf16.mxu0 %v2052
        %2525 = vmatpush1.bf16.msra.mxu0 %v2051
        %2526 = vmatprep.subr.bf16.mxu0 %v2044
        %2527 = vmatpush1.bf16.msra.mxu0 %v2043
        %2528 = vmatprep.subr.bf16.mxu0 %v2036
        %2529 = vmatpush1.bf16.msra.mxu0 %v2035
        %2530 = vmatprep.subr.bf16.mxu0 %v2028
        %2531 = vmatpush1.bf16.msra.mxu0 %v2027
        %2532 = vmatprep.subr.bf16.mxu0 %v2020
        %2533 = vmatpush1.bf16.msra.mxu0 %v2019
        %2534 = vmatprep.subr.bf16.mxu0 %v2012
        %2535 = vmatpush1.bf16.msra.mxu0 %v2011
        %2536 = vmatprep.subr.bf16.mxu0 %v2004
        %2537 = vmatpush1.bf16.msra.mxu0 %v2003
        %2538 = vmatprep.subr.bf16.mxu0 %v2124
        %2539 = vmatpush2.bf16.msra.mxu0 %v2123
        %2540 = vmatprep.subr.bf16.mxu0 %v2116
        %2541 = vmatpush2.bf16.msra.mxu0 %v2115
        %2542 = vmatprep.subr.bf16.mxu0 %v2108
        %2543 = vmatpush2.bf16.msra.mxu0 %v2107
        %2544 = vmatprep.subr.bf16.mxu0 %v2100
        %2545 = vmatpush2.bf16.msra.mxu0 %v2099
        %2546 = vmatprep.subr.bf16.mxu0 %v2092
        %2547 = vmatpush2.bf16.msra.mxu0 %v2091
        %2548 = vmatprep.subr.bf16.mxu0 %v2084
        %2549 = vmatpush2.bf16.msra.mxu0 %v2083
        %2550 = vmatprep.subr.bf16.mxu0 %v2076
        %2551 = vmatpush2.bf16.msra.mxu0 %v2075
        %2552 = vmatprep.subr.bf16.mxu0 %v2068
        %2553 = vmatpush2.bf16.msra.mxu0 %v2067
        %2554 = vmatprep.mubr.bf16.mxu0 %v2480
        %2555 = vmatmul.mubr.bf16.gmra.mxu0 %v2479
        %v2556 = vpop.f32.mrf.mxu0
        %v2557 = vadd.f32 0.0, %v2556
        %v2558 = vpop.f32.mrf.mxu0
        %v2559 = vadd.f32 0.0, %v2558
        %v2560 = vpop.f32.mrf.mxu0
        %v2561 = vpop.f32.mrf.mxu0
        %2562 = vdwg.mxu0
        %2563 = vmatprep.subr.bf16.mxu0 %v2062
        %2564 = vmatpush1.bf16.msra.mxu0 %v2061
        %2565 = vmatprep.subr.bf16.mxu0 %v2054
        %2566 = vmatpush1.bf16.msra.mxu0 %v2053
        %2567 = vmatprep.subr.bf16.mxu0 %v2046
        %2568 = vmatpush1.bf16.msra.mxu0 %v2045
        %2569 = vmatprep.subr.bf16.mxu0 %v2038
        %2570 = vmatpush1.bf16.msra.mxu0 %v2037
        %2571 = vmatprep.subr.bf16.mxu0 %v2030
        %2572 = vmatpush1.bf16.msra.mxu0 %v2029
        %2573 = vmatprep.subr.bf16.mxu0 %v2022
        %2574 = vmatpush1.bf16.msra.mxu0 %v2021
        %2575 = vmatprep.subr.bf16.mxu0 %v2014
        %2576 = vmatpush1.bf16.msra.mxu0 %v2013
        %2577 = vmatprep.subr.bf16.mxu0 %v2006
        %2578 = vmatpush1.bf16.msra.mxu0 %v2005
        %2579 = vmatprep.subr.bf16.mxu0 %v2126
        %2580 = vmatpush2.bf16.msra.mxu0 %v2125
        %2581 = vmatprep.subr.bf16.mxu0 %v2118
        %2582 = vmatpush2.bf16.msra.mxu0 %v2117
        %2583 = vmatprep.subr.bf16.mxu0 %v2110
        %2584 = vmatpush2.bf16.msra.mxu0 %v2109
        %2585 = vmatprep.subr.bf16.mxu0 %v2102
        %2586 = vmatpush2.bf16.msra.mxu0 %v2101
        %2587 = vmatprep.subr.bf16.mxu0 %v2094
        %2588 = vmatpush2.bf16.msra.mxu0 %v2093
        %2589 = vmatprep.subr.bf16.mxu0 %v2086
        %2590 = vmatpush2.bf16.msra.mxu0 %v2085
        %2591 = vmatprep.subr.bf16.mxu0 %v2078
        %2592 = vmatpush2.bf16.msra.mxu0 %v2077
        %2593 = vmatprep.subr.bf16.mxu0 %v2070
        %2594 = vmatpush2.bf16.msra.mxu0 %v2069
        %2595 = vmatprep.mubr.bf16.mxu0 %v2480
        %2596 = vmatmul.mubr.bf16.gmra.mxu0 %v2479
        %v2597 = vpop.f32.mrf.mxu0
        %v2598 = vadd.f32 0.0, %v2597
        %v2599 = vpop.f32.mrf.mxu0
        %v2600 = vadd.f32 0.0, %v2599
        %v2601 = vpop.f32.mrf.mxu0
        %v2602 = vpop.f32.mrf.mxu0
        %2603 = vdwg.mxu0
        %2604 = vmatprep.subr.bf16.mxu0 %v2064
        %2605 = vmatpush1.bf16.msra.mxu0 %v2063
        %2606 = vmatprep.subr.bf16.mxu0 %v2056
        %2607 = vmatpush1.bf16.msra.mxu0 %v2055
        %2608 = vmatprep.subr.bf16.mxu0 %v2048
        %2609 = vmatpush1.bf16.msra.mxu0 %v2047
        %2610 = vmatprep.subr.bf16.mxu0 %v2040
        %2611 = vmatpush1.bf16.msra.mxu0 %v2039
        %2612 = vmatprep.subr.bf16.mxu0 %v2032
        %2613 = vmatpush1.bf16.msra.mxu0 %v2031
        %2614 = vmatprep.subr.bf16.mxu0 %v2024
        %2615 = vmatpush1.bf16.msra.mxu0 %v2023
        %2616 = vmatprep.subr.bf16.mxu0 %v2016
        %2617 = vmatpush1.bf16.msra.mxu0 %v2015
        %2618 = vmatprep.subr.bf16.mxu0 %v2008
        %2619 = vmatpush1.bf16.msra.mxu0 %v2007
        %2620 = vmatprep.subr.bf16.mxu0 %v2128
        %2621 = vmatpush2.bf16.msra.mxu0 %v2127
        %2622 = vmatprep.subr.bf16.mxu0 %v2120
        %2623 = vmatpush2.bf16.msra.mxu0 %v2119
        %2624 = vmatprep.subr.bf16.mxu0 %v2112
        %2625 = vmatpush2.bf16.msra.mxu0 %v2111
        %2626 = vmatprep.subr.bf16.mxu0 %v2104
        %2627 = vmatpush2.bf16.msra.mxu0 %v2103
        %2628 = vmatprep.subr.bf16.mxu0 %v2096
        %2629 = vmatpush2.bf16.msra.mxu0 %v2095
        %2630 = vmatprep.subr.bf16.mxu0 %v2088
        %2631 = vmatpush2.bf16.msra.mxu0 %v2087
        %2632 = vmatprep.subr.bf16.mxu0 %v2080
        %2633 = vmatpush2.bf16.msra.mxu0 %v2079
        %2634 = vmatprep.subr.bf16.mxu0 %v2072
        %2635 = vmatpush2.bf16.msra.mxu0 %v2071
        %2636 = vmatprep.mubr.bf16.mxu0 %v2480
        %2637 = vmatmul.mubr.bf16.gmra.mxu0 %v2479
        %v2638 = vpop.f32.mrf.mxu0
        %v2639 = vadd.f32 0.0, %v2638
        %v2640 = vpop.f32.mrf.mxu0
        %v2641 = vadd.f32 0.0, %v2640
        %v2642 = vpop.f32.mrf.mxu0
        %v2643 = vpop.f32.mrf.mxu0
        %2644 = vdwg.mxu0
        %v2645 = vadd.f32 %v1318, %v2516
        %v2646 = vadd.f32 %v1320, %v2518
        %v2647 = vadd.f32 %v1391, %v2557
        %v2648 = vadd.f32 %v1393, %v2559
        %v2649 = vadd.f32 %v1464, %v2598
        %v2650 = vadd.f32 %v1466, %v2600
        %v2651 = vadd.f32 %v1537, %v2639
        %v2652 = vadd.f32 %v1539, %v2641
        %v2653 = vxor.u32 %v2645, 2147483648
        %v2654 = vxor.u32 %v2646, 2147483648
        %v2655 = vmul.f32 %v2653, 1.442695
        %v2656 = vpow.pop %v2655
        %v2657 = vmul.f32 %v2654, 1.442695
        %v2658 = vpow.pop %v2657
        %v2659 = vadd.f32 %v2656, 1.0
        %v2660 = vadd.f32 %v2658, 1.0
        %v2661 = vrcp.pop %v2659
        %v2662 = vmul.f32 1.0, %v2661
        %v2663 = vrcp.pop %v2660
        %v2664 = vmul.f32 1.0, %v2663
        %v2665 = vxor.u32 %v2647, 2147483648
        %v2666 = vxor.u32 %v2648, 2147483648
        %v2667 = vmul.f32 %v2665, 1.442695
        %v2668 = vpow.pop %v2667
        %v2669 = vmul.f32 %v2666, 1.442695
        %v2670 = vpow.pop %v2669
        %v2671 = vadd.f32 %v2668, 1.0
        %v2672 = vadd.f32 %v2670, 1.0
        %v2673 = vrcp.pop %v2671
        %v2674 = vmul.f32 1.0, %v2673
        %v2675 = vrcp.pop %v2672
        %v2676 = vmul.f32 1.0, %v2675
        %v2677 = vtanh.pop %v2649
        %v2678 = vtanh.pop %v2650
        %v2679 = vxor.u32 %v2651, 2147483648
        %v2680 = vxor.u32 %v2652, 2147483648
        %v2681 = vmul.f32 %v2679, 1.442695
        %v2682 = vpow.pop %v2681
        %v2683 = vmul.f32 %v2680, 1.442695
        %v2684 = vpow.pop %v2683
        %v2685 = vadd.f32 %v2682, 1.0
        %v2686 = vadd.f32 %v2684, 1.0
        %v2687 = vrcp.pop %v2685
        %v2688 = vmul.f32 1.0, %v2687
        %v2689 = vrcp.pop %v2686
        %v2690 = vmul.f32 1.0, %v2689
        %v2691 = vmul.f32 %v2674, %v2471
        %v2692 = vmul.f32 %v2676, %v2472
        %v2693 = vmul.f32 %v2662, %v2677
        %v2694 = vmul.f32 %v2664, %v2678
        %v2695 = vadd.f32 %v2691, %v2693
        %v2696 = vadd.f32 %v2692, %v2694
        %v2697 = vtanh.pop %v2695
        %v2698 = vtanh.pop %v2696
        %v2699 = vmul.f32 %v2688, %v2697
        %v2700 = vmul.f32 %v2690, %v2698
        %2701 = vst [vmem:[#allocation2 + $0x20] sm:$0xff] %v2699
        %2702 = vst [vmem:[#allocation2 + $0x28] sm:$0xff] %v2700
        %v2703 = vpack.c.bf16 %v2699, %v2699
        %v2704 = vpack.c.bf16 %v2700, %v2700
        %2705 = vmatprep.subr.bf16.mxu0 %v2058
        %2706 = vmatpush1.bf16.msra.mxu0 %v2057
        %2707 = vmatprep.subr.bf16.mxu0 %v2050
        %2708 = vmatpush1.bf16.msra.mxu0 %v2049
        %2709 = vmatprep.subr.bf16.mxu0 %v2042
        %2710 = vmatpush1.bf16.msra.mxu0 %v2041
        %2711 = vmatprep.subr.bf16.mxu0 %v2034
        %2712 = vmatpush1.bf16.msra.mxu0 %v2033
        %2713 = vmatprep.subr.bf16.mxu0 %v2026
        %2714 = vmatpush1.bf16.msra.mxu0 %v2025
        %2715 = vmatprep.subr.bf16.mxu0 %v2018
        %2716 = vmatpush1.bf16.msra.mxu0 %v2017
        %2717 = vmatprep.subr.bf16.mxu0 %v2010
        %2718 = vmatpush1.bf16.msra.mxu0 %v2009
        %2719 = vmatprep.subr.bf16.mxu0 %v2002
        %2720 = vmatpush1.bf16.msra.mxu0 %v2001
        %2721 = vmatprep.subr.bf16.mxu0 %v2122
        %2722 = vmatpush2.bf16.msra.mxu0 %v2121
        %2723 = vmatprep.subr.bf16.mxu0 %v2114
        %2724 = vmatpush2.bf16.msra.mxu0 %v2113
        %2725 = vmatprep.subr.bf16.mxu0 %v2106
        %2726 = vmatpush2.bf16.msra.mxu0 %v2105
        %2727 = vmatprep.subr.bf16.mxu0 %v2098
        %2728 = vmatpush2.bf16.msra.mxu0 %v2097
        %2729 = vmatprep.subr.bf16.mxu0 %v2090
        %2730 = vmatpush2.bf16.msra.mxu0 %v2089
        %2731 = vmatprep.subr.bf16.mxu0 %v2082
        %2732 = vmatpush2.bf16.msra.mxu0 %v2081
        %2733 = vmatprep.subr.bf16.mxu0 %v2074
        %2734 = vmatpush2.bf16.msra.mxu0 %v2073
        %2735 = vmatprep.subr.bf16.mxu0 %v2066
        %2736 = vmatpush2.bf16.msra.mxu0 %v2065
        %2737 = vmatprep.mubr.bf16.mxu0 %v2704
        %2738 = vmatmul.mubr.bf16.gmra.mxu0 %v2703
        %v2739 = vpop.f32.mrf.mxu0
        %v2740 = vadd.f32 0.0, %v2739
        %v2741 = vpop.f32.mrf.mxu0
        %v2742 = vadd.f32 0.0, %v2741
        %v2743 = vpop.f32.mrf.mxu0
        %v2744 = vpop.f32.mrf.mxu0
        %2745 = vdwg.mxu0
        %2746 = vmatprep.subr.bf16.mxu0 %v2060
        %2747 = vmatpush1.bf16.msra.mxu0 %v2059
        %2748 = vmatprep.subr.bf16.mxu0 %v2052
        %2749 = vmatpush1.bf16.msra.mxu0 %v2051
        %2750 = vmatprep.subr.bf16.mxu0 %v2044
        %2751 = vmatpush1.bf16.msra.mxu0 %v2043
        %2752 = vmatprep.subr.bf16.mxu0 %v2036
        %2753 = vmatpush1.bf16.msra.mxu0 %v2035
        %2754 = vmatprep.subr.bf16.mxu0 %v2028
        %2755 = vmatpush1.bf16.msra.mxu0 %v2027
        %2756 = vmatprep.subr.bf16.mxu0 %v2020
        %2757 = vmatpush1.bf16.msra.mxu0 %v2019
        %2758 = vmatprep.subr.bf16.mxu0 %v2012
        %2759 = vmatpush1.bf16.msra.mxu0 %v2011
        %2760 = vmatprep.subr.bf16.mxu0 %v2004
        %2761 = vmatpush1.bf16.msra.mxu0 %v2003
        %2762 = vmatprep.subr.bf16.mxu0 %v2124
        %2763 = vmatpush2.bf16.msra.mxu0 %v2123
        %2764 = vmatprep.subr.bf16.mxu0 %v2116
        %2765 = vmatpush2.bf16.msra.mxu0 %v2115
        %2766 = vmatprep.subr.bf16.mxu0 %v2108
        %2767 = vmatpush2.bf16.msra.mxu0 %v2107
        %2768 = vmatprep.subr.bf16.mxu0 %v2100
        %2769 = vmatpush2.bf16.msra.mxu0 %v2099
        %2770 = vmatprep.subr.bf16.mxu0 %v2092
        %2771 = vmatpush2.bf16.msra.mxu0 %v2091
        %2772 = vmatprep.subr.bf16.mxu0 %v2084
        %2773 = vmatpush2.bf16.msra.mxu0 %v2083
        %2774 = vmatprep.subr.bf16.mxu0 %v2076
        %2775 = vmatpush2.bf16.msra.mxu0 %v2075
        %2776 = vmatprep.subr.bf16.mxu0 %v2068
        %2777 = vmatpush2.bf16.msra.mxu0 %v2067
        %2778 = vmatprep.mubr.bf16.mxu0 %v2704
        %2779 = vmatmul.mubr.bf16.gmra.mxu0 %v2703
        %v2780 = vpop.f32.mrf.mxu0
        %v2781 = vadd.f32 0.0, %v2780
        %v2782 = vpop.f32.mrf.mxu0
        %v2783 = vadd.f32 0.0, %v2782
        %v2784 = vpop.f32.mrf.mxu0
        %v2785 = vpop.f32.mrf.mxu0
        %2786 = vdwg.mxu0
        %2787 = vmatprep.subr.bf16.mxu0 %v2062
        %2788 = vmatpush1.bf16.msra.mxu0 %v2061
        %2789 = vmatprep.subr.bf16.mxu0 %v2054
        %2790 = vmatpush1.bf16.msra.mxu0 %v2053
        %2791 = vmatprep.subr.bf16.mxu0 %v2046
        %2792 = vmatpush1.bf16.msra.mxu0 %v2045
        %2793 = vmatprep.subr.bf16.mxu0 %v2038
        %2794 = vmatpush1.bf16.msra.mxu0 %v2037
        %2795 = vmatprep.subr.bf16.mxu0 %v2030
        %2796 = vmatpush1.bf16.msra.mxu0 %v2029
        %2797 = vmatprep.subr.bf16.mxu0 %v2022
        %2798 = vmatpush1.bf16.msra.mxu0 %v2021
        %2799 = vmatprep.subr.bf16.mxu0 %v2014
        %2800 = vmatpush1.bf16.msra.mxu0 %v2013
        %2801 = vmatprep.subr.bf16.mxu0 %v2006
        %2802 = vmatpush1.bf16.msra.mxu0 %v2005
        %2803 = vmatprep.subr.bf16.mxu0 %v2126
        %2804 = vmatpush2.bf16.msra.mxu0 %v2125
        %2805 = vmatprep.subr.bf16.mxu0 %v2118
        %2806 = vmatpush2.bf16.msra.mxu0 %v2117
        %2807 = vmatprep.subr.bf16.mxu0 %v2110
        %2808 = vmatpush2.bf16.msra.mxu0 %v2109
        %2809 = vmatprep.subr.bf16.mxu0 %v2102
        %2810 = vmatpush2.bf16.msra.mxu0 %v2101
        %2811 = vmatprep.subr.bf16.mxu0 %v2094
        %2812 = vmatpush2.bf16.msra.mxu0 %v2093
        %2813 = vmatprep.subr.bf16.mxu0 %v2086
        %2814 = vmatpush2.bf16.msra.mxu0 %v2085
        %2815 = vmatprep.subr.bf16.mxu0 %v2078
        %2816 = vmatpush2.bf16.msra.mxu0 %v2077
        %2817 = vmatprep.subr.bf16.mxu0 %v2070
        %2818 = vmatpush2.bf16.msra.mxu0 %v2069
        %2819 = vmatprep.mubr.bf16.mxu0 %v2704
        %2820 = vmatmul.mubr.bf16.gmra.mxu0 %v2703
        %v2821 = vpop.f32.mrf.mxu0
        %v2822 = vadd.f32 0.0, %v2821
        %v2823 = vpop.f32.mrf.mxu0
        %v2824 = vadd.f32 0.0, %v2823
        %v2825 = vpop.f32.mrf.mxu0
        %v2826 = vpop.f32.mrf.mxu0
        %2827 = vdwg.mxu0
        %2828 = vmatprep.subr.bf16.mxu0 %v2064
        %2829 = vmatpush1.bf16.msra.mxu0 %v2063
        %2830 = vmatprep.subr.bf16.mxu0 %v2056
        %2831 = vmatpush1.bf16.msra.mxu0 %v2055
        %2832 = vmatprep.subr.bf16.mxu0 %v2048
        %2833 = vmatpush1.bf16.msra.mxu0 %v2047
        %2834 = vmatprep.subr.bf16.mxu0 %v2040
        %2835 = vmatpush1.bf16.msra.mxu0 %v2039
        %2836 = vmatprep.subr.bf16.mxu0 %v2032
        %2837 = vmatpush1.bf16.msra.mxu0 %v2031
        %2838 = vmatprep.subr.bf16.mxu0 %v2024
        %2839 = vmatpush1.bf16.msra.mxu0 %v2023
        %2840 = vmatprep.subr.bf16.mxu0 %v2016
        %2841 = vmatpush1.bf16.msra.mxu0 %v2015
        %2842 = vmatprep.subr.bf16.mxu0 %v2008
        %2843 = vmatpush1.bf16.msra.mxu0 %v2007
        %2844 = vmatprep.subr.bf16.mxu0 %v2128
        %2845 = vmatpush2.bf16.msra.mxu0 %v2127
        %2846 = vmatprep.subr.bf16.mxu0 %v2120
        %2847 = vmatpush2.bf16.msra.mxu0 %v2119
        %2848 = vmatprep.subr.bf16.mxu0 %v2112
        %2849 = vmatpush2.bf16.msra.mxu0 %v2111
        %2850 = vmatprep.subr.bf16.mxu0 %v2104
        %2851 = vmatpush2.bf16.msra.mxu0 %v2103
        %2852 = vmatprep.subr.bf16.mxu0 %v2096
        %2853 = vmatpush2.bf16.msra.mxu0 %v2095
        %2854 = vmatprep.subr.bf16.mxu0 %v2088
        %2855 = vmatpush2.bf16.msra.mxu0 %v2087
        %2856 = vmatprep.subr.bf16.mxu0 %v2080
        %2857 = vmatpush2.bf16.msra.mxu0 %v2079
        %2858 = vmatprep.subr.bf16.mxu0 %v2072
        %2859 = vmatpush2.bf16.msra.mxu0 %v2071
        %2860 = vmatprep.mubr.bf16.mxu0 %v2704
        %2861 = vmatmul.mubr.bf16.gmra.mxu0 %v2703
        %v2862 = vpop.f32.mrf.mxu0
        %v2863 = vadd.f32 0.0, %v2862
        %v2864 = vpop.f32.mrf.mxu0
        %v2865 = vadd.f32 0.0, %v2864
        %v2866 = vpop.f32.mrf.mxu0
        %v2867 = vpop.f32.mrf.mxu0
        %2868 = vdwg.mxu0
        %v2869 = vadd.f32 %v1322, %v2740
        %v2870 = vadd.f32 %v1324, %v2742
        %v2871 = vadd.f32 %v1395, %v2781
        %v2872 = vadd.f32 %v1397, %v2783
        %v2873 = vadd.f32 %v1468, %v2822
        %v2874 = vadd.f32 %v1470, %v2824
        %v2875 = vadd.f32 %v1541, %v2863
        %v2876 = vadd.f32 %v1543, %v2865
        %v2877 = vxor.u32 %v2869, 2147483648
        %v2878 = vxor.u32 %v2870, 2147483648
        %v2879 = vmul.f32 %v2877, 1.442695
        %v2880 = vpow.pop %v2879
        %v2881 = vmul.f32 %v2878, 1.442695
        %v2882 = vpow.pop %v2881
        %v2883 = vadd.f32 %v2880, 1.0
        %v2884 = vadd.f32 %v2882, 1.0
        %v2885 = vrcp.pop %v2883
        %v2886 = vmul.f32 1.0, %v2885
        %v2887 = vrcp.pop %v2884
        %v2888 = vmul.f32 1.0, %v2887
        %v2889 = vxor.u32 %v2871, 2147483648
        %v2890 = vxor.u32 %v2872, 2147483648
        %v2891 = vmul.f32 %v2889, 1.442695
        %v2892 = vpow.pop %v2891
        %v2893 = vmul.f32 %v2890, 1.442695
        %v2894 = vpow.pop %v2893
        %v2895 = vadd.f32 %v2892, 1.0
        %v2896 = vadd.f32 %v2894, 1.0
        %v2897 = vrcp.pop %v2895
        %v2898 = vmul.f32 1.0, %v2897
        %v2899 = vrcp.pop %v2896
        %v2900 = vmul.f32 1.0, %v2899
        %v2901 = vtanh.pop %v2873
        %v2902 = vtanh.pop %v2874
        %v2903 = vxor.u32 %v2875, 2147483648
        %v2904 = vxor.u32 %v2876, 2147483648
        %v2905 = vmul.f32 %v2903, 1.442695
        %v2906 = vpow.pop %v2905
        %v2907 = vmul.f32 %v2904, 1.442695
        %v2908 = vpow.pop %v2907
        %v2909 = vadd.f32 %v2906, 1.0
        %v2910 = vadd.f32 %v2908, 1.0
        %v2911 = vrcp.pop %v2909
        %v2912 = vmul.f32 1.0, %v2911
        %v2913 = vrcp.pop %v2910
        %v2914 = vmul.f32 1.0, %v2913
        %v2915 = vmul.f32 %v2898, %v2695
        %v2916 = vmul.f32 %v2900, %v2696
        %v2917 = vmul.f32 %v2886, %v2901
        %v2918 = vmul.f32 %v2888, %v2902
        %v2919 = vadd.f32 %v2915, %v2917
        %v2920 = vadd.f32 %v2916, %v2918
        %v2921 = vtanh.pop %v2919
        %v2922 = vtanh.pop %v2920
        %v2923 = vmul.f32 %v2912, %v2921
        %v2924 = vmul.f32 %v2914, %v2922
        %2925 = vst [vmem:[#allocation2 + $0x30] sm:$0xff] %v2923
        %2926 = vst [vmem:[#allocation2 + $0x38] sm:$0xff] %v2924
        %v2927 = vpack.c.bf16 %v2923, %v2923
        %v2928 = vpack.c.bf16 %v2924, %v2924
        %2929 = vmatprep.subr.bf16.mxu0 %v2058
        %2930 = vmatpush1.bf16.msra.mxu0 %v2057
        %2931 = vmatprep.subr.bf16.mxu0 %v2050
        %2932 = vmatpush1.bf16.msra.mxu0 %v2049
        %2933 = vmatprep.subr.bf16.mxu0 %v2042
        %2934 = vmatpush1.bf16.msra.mxu0 %v2041
        %2935 = vmatprep.subr.bf16.mxu0 %v2034
        %2936 = vmatpush1.bf16.msra.mxu0 %v2033
        %2937 = vmatprep.subr.bf16.mxu0 %v2026
        %2938 = vmatpush1.bf16.msra.mxu0 %v2025
        %2939 = vmatprep.subr.bf16.mxu0 %v2018
        %2940 = vmatpush1.bf16.msra.mxu0 %v2017
        %2941 = vmatprep.subr.bf16.mxu0 %v2010
        %2942 = vmatpush1.bf16.msra.mxu0 %v2009
        %2943 = vmatprep.subr.bf16.mxu0 %v2002
        %2944 = vmatpush1.bf16.msra.mxu0 %v2001
        %2945 = vmatprep.subr.bf16.mxu0 %v2122
        %2946 = vmatpush2.bf16.msra.mxu0 %v2121
        %2947 = vmatprep.subr.bf16.mxu0 %v2114
        %2948 = vmatpush2.bf16.msra.mxu0 %v2113
        %2949 = vmatprep.subr.bf16.mxu0 %v2106
        %2950 = vmatpush2.bf16.msra.mxu0 %v2105
        %2951 = vmatprep.subr.bf16.mxu0 %v2098
        %2952 = vmatpush2.bf16.msra.mxu0 %v2097
        %2953 = vmatprep.subr.bf16.mxu0 %v2090
        %2954 = vmatpush2.bf16.msra.mxu0 %v2089
        %2955 = vmatprep.subr.bf16.mxu0 %v2082
        %2956 = vmatpush2.bf16.msra.mxu0 %v2081
        %2957 = vmatprep.subr.bf16.mxu0 %v2074
        %2958 = vmatpush2.bf16.msra.mxu0 %v2073
        %2959 = vmatprep.subr.bf16.mxu0 %v2066
        %2960 = vmatpush2.bf16.msra.mxu0 %v2065
        %2961 = vmatprep.mubr.bf16.mxu0 %v2928
        %2962 = vmatmul.mubr.bf16.gmra.mxu0 %v2927
        %v2963 = vpop.f32.mrf.mxu0
        %v2964 = vadd.f32 0.0, %v2963
        %v2965 = vpop.f32.mrf.mxu0
        %v2966 = vadd.f32 0.0, %v2965
        %v2967 = vpop.f32.mrf.mxu0
        %v2968 = vpop.f32.mrf.mxu0
        %2969 = vdwg.mxu0
        %2970 = vmatprep.subr.bf16.mxu0 %v2060
        %2971 = vmatpush1.bf16.msra.mxu0 %v2059
        %2972 = vmatprep.subr.bf16.mxu0 %v2052
        %2973 = vmatpush1.bf16.msra.mxu0 %v2051
        %2974 = vmatprep.subr.bf16.mxu0 %v2044
        %2975 = vmatpush1.bf16.msra.mxu0 %v2043
        %2976 = vmatprep.subr.bf16.mxu0 %v2036
        %2977 = vmatpush1.bf16.msra.mxu0 %v2035
        %2978 = vmatprep.subr.bf16.mxu0 %v2028
        %2979 = vmatpush1.bf16.msra.mxu0 %v2027
        %2980 = vmatprep.subr.bf16.mxu0 %v2020
        %2981 = vmatpush1.bf16.msra.mxu0 %v2019
        %2982 = vmatprep.subr.bf16.mxu0 %v2012
        %2983 = vmatpush1.bf16.msra.mxu0 %v2011
        %2984 = vmatprep.subr.bf16.mxu0 %v2004
        %2985 = vmatpush1.bf16.msra.mxu0 %v2003
        %2986 = vmatprep.subr.bf16.mxu0 %v2124
        %2987 = vmatpush2.bf16.msra.mxu0 %v2123
        %2988 = vmatprep.subr.bf16.mxu0 %v2116
        %2989 = vmatpush2.bf16.msra.mxu0 %v2115
        %2990 = vmatprep.subr.bf16.mxu0 %v2108
        %2991 = vmatpush2.bf16.msra.mxu0 %v2107
        %2992 = vmatprep.subr.bf16.mxu0 %v2100
        %2993 = vmatpush2.bf16.msra.mxu0 %v2099
        %2994 = vmatprep.subr.bf16.mxu0 %v2092
        %2995 = vmatpush2.bf16.msra.mxu0 %v2091
        %2996 = vmatprep.subr.bf16.mxu0 %v2084
        %2997 = vmatpush2.bf16.msra.mxu0 %v2083
        %2998 = vmatprep.subr.bf16.mxu0 %v2076
        %2999 = vmatpush2.bf16.msra.mxu0 %v2075
        %3000 = vmatprep.subr.bf16.mxu0 %v2068
        %3001 = vmatpush2.bf16.msra.mxu0 %v2067
        %3002 = vmatprep.mubr.bf16.mxu0 %v2928
        %3003 = vmatmul.mubr.bf16.gmra.mxu0 %v2927
        %v3004 = vpop.f32.mrf.mxu0
        %v3005 = vadd.f32 0.0, %v3004
        %v3006 = vpop.f32.mrf.mxu0
        %v3007 = vadd.f32 0.0, %v3006
        %v3008 = vpop.f32.mrf.mxu0
        %v3009 = vpop.f32.mrf.mxu0
        %3010 = vdwg.mxu0
        %3011 = vmatprep.subr.bf16.mxu0 %v2062
        %3012 = vmatpush1.bf16.msra.mxu0 %v2061
        %3013 = vmatprep.subr.bf16.mxu0 %v2054
        %3014 = vmatpush1.bf16.msra.mxu0 %v2053
        %3015 = vmatprep.subr.bf16.mxu0 %v2046
        %3016 = vmatpush1.bf16.msra.mxu0 %v2045
        %3017 = vmatprep.subr.bf16.mxu0 %v2038
        %3018 = vmatpush1.bf16.msra.mxu0 %v2037
        %3019 = vmatprep.subr.bf16.mxu0 %v2030
        %3020 = vmatpush1.bf16.msra.mxu0 %v2029
        %3021 = vmatprep.subr.bf16.mxu0 %v2022
        %3022 = vmatpush1.bf16.msra.mxu0 %v2021
        %3023 = vmatprep.subr.bf16.mxu0 %v2014
        %3024 = vmatpush1.bf16.msra.mxu0 %v2013
        %3025 = vmatprep.subr.bf16.mxu0 %v2006
        %3026 = vmatpush1.bf16.msra.mxu0 %v2005
        %3027 = vmatprep.subr.bf16.mxu0 %v2126
        %3028 = vmatpush2.bf16.msra.mxu0 %v2125
        %3029 = vmatprep.subr.bf16.mxu0 %v2118
        %3030 = vmatpush2.bf16.msra.mxu0 %v2117
        %3031 = vmatprep.subr.bf16.mxu0 %v2110
        %3032 = vmatpush2.bf16.msra.mxu0 %v2109
        %3033 = vmatprep.subr.bf16.mxu0 %v2102
        %3034 = vmatpush2.bf16.msra.mxu0 %v2101
        %3035 = vmatprep.subr.bf16.mxu0 %v2094
        %3036 = vmatpush2.bf16.msra.mxu0 %v2093
        %3037 = vmatprep.subr.bf16.mxu0 %v2086
        %3038 = vmatpush2.bf16.msra.mxu0 %v2085
        %3039 = vmatprep.subr.bf16.mxu0 %v2078
        %3040 = vmatpush2.bf16.msra.mxu0 %v2077
        %3041 = vmatprep.subr.bf16.mxu0 %v2070
        %3042 = vmatpush2.bf16.msra.mxu0 %v2069
        %3043 = vmatprep.mubr.bf16.mxu0 %v2928
        %3044 = vmatmul.mubr.bf16.gmra.mxu0 %v2927
        %v3045 = vpop.f32.mrf.mxu0
        %v3046 = vadd.f32 0.0, %v3045
        %v3047 = vpop.f32.mrf.mxu0
        %v3048 = vadd.f32 0.0, %v3047
        %v3049 = vpop.f32.mrf.mxu0
        %v3050 = vpop.f32.mrf.mxu0
        %3051 = vdwg.mxu0
        %3052 = vmatprep.subr.bf16.mxu0 %v2064
        %3053 = vmatpush1.bf16.msra.mxu0 %v2063
        %3054 = vmatprep.subr.bf16.mxu0 %v2056
        %3055 = vmatpush1.bf16.msra.mxu0 %v2055
        %3056 = vmatprep.subr.bf16.mxu0 %v2048
        %3057 = vmatpush1.bf16.msra.mxu0 %v2047
        %3058 = vmatprep.subr.bf16.mxu0 %v2040
        %3059 = vmatpush1.bf16.msra.mxu0 %v2039
        %3060 = vmatprep.subr.bf16.mxu0 %v2032
        %3061 = vmatpush1.bf16.msra.mxu0 %v2031
        %3062 = vmatprep.subr.bf16.mxu0 %v2024
        %3063 = vmatpush1.bf16.msra.mxu0 %v2023
        %3064 = vmatprep.subr.bf16.mxu0 %v2016
        %3065 = vmatpush1.bf16.msra.mxu0 %v2015
        %3066 = vmatprep.subr.bf16.mxu0 %v2008
        %3067 = vmatpush1.bf16.msra.mxu0 %v2007
        %3068 = vmatprep.subr.bf16.mxu0 %v2128
        %3069 = vmatpush2.bf16.msra.mxu0 %v2127
        %3070 = vmatprep.subr.bf16.mxu0 %v2120
        %3071 = vmatpush2.bf16.msra.mxu0 %v2119
        %3072 = vmatprep.subr.bf16.mxu0 %v2112
        %3073 = vmatpush2.bf16.msra.mxu0 %v2111
        %3074 = vmatprep.subr.bf16.mxu0 %v2104
        %3075 = vmatpush2.bf16.msra.mxu0 %v2103
        %3076 = vmatprep.subr.bf16.mxu0 %v2096
        %3077 = vmatpush2.bf16.msra.mxu0 %v2095
        %3078 = vmatprep.subr.bf16.mxu0 %v2088
        %3079 = vmatpush2.bf16.msra.mxu0 %v2087
        %3080 = vmatprep.subr.bf16.mxu0 %v2080
        %3081 = vmatpush2.bf16.msra.mxu0 %v2079
        %3082 = vmatprep.subr.bf16.mxu0 %v2072
        %3083 = vmatpush2.bf16.msra.mxu0 %v2071
        %3084 = vmatprep.mubr.bf16.mxu0 %v2928
        %3085 = vmatmul.mubr.bf16.gmra.mxu0 %v2927
        %v3086 = vpop.f32.mrf.mxu0
        %v3087 = vadd.f32 0.0, %v3086
        %v3088 = vpop.f32.mrf.mxu0
        %v3089 = vadd.f32 0.0, %v3088
        %v3090 = vpop.f32.mrf.mxu0
        %v3091 = vpop.f32.mrf.mxu0
        %3092 = vdwg.mxu0
        %v3093 = vadd.f32 %v1328, %v2964
        %v3094 = vadd.f32 %v1330, %v2966
        %v3095 = vadd.f32 %v1401, %v3005
        %v3096 = vadd.f32 %v1403, %v3007
        %v3097 = vadd.f32 %v1474, %v3046
        %v3098 = vadd.f32 %v1476, %v3048
        %v3099 = vadd.f32 %v1547, %v3087
        %v3100 = vadd.f32 %v1549, %v3089
        %v3101 = vxor.u32 %v3093, 2147483648
        %v3102 = vxor.u32 %v3094, 2147483648
        %v3103 = vmul.f32 %v3101, 1.442695
        %v3104 = vpow.pop %v3103
        %v3105 = vmul.f32 %v3102, 1.442695
        %v3106 = vpow.pop %v3105
        %v3107 = vadd.f32 %v3104, 1.0
        %v3108 = vadd.f32 %v3106, 1.0
        %v3109 = vrcp.pop %v3107
        %v3110 = vmul.f32 1.0, %v3109
        %v3111 = vrcp.pop %v3108
        %v3112 = vmul.f32 1.0, %v3111
        %v3113 = vxor.u32 %v3095, 2147483648
        %v3114 = vxor.u32 %v3096, 2147483648
        %v3115 = vmul.f32 %v3113, 1.442695
        %v3116 = vpow.pop %v3115
        %v3117 = vmul.f32 %v3114, 1.442695
        %v3118 = vpow.pop %v3117
        %v3119 = vadd.f32 %v3116, 1.0
        %v3120 = vadd.f32 %v3118, 1.0
        %v3121 = vrcp.pop %v3119
        %v3122 = vmul.f32 1.0, %v3121
        %v3123 = vrcp.pop %v3120
        %v3124 = vmul.f32 1.0, %v3123
        %v3125 = vtanh.pop %v3097
        %v3126 = vtanh.pop %v3098
        %v3127 = vxor.u32 %v3099, 2147483648
        %v3128 = vxor.u32 %v3100, 2147483648
        %v3129 = vmul.f32 %v3127, 1.442695
        %v3130 = vpow.pop %v3129
        %v3131 = vmul.f32 %v3128, 1.442695
        %v3132 = vpow.pop %v3131
        %v3133 = vadd.f32 %v3130, 1.0
        %v3134 = vadd.f32 %v3132, 1.0
        %v3135 = vrcp.pop %v3133
        %v3136 = vmul.f32 1.0, %v3135
        %v3137 = vrcp.pop %v3134
        %v3138 = vmul.f32 1.0, %v3137
        %v3139 = vmul.f32 %v3122, %v2919
        %v3140 = vmul.f32 %v3124, %v2920
        %v3141 = vmul.f32 %v3110, %v3125
        %v3142 = vmul.f32 %v3112, %v3126
        %v3143 = vadd.f32 %v3139, %v3141
        %v3144 = vadd.f32 %v3140, %v3142
        %v3145 = vtanh.pop %v3143
        %v3146 = vtanh.pop %v3144
        %v3147 = vmul.f32 %v3136, %v3145
        %v3148 = vmul.f32 %v3138, %v3146
        %3149 = vst [vmem:[#allocation2 + $0x40] sm:$0xff] %v3147
        %3150 = vst [vmem:[#allocation2 + $0x48] sm:$0xff] %v3148
        %v3151 = vpack.c.bf16 %v3147, %v3147
        %v3152 = vpack.c.bf16 %v3148, %v3148
        %3153 = vmatprep.subr.bf16.mxu0 %v2058
        %3154 = vmatpush1.bf16.msra.mxu0 %v2057
        %3155 = vmatprep.subr.bf16.mxu0 %v2050
        %3156 = vmatpush1.bf16.msra.mxu0 %v2049
        %3157 = vmatprep.subr.bf16.mxu0 %v2042
        %3158 = vmatpush1.bf16.msra.mxu0 %v2041
        %3159 = vmatprep.subr.bf16.mxu0 %v2034
        %3160 = vmatpush1.bf16.msra.mxu0 %v2033
        %3161 = vmatprep.subr.bf16.mxu0 %v2026
        %3162 = vmatpush1.bf16.msra.mxu0 %v2025
        %3163 = vmatprep.subr.bf16.mxu0 %v2018
        %3164 = vmatpush1.bf16.msra.mxu0 %v2017
        %3165 = vmatprep.subr.bf16.mxu0 %v2010
        %3166 = vmatpush1.bf16.msra.mxu0 %v2009
        %3167 = vmatprep.subr.bf16.mxu0 %v2002
        %3168 = vmatpush1.bf16.msra.mxu0 %v2001
        %3169 = vmatprep.subr.bf16.mxu0 %v2122
        %3170 = vmatpush2.bf16.msra.mxu0 %v2121
        %3171 = vmatprep.subr.bf16.mxu0 %v2114
        %3172 = vmatpush2.bf16.msra.mxu0 %v2113
        %3173 = vmatprep.subr.bf16.mxu0 %v2106
        %3174 = vmatpush2.bf16.msra.mxu0 %v2105
        %3175 = vmatprep.subr.bf16.mxu0 %v2098
        %3176 = vmatpush2.bf16.msra.mxu0 %v2097
        %3177 = vmatprep.subr.bf16.mxu0 %v2090
        %3178 = vmatpush2.bf16.msra.mxu0 %v2089
        %3179 = vmatprep.subr.bf16.mxu0 %v2082
        %3180 = vmatpush2.bf16.msra.mxu0 %v2081
        %3181 = vmatprep.subr.bf16.mxu0 %v2074
        %3182 = vmatpush2.bf16.msra.mxu0 %v2073
        %3183 = vmatprep.subr.bf16.mxu0 %v2066
        %3184 = vmatpush2.bf16.msra.mxu0 %v2065
        %3185 = vmatprep.mubr.bf16.mxu0 %v3152
        %3186 = vmatmul.mubr.bf16.gmra.mxu0 %v3151
        %v3187 = vpop.f32.mrf.mxu0
        %v3188 = vadd.f32 0.0, %v3187
        %v3189 = vpop.f32.mrf.mxu0
        %v3190 = vadd.f32 0.0, %v3189
        %v3191 = vpop.f32.mrf.mxu0
        %v3192 = vpop.f32.mrf.mxu0
        %3193 = vdwg.mxu0
        %3194 = vmatprep.subr.bf16.mxu0 %v2060
        %3195 = vmatpush1.bf16.msra.mxu0 %v2059
        %3196 = vmatprep.subr.bf16.mxu0 %v2052
        %3197 = vmatpush1.bf16.msra.mxu0 %v2051
        %3198 = vmatprep.subr.bf16.mxu0 %v2044
        %3199 = vmatpush1.bf16.msra.mxu0 %v2043
        %3200 = vmatprep.subr.bf16.mxu0 %v2036
        %3201 = vmatpush1.bf16.msra.mxu0 %v2035
        %3202 = vmatprep.subr.bf16.mxu0 %v2028
        %3203 = vmatpush1.bf16.msra.mxu0 %v2027
        %3204 = vmatprep.subr.bf16.mxu0 %v2020
        %3205 = vmatpush1.bf16.msra.mxu0 %v2019
        %3206 = vmatprep.subr.bf16.mxu0 %v2012
        %3207 = vmatpush1.bf16.msra.mxu0 %v2011
        %3208 = vmatprep.subr.bf16.mxu0 %v2004
        %3209 = vmatpush1.bf16.msra.mxu0 %v2003
        %3210 = vmatprep.subr.bf16.mxu0 %v2124
        %3211 = vmatpush2.bf16.msra.mxu0 %v2123
        %3212 = vmatprep.subr.bf16.mxu0 %v2116
        %3213 = vmatpush2.bf16.msra.mxu0 %v2115
        %3214 = vmatprep.subr.bf16.mxu0 %v2108
        %3215 = vmatpush2.bf16.msra.mxu0 %v2107
        %3216 = vmatprep.subr.bf16.mxu0 %v2100
        %3217 = vmatpush2.bf16.msra.mxu0 %v2099
        %3218 = vmatprep.subr.bf16.mxu0 %v2092
        %3219 = vmatpush2.bf16.msra.mxu0 %v2091
        %3220 = vmatprep.subr.bf16.mxu0 %v2084
        %3221 = vmatpush2.bf16.msra.mxu0 %v2083
        %3222 = vmatprep.subr.bf16.mxu0 %v2076
        %3223 = vmatpush2.bf16.msra.mxu0 %v2075
        %3224 = vmatprep.subr.bf16.mxu0 %v2068
        %3225 = vmatpush2.bf16.msra.mxu0 %v2067
        %3226 = vmatprep.mubr.bf16.mxu0 %v3152
        %3227 = vmatmul.mubr.bf16.gmra.mxu0 %v3151
        %v3228 = vpop.f32.mrf.mxu0
        %v3229 = vadd.f32 0.0, %v3228
        %v3230 = vpop.f32.mrf.mxu0
        %v3231 = vadd.f32 0.0, %v3230
        %v3232 = vpop.f32.mrf.mxu0
        %v3233 = vpop.f32.mrf.mxu0
        %3234 = vdwg.mxu0
        %3235 = vmatprep.subr.bf16.mxu0 %v2062
        %3236 = vmatpush1.bf16.msra.mxu0 %v2061
        %3237 = vmatprep.subr.bf16.mxu0 %v2054
        %3238 = vmatpush1.bf16.msra.mxu0 %v2053
        %3239 = vmatprep.subr.bf16.mxu0 %v2046
        %3240 = vmatpush1.bf16.msra.mxu0 %v2045
        %3241 = vmatprep.subr.bf16.mxu0 %v2038
        %3242 = vmatpush1.bf16.msra.mxu0 %v2037
        %3243 = vmatprep.subr.bf16.mxu0 %v2030
        %3244 = vmatpush1.bf16.msra.mxu0 %v2029
        %3245 = vmatprep.subr.bf16.mxu0 %v2022
        %3246 = vmatpush1.bf16.msra.mxu0 %v2021
        %3247 = vmatprep.subr.bf16.mxu0 %v2014
        %3248 = vmatpush1.bf16.msra.mxu0 %v2013
        %3249 = vmatprep.subr.bf16.mxu0 %v2006
        %3250 = vmatpush1.bf16.msra.mxu0 %v2005
        %3251 = vmatprep.subr.bf16.mxu0 %v2126
        %3252 = vmatpush2.bf16.msra.mxu0 %v2125
        %3253 = vmatprep.subr.bf16.mxu0 %v2118
        %3254 = vmatpush2.bf16.msra.mxu0 %v2117
        %3255 = vmatprep.subr.bf16.mxu0 %v2110
        %3256 = vmatpush2.bf16.msra.mxu0 %v2109
        %3257 = vmatprep.subr.bf16.mxu0 %v2102
        %3258 = vmatpush2.bf16.msra.mxu0 %v2101
        %3259 = vmatprep.subr.bf16.mxu0 %v2094
        %3260 = vmatpush2.bf16.msra.mxu0 %v2093
        %3261 = vmatprep.subr.bf16.mxu0 %v2086
        %3262 = vmatpush2.bf16.msra.mxu0 %v2085
        %3263 = vmatprep.subr.bf16.mxu0 %v2078
        %3264 = vmatpush2.bf16.msra.mxu0 %v2077
        %3265 = vmatprep.subr.bf16.mxu0 %v2070
        %3266 = vmatpush2.bf16.msra.mxu0 %v2069
        %3267 = vmatprep.mubr.bf16.mxu0 %v3152
        %3268 = vmatmul.mubr.bf16.gmra.mxu0 %v3151
        %v3269 = vpop.f32.mrf.mxu0
        %v3270 = vadd.f32 0.0, %v3269
        %v3271 = vpop.f32.mrf.mxu0
        %v3272 = vadd.f32 0.0, %v3271
        %v3273 = vpop.f32.mrf.mxu0
        %v3274 = vpop.f32.mrf.mxu0
        %3275 = vdwg.mxu0
        %3276 = vmatprep.subr.bf16.mxu0 %v2064
        %3277 = vmatpush1.bf16.msra.mxu0 %v2063
        %3278 = vmatprep.subr.bf16.mxu0 %v2056
        %3279 = vmatpush1.bf16.msra.mxu0 %v2055
        %3280 = vmatprep.subr.bf16.mxu0 %v2048
        %3281 = vmatpush1.bf16.msra.mxu0 %v2047
        %3282 = vmatprep.subr.bf16.mxu0 %v2040
        %3283 = vmatpush1.bf16.msra.mxu0 %v2039
        %3284 = vmatprep.subr.bf16.mxu0 %v2032
        %3285 = vmatpush1.bf16.msra.mxu0 %v2031
        %3286 = vmatprep.subr.bf16.mxu0 %v2024
        %3287 = vmatpush1.bf16.msra.mxu0 %v2023
        %3288 = vmatprep.subr.bf16.mxu0 %v2016
        %3289 = vmatpush1.bf16.msra.mxu0 %v2015
        %3290 = vmatprep.subr.bf16.mxu0 %v2008
        %3291 = vmatpush1.bf16.msra.mxu0 %v2007
        %3292 = vmatprep.subr.bf16.mxu0 %v2128
        %3293 = vmatpush2.bf16.msra.mxu0 %v2127
        %3294 = vmatprep.subr.bf16.mxu0 %v2120
        %3295 = vmatpush2.bf16.msra.mxu0 %v2119
        %3296 = vmatprep.subr.bf16.mxu0 %v2112
        %3297 = vmatpush2.bf16.msra.mxu0 %v2111
        %3298 = vmatprep.subr.bf16.mxu0 %v2104
        %3299 = vmatpush2.bf16.msra.mxu0 %v2103
        %3300 = vmatprep.subr.bf16.mxu0 %v2096
        %3301 = vmatpush2.bf16.msra.mxu0 %v2095
        %3302 = vmatprep.subr.bf16.mxu0 %v2088
        %3303 = vmatpush2.bf16.msra.mxu0 %v2087
        %3304 = vmatprep.subr.bf16.mxu0 %v2080
        %3305 = vmatpush2.bf16.msra.mxu0 %v2079
        %3306 = vmatprep.subr.bf16.mxu0 %v2072
        %3307 = vmatpush2.bf16.msra.mxu0 %v2071
        %3308 = vmatprep.mubr.bf16.mxu0 %v3152
        %3309 = vmatmul.mubr.bf16.gmra.mxu0 %v3151
        %v3310 = vpop.f32.mrf.mxu0
        %v3311 = vadd.f32 0.0, %v3310
        %v3312 = vpop.f32.mrf.mxu0
        %v3313 = vadd.f32 0.0, %v3312
        %v3314 = vpop.f32.mrf.mxu0
        %v3315 = vpop.f32.mrf.mxu0
        %3316 = vdwg.mxu0
        %v3317 = vadd.f32 %v1332, %v3188
        %v3318 = vadd.f32 %v1334, %v3190
        %v3319 = vadd.f32 %v1405, %v3229
        %v3320 = vadd.f32 %v1407, %v3231
        %v3321 = vadd.f32 %v1478, %v3270
        %v3322 = vadd.f32 %v1480, %v3272
        %v3323 = vadd.f32 %v1551, %v3311
        %v3324 = vadd.f32 %v1553, %v3313
        %v3325 = vxor.u32 %v3317, 2147483648
        %v3326 = vxor.u32 %v3318, 2147483648
        %v3327 = vmul.f32 %v3325, 1.442695
        %v3328 = vpow.pop %v3327
        %v3329 = vmul.f32 %v3326, 1.442695
        %v3330 = vpow.pop %v3329
        %v3331 = vadd.f32 %v3328, 1.0
        %v3332 = vadd.f32 %v3330, 1.0
        %v3333 = vrcp.pop %v3331
        %v3334 = vmul.f32 1.0, %v3333
        %v3335 = vrcp.pop %v3332
        %v3336 = vmul.f32 1.0, %v3335
        %v3337 = vxor.u32 %v3319, 2147483648
        %v3338 = vxor.u32 %v3320, 2147483648
        %v3339 = vmul.f32 %v3337, 1.442695
        %v3340 = vpow.pop %v3339
        %v3341 = vmul.f32 %v3338, 1.442695
        %v3342 = vpow.pop %v3341
        %v3343 = vadd.f32 %v3340, 1.0
        %v3344 = vadd.f32 %v3342, 1.0
        %v3345 = vrcp.pop %v3343
        %v3346 = vmul.f32 1.0, %v3345
        %v3347 = vrcp.pop %v3344
        %v3348 = vmul.f32 1.0, %v3347
        %v3349 = vtanh.pop %v3321
        %v3350 = vtanh.pop %v3322
        %v3351 = vxor.u32 %v3323, 2147483648
        %v3352 = vxor.u32 %v3324, 2147483648
        %v3353 = vmul.f32 %v3351, 1.442695
        %v3354 = vpow.pop %v3353
        %v3355 = vmul.f32 %v3352, 1.442695
        %v3356 = vpow.pop %v3355
        %v3357 = vadd.f32 %v3354, 1.0
        %v3358 = vadd.f32 %v3356, 1.0
        %v3359 = vrcp.pop %v3357
        %v3360 = vmul.f32 1.0, %v3359
        %v3361 = vrcp.pop %v3358
        %v3362 = vmul.f32 1.0, %v3361
        %v3363 = vmul.f32 %v3346, %v3143
        %v3364 = vmul.f32 %v3348, %v3144
        %v3365 = vmul.f32 %v3334, %v3349
        %v3366 = vmul.f32 %v3336, %v3350
        %v3367 = vadd.f32 %v3363, %v3365
        %v3368 = vadd.f32 %v3364, %v3366
        %v3369 = vtanh.pop %v3367
        %v3370 = vtanh.pop %v3368
        %v3371 = vmul.f32 %v3360, %v3369
        %v3372 = vmul.f32 %v3362, %v3370
        %3373 = vst [vmem:[#allocation2 + $0x50] sm:$0xff] %v3371
        %3374 = vst [vmem:[#allocation2 + $0x58] sm:$0xff] %v3372
        %v3375 = vpack.c.bf16 %v3371, %v3371
        %v3376 = vpack.c.bf16 %v3372, %v3372
        %3377 = vmatprep.subr.bf16.mxu0 %v2058
        %3378 = vmatpush1.bf16.msra.mxu0 %v2057
        %3379 = vmatprep.subr.bf16.mxu0 %v2050
        %3380 = vmatpush1.bf16.msra.mxu0 %v2049
        %3381 = vmatprep.subr.bf16.mxu0 %v2042
        %3382 = vmatpush1.bf16.msra.mxu0 %v2041
        %3383 = vmatprep.subr.bf16.mxu0 %v2034
        %3384 = vmatpush1.bf16.msra.mxu0 %v2033
        %3385 = vmatprep.subr.bf16.mxu0 %v2026
        %3386 = vmatpush1.bf16.msra.mxu0 %v2025
        %3387 = vmatprep.subr.bf16.mxu0 %v2018
        %3388 = vmatpush1.bf16.msra.mxu0 %v2017
        %3389 = vmatprep.subr.bf16.mxu0 %v2010
        %3390 = vmatpush1.bf16.msra.mxu0 %v2009
        %3391 = vmatprep.subr.bf16.mxu0 %v2002
        %3392 = vmatpush1.bf16.msra.mxu0 %v2001
        %3393 = vmatprep.subr.bf16.mxu0 %v2122
        %3394 = vmatpush2.bf16.msra.mxu0 %v2121
        %3395 = vmatprep.subr.bf16.mxu0 %v2114
        %3396 = vmatpush2.bf16.msra.mxu0 %v2113
        %3397 = vmatprep.subr.bf16.mxu0 %v2106
        %3398 = vmatpush2.bf16.msra.mxu0 %v2105
        %3399 = vmatprep.subr.bf16.mxu0 %v2098
        %3400 = vmatpush2.bf16.msra.mxu0 %v2097
        %3401 = vmatprep.subr.bf16.mxu0 %v2090
        %3402 = vmatpush2.bf16.msra.mxu0 %v2089
        %3403 = vmatprep.subr.bf16.mxu0 %v2082
        %3404 = vmatpush2.bf16.msra.mxu0 %v2081
        %3405 = vmatprep.subr.bf16.mxu0 %v2074
        %3406 = vmatpush2.bf16.msra.mxu0 %v2073
        %3407 = vmatprep.subr.bf16.mxu0 %v2066
        %3408 = vmatpush2.bf16.msra.mxu0 %v2065
        %3409 = vmatprep.mubr.bf16.mxu0 %v3376
        %3410 = vmatmul.mubr.bf16.gmra.mxu0 %v3375
        %v3411 = vpop.f32.mrf.mxu0
        %v3412 = vadd.f32 0.0, %v3411
        %v3413 = vpop.f32.mrf.mxu0
        %v3414 = vadd.f32 0.0, %v3413
        %v3415 = vpop.f32.mrf.mxu0
        %v3416 = vpop.f32.mrf.mxu0
        %3417 = vdwg.mxu0
        %3418 = vmatprep.subr.bf16.mxu0 %v2060
        %3419 = vmatpush1.bf16.msra.mxu0 %v2059
        %3420 = vmatprep.subr.bf16.mxu0 %v2052
        %3421 = vmatpush1.bf16.msra.mxu0 %v2051
        %3422 = vmatprep.subr.bf16.mxu0 %v2044
        %3423 = vmatpush1.bf16.msra.mxu0 %v2043
        %3424 = vmatprep.subr.bf16.mxu0 %v2036
        %3425 = vmatpush1.bf16.msra.mxu0 %v2035
        %3426 = vmatprep.subr.bf16.mxu0 %v2028
        %3427 = vmatpush1.bf16.msra.mxu0 %v2027
        %3428 = vmatprep.subr.bf16.mxu0 %v2020
        %3429 = vmatpush1.bf16.msra.mxu0 %v2019
        %3430 = vmatprep.subr.bf16.mxu0 %v2012
        %3431 = vmatpush1.bf16.msra.mxu0 %v2011
        %3432 = vmatprep.subr.bf16.mxu0 %v2004
        %3433 = vmatpush1.bf16.msra.mxu0 %v2003
        %3434 = vmatprep.subr.bf16.mxu0 %v2124
        %3435 = vmatpush2.bf16.msra.mxu0 %v2123
        %3436 = vmatprep.subr.bf16.mxu0 %v2116
        %3437 = vmatpush2.bf16.msra.mxu0 %v2115
        %3438 = vmatprep.subr.bf16.mxu0 %v2108
        %3439 = vmatpush2.bf16.msra.mxu0 %v2107
        %3440 = vmatprep.subr.bf16.mxu0 %v2100
        %3441 = vmatpush2.bf16.msra.mxu0 %v2099
        %3442 = vmatprep.subr.bf16.mxu0 %v2092
        %3443 = vmatpush2.bf16.msra.mxu0 %v2091
        %3444 = vmatprep.subr.bf16.mxu0 %v2084
        %3445 = vmatpush2.bf16.msra.mxu0 %v2083
        %3446 = vmatprep.subr.bf16.mxu0 %v2076
        %3447 = vmatpush2.bf16.msra.mxu0 %v2075
        %3448 = vmatprep.subr.bf16.mxu0 %v2068
        %3449 = vmatpush2.bf16.msra.mxu0 %v2067
        %3450 = vmatprep.mubr.bf16.mxu0 %v3376
        %3451 = vmatmul.mubr.bf16.gmra.mxu0 %v3375
        %v3452 = vpop.f32.mrf.mxu0
        %v3453 = vadd.f32 0.0, %v3452
        %v3454 = vpop.f32.mrf.mxu0
        %v3455 = vadd.f32 0.0, %v3454
        %v3456 = vpop.f32.mrf.mxu0
        %v3457 = vpop.f32.mrf.mxu0
        %3458 = vdwg.mxu0
        %3459 = vmatprep.subr.bf16.mxu0 %v2062
        %3460 = vmatpush1.bf16.msra.mxu0 %v2061
        %3461 = vmatprep.subr.bf16.mxu0 %v2054
        %3462 = vmatpush1.bf16.msra.mxu0 %v2053
        %3463 = vmatprep.subr.bf16.mxu0 %v2046
        %3464 = vmatpush1.bf16.msra.mxu0 %v2045
        %3465 = vmatprep.subr.bf16.mxu0 %v2038
        %3466 = vmatpush1.bf16.msra.mxu0 %v2037
        %3467 = vmatprep.subr.bf16.mxu0 %v2030
        %3468 = vmatpush1.bf16.msra.mxu0 %v2029
        %3469 = vmatprep.subr.bf16.mxu0 %v2022
        %3470 = vmatpush1.bf16.msra.mxu0 %v2021
        %3471 = vmatprep.subr.bf16.mxu0 %v2014
        %3472 = vmatpush1.bf16.msra.mxu0 %v2013
        %3473 = vmatprep.subr.bf16.mxu0 %v2006
        %3474 = vmatpush1.bf16.msra.mxu0 %v2005
        %3475 = vmatprep.subr.bf16.mxu0 %v2126
        %3476 = vmatpush2.bf16.msra.mxu0 %v2125
        %3477 = vmatprep.subr.bf16.mxu0 %v2118
        %3478 = vmatpush2.bf16.msra.mxu0 %v2117
        %3479 = vmatprep.subr.bf16.mxu0 %v2110
        %3480 = vmatpush2.bf16.msra.mxu0 %v2109
        %3481 = vmatprep.subr.bf16.mxu0 %v2102
        %3482 = vmatpush2.bf16.msra.mxu0 %v2101
        %3483 = vmatprep.subr.bf16.mxu0 %v2094
        %3484 = vmatpush2.bf16.msra.mxu0 %v2093
        %3485 = vmatprep.subr.bf16.mxu0 %v2086
        %3486 = vmatpush2.bf16.msra.mxu0 %v2085
        %3487 = vmatprep.subr.bf16.mxu0 %v2078
        %3488 = vmatpush2.bf16.msra.mxu0 %v2077
        %3489 = vmatprep.subr.bf16.mxu0 %v2070
        %3490 = vmatpush2.bf16.msra.mxu0 %v2069
        %3491 = vmatprep.mubr.bf16.mxu0 %v3376
        %3492 = vmatmul.mubr.bf16.gmra.mxu0 %v3375
        %v3493 = vpop.f32.mrf.mxu0
        %v3494 = vadd.f32 0.0, %v3493
        %v3495 = vpop.f32.mrf.mxu0
        %v3496 = vadd.f32 0.0, %v3495
        %v3497 = vpop.f32.mrf.mxu0
        %v3498 = vpop.f32.mrf.mxu0
        %3499 = vdwg.mxu0
        %3500 = vmatprep.subr.bf16.mxu0 %v2064
        %3501 = vmatpush1.bf16.msra.mxu0 %v2063
        %3502 = vmatprep.subr.bf16.mxu0 %v2056
        %3503 = vmatpush1.bf16.msra.mxu0 %v2055
        %3504 = vmatprep.subr.bf16.mxu0 %v2048
        %3505 = vmatpush1.bf16.msra.mxu0 %v2047
        %3506 = vmatprep.subr.bf16.mxu0 %v2040
        %3507 = vmatpush1.bf16.msra.mxu0 %v2039
        %3508 = vmatprep.subr.bf16.mxu0 %v2032
        %3509 = vmatpush1.bf16.msra.mxu0 %v2031
        %3510 = vmatprep.subr.bf16.mxu0 %v2024
        %3511 = vmatpush1.bf16.msra.mxu0 %v2023
        %3512 = vmatprep.subr.bf16.mxu0 %v2016
        %3513 = vmatpush1.bf16.msra.mxu0 %v2015
        %3514 = vmatprep.subr.bf16.mxu0 %v2008
        %3515 = vmatpush1.bf16.msra.mxu0 %v2007
        %3516 = vmatprep.subr.bf16.mxu0 %v2128
        %3517 = vmatpush2.bf16.msra.mxu0 %v2127
        %3518 = vmatprep.subr.bf16.mxu0 %v2120
        %3519 = vmatpush2.bf16.msra.mxu0 %v2119
        %3520 = vmatprep.subr.bf16.mxu0 %v2112
        %3521 = vmatpush2.bf16.msra.mxu0 %v2111
        %3522 = vmatprep.subr.bf16.mxu0 %v2104
        %3523 = vmatpush2.bf16.msra.mxu0 %v2103
        %3524 = vmatprep.subr.bf16.mxu0 %v2096
        %3525 = vmatpush2.bf16.msra.mxu0 %v2095
        %3526 = vmatprep.subr.bf16.mxu0 %v2088
        %3527 = vmatpush2.bf16.msra.mxu0 %v2087
        %3528 = vmatprep.subr.bf16.mxu0 %v2080
        %3529 = vmatpush2.bf16.msra.mxu0 %v2079
        %3530 = vmatprep.subr.bf16.mxu0 %v2072
        %3531 = vmatpush2.bf16.msra.mxu0 %v2071
        %3532 = vmatprep.mubr.bf16.mxu0 %v3376
        %3533 = vmatmul.mubr.bf16.gmra.mxu0 %v3375
        %v3534 = vpop.f32.mrf.mxu0
        %v3535 = vadd.f32 0.0, %v3534
        %v3536 = vpop.f32.mrf.mxu0
        %v3537 = vadd.f32 0.0, %v3536
        %v3538 = vpop.f32.mrf.mxu0
        %v3539 = vpop.f32.mrf.mxu0
        %3540 = vdwg.mxu0
        %v3541 = vadd.f32 %v1338, %v3412
        %v3542 = vadd.f32 %v1340, %v3414
        %v3543 = vadd.f32 %v1411, %v3453
        %v3544 = vadd.f32 %v1413, %v3455
        %v3545 = vadd.f32 %v1484, %v3494
        %v3546 = vadd.f32 %v1486, %v3496
        %v3547 = vadd.f32 %v1557, %v3535
        %v3548 = vadd.f32 %v1559, %v3537
        %v3549 = vxor.u32 %v3541, 2147483648
        %v3550 = vxor.u32 %v3542, 2147483648
        %v3551 = vmul.f32 %v3549, 1.442695
        %v3552 = vpow.pop %v3551
        %v3553 = vmul.f32 %v3550, 1.442695
        %v3554 = vpow.pop %v3553
        %v3555 = vadd.f32 %v3552, 1.0
        %v3556 = vadd.f32 %v3554, 1.0
        %v3557 = vrcp.pop %v3555
        %v3558 = vmul.f32 1.0, %v3557
        %v3559 = vrcp.pop %v3556
        %v3560 = vmul.f32 1.0, %v3559
        %v3561 = vxor.u32 %v3543, 2147483648
        %v3562 = vxor.u32 %v3544, 2147483648
        %v3563 = vmul.f32 %v3561, 1.442695
        %v3564 = vpow.pop %v3563
        %v3565 = vmul.f32 %v3562, 1.442695
        %v3566 = vpow.pop %v3565
        %v3567 = vadd.f32 %v3564, 1.0
        %v3568 = vadd.f32 %v3566, 1.0
        %v3569 = vrcp.pop %v3567
        %v3570 = vmul.f32 1.0, %v3569
        %v3571 = vrcp.pop %v3568
        %v3572 = vmul.f32 1.0, %v3571
        %v3573 = vtanh.pop %v3545
        %v3574 = vtanh.pop %v3546
        %v3575 = vxor.u32 %v3547, 2147483648
        %v3576 = vxor.u32 %v3548, 2147483648
        %v3577 = vmul.f32 %v3575, 1.442695
        %v3578 = vpow.pop %v3577
        %v3579 = vmul.f32 %v3576, 1.442695
        %v3580 = vpow.pop %v3579
        %v3581 = vadd.f32 %v3578, 1.0
        %v3582 = vadd.f32 %v3580, 1.0
        %v3583 = vrcp.pop %v3581
        %v3584 = vmul.f32 1.0, %v3583
        %v3585 = vrcp.pop %v3582
        %v3586 = vmul.f32 1.0, %v3585
        %v3587 = vmul.f32 %v3570, %v3367
        %v3588 = vmul.f32 %v3572, %v3368
        %v3589 = vmul.f32 %v3558, %v3573
        %v3590 = vmul.f32 %v3560, %v3574
        %v3591 = vadd.f32 %v3587, %v3589
        %v3592 = vadd.f32 %v3588, %v3590
        %v3593 = vtanh.pop %v3591
        %v3594 = vtanh.pop %v3592
        %v3595 = vmul.f32 %v3584, %v3593
        %v3596 = vmul.f32 %v3586, %v3594
        %3597 = vst [vmem:[#allocation2 + $0x60] sm:$0xff] %v3595
        %3598 = vst [vmem:[#allocation2 + $0x68] sm:$0xff] %v3596
        %v3599 = vpack.c.bf16 %v3595, %v3595
        %v3600 = vpack.c.bf16 %v3596, %v3596
        %3601 = vmatprep.subr.bf16.mxu0 %v2058
        %3602 = vmatpush1.bf16.msra.mxu0 %v2057
        %3603 = vmatprep.subr.bf16.mxu0 %v2050
        %3604 = vmatpush1.bf16.msra.mxu0 %v2049
        %3605 = vmatprep.subr.bf16.mxu0 %v2042
        %3606 = vmatpush1.bf16.msra.mxu0 %v2041
        %3607 = vmatprep.subr.bf16.mxu0 %v2034
        %3608 = vmatpush1.bf16.msra.mxu0 %v2033
        %3609 = vmatprep.subr.bf16.mxu0 %v2026
        %3610 = vmatpush1.bf16.msra.mxu0 %v2025
        %3611 = vmatprep.subr.bf16.mxu0 %v2018
        %3612 = vmatpush1.bf16.msra.mxu0 %v2017
        %3613 = vmatprep.subr.bf16.mxu0 %v2010
        %3614 = vmatpush1.bf16.msra.mxu0 %v2009
        %3615 = vmatprep.subr.bf16.mxu0 %v2002
        %3616 = vmatpush1.bf16.msra.mxu0 %v2001
        %3617 = vmatprep.subr.bf16.mxu0 %v2122
        %3618 = vmatpush2.bf16.msra.mxu0 %v2121
        %3619 = vmatprep.subr.bf16.mxu0 %v2114
        %3620 = vmatpush2.bf16.msra.mxu0 %v2113
        %3621 = vmatprep.subr.bf16.mxu0 %v2106
        %3622 = vmatpush2.bf16.msra.mxu0 %v2105
        %3623 = vmatprep.subr.bf16.mxu0 %v2098
        %3624 = vmatpush2.bf16.msra.mxu0 %v2097
        %3625 = vmatprep.subr.bf16.mxu0 %v2090
        %3626 = vmatpush2.bf16.msra.mxu0 %v2089
        %3627 = vmatprep.subr.bf16.mxu0 %v2082
        %3628 = vmatpush2.bf16.msra.mxu0 %v2081
        %3629 = vmatprep.subr.bf16.mxu0 %v2074
        %3630 = vmatpush2.bf16.msra.mxu0 %v2073
        %3631 = vmatprep.subr.bf16.mxu0 %v2066
        %3632 = vmatpush2.bf16.msra.mxu0 %v2065
        %3633 = vmatprep.mubr.bf16.mxu0 %v3600
        %3634 = vmatmul.mubr.bf16.gmra.mxu0 %v3599
        %v3635 = vpop.f32.mrf.mxu0
        %v3636 = vadd.f32 0.0, %v3635
        %v3637 = vpop.f32.mrf.mxu0
        %v3638 = vadd.f32 0.0, %v3637
        %v3639 = vpop.f32.mrf.mxu0
        %v3640 = vpop.f32.mrf.mxu0
        %3641 = vdwg.mxu0
        %3642 = vmatprep.subr.bf16.mxu0 %v2060
        %3643 = vmatpush1.bf16.msra.mxu0 %v2059
        %3644 = vmatprep.subr.bf16.mxu0 %v2052
        %3645 = vmatpush1.bf16.msra.mxu0 %v2051
        %3646 = vmatprep.subr.bf16.mxu0 %v2044
        %3647 = vmatpush1.bf16.msra.mxu0 %v2043
        %3648 = vmatprep.subr.bf16.mxu0 %v2036
        %3649 = vmatpush1.bf16.msra.mxu0 %v2035
        %3650 = vmatprep.subr.bf16.mxu0 %v2028
        %3651 = vmatpush1.bf16.msra.mxu0 %v2027
        %3652 = vmatprep.subr.bf16.mxu0 %v2020
        %3653 = vmatpush1.bf16.msra.mxu0 %v2019
        %3654 = vmatprep.subr.bf16.mxu0 %v2012
        %3655 = vmatpush1.bf16.msra.mxu0 %v2011
        %3656 = vmatprep.subr.bf16.mxu0 %v2004
        %3657 = vmatpush1.bf16.msra.mxu0 %v2003
        %3658 = vmatprep.subr.bf16.mxu0 %v2124
        %3659 = vmatpush2.bf16.msra.mxu0 %v2123
        %3660 = vmatprep.subr.bf16.mxu0 %v2116
        %3661 = vmatpush2.bf16.msra.mxu0 %v2115
        %3662 = vmatprep.subr.bf16.mxu0 %v2108
        %3663 = vmatpush2.bf16.msra.mxu0 %v2107
        %3664 = vmatprep.subr.bf16.mxu0 %v2100
        %3665 = vmatpush2.bf16.msra.mxu0 %v2099
        %3666 = vmatprep.subr.bf16.mxu0 %v2092
        %3667 = vmatpush2.bf16.msra.mxu0 %v2091
        %3668 = vmatprep.subr.bf16.mxu0 %v2084
        %3669 = vmatpush2.bf16.msra.mxu0 %v2083
        %3670 = vmatprep.subr.bf16.mxu0 %v2076
        %3671 = vmatpush2.bf16.msra.mxu0 %v2075
        %3672 = vmatprep.subr.bf16.mxu0 %v2068
        %3673 = vmatpush2.bf16.msra.mxu0 %v2067
        %3674 = vmatprep.mubr.bf16.mxu0 %v3600
        %3675 = vmatmul.mubr.bf16.gmra.mxu0 %v3599
        %v3676 = vpop.f32.mrf.mxu0
        %v3677 = vadd.f32 0.0, %v3676
        %v3678 = vpop.f32.mrf.mxu0
        %v3679 = vadd.f32 0.0, %v3678
        %v3680 = vpop.f32.mrf.mxu0
        %v3681 = vpop.f32.mrf.mxu0
        %3682 = vdwg.mxu0
        %3683 = vmatprep.subr.bf16.mxu0 %v2062
        %3684 = vmatpush1.bf16.msra.mxu0 %v2061
        %3685 = vmatprep.subr.bf16.mxu0 %v2054
        %3686 = vmatpush1.bf16.msra.mxu0 %v2053
        %3687 = vmatprep.subr.bf16.mxu0 %v2046
        %3688 = vmatpush1.bf16.msra.mxu0 %v2045
        %3689 = vmatprep.subr.bf16.mxu0 %v2038
        %3690 = vmatpush1.bf16.msra.mxu0 %v2037
        %3691 = vmatprep.subr.bf16.mxu0 %v2030
        %3692 = vmatpush1.bf16.msra.mxu0 %v2029
        %3693 = vmatprep.subr.bf16.mxu0 %v2022
        %3694 = vmatpush1.bf16.msra.mxu0 %v2021
        %3695 = vmatprep.subr.bf16.mxu0 %v2014
        %3696 = vmatpush1.bf16.msra.mxu0 %v2013
        %3697 = vmatprep.subr.bf16.mxu0 %v2006
        %3698 = vmatpush1.bf16.msra.mxu0 %v2005
        %3699 = vmatprep.subr.bf16.mxu0 %v2126
        %3700 = vmatpush2.bf16.msra.mxu0 %v2125
        %3701 = vmatprep.subr.bf16.mxu0 %v2118
        %3702 = vmatpush2.bf16.msra.mxu0 %v2117
        %3703 = vmatprep.subr.bf16.mxu0 %v2110
        %3704 = vmatpush2.bf16.msra.mxu0 %v2109
        %3705 = vmatprep.subr.bf16.mxu0 %v2102
        %3706 = vmatpush2.bf16.msra.mxu0 %v2101
        %3707 = vmatprep.subr.bf16.mxu0 %v2094
        %3708 = vmatpush2.bf16.msra.mxu0 %v2093
        %3709 = vmatprep.subr.bf16.mxu0 %v2086
        %3710 = vmatpush2.bf16.msra.mxu0 %v2085
        %3711 = vmatprep.subr.bf16.mxu0 %v2078
        %3712 = vmatpush2.bf16.msra.mxu0 %v2077
        %3713 = vmatprep.subr.bf16.mxu0 %v2070
        %3714 = vmatpush2.bf16.msra.mxu0 %v2069
        %3715 = vmatprep.mubr.bf16.mxu0 %v3600
        %3716 = vmatmul.mubr.bf16.gmra.mxu0 %v3599
        %v3717 = vpop.f32.mrf.mxu0
        %v3718 = vadd.f32 0.0, %v3717
        %v3719 = vpop.f32.mrf.mxu0
        %v3720 = vadd.f32 0.0, %v3719
        %v3721 = vpop.f32.mrf.mxu0
        %v3722 = vpop.f32.mrf.mxu0
        %3723 = vdwg.mxu0
        %3724 = vmatprep.subr.bf16.mxu0 %v2064
        %3725 = vmatpush1.bf16.msra.mxu0 %v2063
        %3726 = vmatprep.subr.bf16.mxu0 %v2056
        %3727 = vmatpush1.bf16.msra.mxu0 %v2055
        %3728 = vmatprep.subr.bf16.mxu0 %v2048
        %3729 = vmatpush1.bf16.msra.mxu0 %v2047
        %3730 = vmatprep.subr.bf16.mxu0 %v2040
        %3731 = vmatpush1.bf16.msra.mxu0 %v2039
        %3732 = vmatprep.subr.bf16.mxu0 %v2032
        %3733 = vmatpush1.bf16.msra.mxu0 %v2031
        %3734 = vmatprep.subr.bf16.mxu0 %v2024
        %3735 = vmatpush1.bf16.msra.mxu0 %v2023
        %3736 = vmatprep.subr.bf16.mxu0 %v2016
        %3737 = vmatpush1.bf16.msra.mxu0 %v2015
        %3738 = vmatprep.subr.bf16.mxu0 %v2008
        %3739 = vmatpush1.bf16.msra.mxu0 %v2007
        %3740 = vmatprep.subr.bf16.mxu0 %v2128
        %3741 = vmatpush2.bf16.msra.mxu0 %v2127
        %3742 = vmatprep.subr.bf16.mxu0 %v2120
        %3743 = vmatpush2.bf16.msra.mxu0 %v2119
        %3744 = vmatprep.subr.bf16.mxu0 %v2112
        %3745 = vmatpush2.bf16.msra.mxu0 %v2111
        %3746 = vmatprep.subr.bf16.mxu0 %v2104
        %3747 = vmatpush2.bf16.msra.mxu0 %v2103
        %3748 = vmatprep.subr.bf16.mxu0 %v2096
        %3749 = vmatpush2.bf16.msra.mxu0 %v2095
        %3750 = vmatprep.subr.bf16.mxu0 %v2088
        %3751 = vmatpush2.bf16.msra.mxu0 %v2087
        %3752 = vmatprep.subr.bf16.mxu0 %v2080
        %3753 = vmatpush2.bf16.msra.mxu0 %v2079
        %3754 = vmatprep.subr.bf16.mxu0 %v2072
        %3755 = vmatpush2.bf16.msra.mxu0 %v2071
        %3756 = vmatprep.mubr.bf16.mxu0 %v3600
        %3757 = vmatmul.mubr.bf16.gmra.mxu0 %v3599
        %v3758 = vpop.f32.mrf.mxu0
        %v3759 = vadd.f32 0.0, %v3758
        %v3760 = vpop.f32.mrf.mxu0
        %v3761 = vadd.f32 0.0, %v3760
        %v3762 = vpop.f32.mrf.mxu0
        %v3763 = vpop.f32.mrf.mxu0
        %3764 = vdwg.mxu0
        %v3765 = vadd.f32 %v1342, %v3636
        %v3766 = vadd.f32 %v1344, %v3638
        %v3767 = vadd.f32 %v1415, %v3677
        %v3768 = vadd.f32 %v1417, %v3679
        %v3769 = vadd.f32 %v1488, %v3718
        %v3770 = vadd.f32 %v1490, %v3720
        %v3771 = vadd.f32 %v1561, %v3759
        %v3772 = vadd.f32 %v1563, %v3761
        %v3773 = vxor.u32 %v3765, 2147483648
        %v3774 = vxor.u32 %v3766, 2147483648
        %v3775 = vmul.f32 %v3773, 1.442695
        %v3776 = vpow.pop %v3775
        %v3777 = vmul.f32 %v3774, 1.442695
        %v3778 = vpow.pop %v3777
        %v3779 = vadd.f32 %v3776, 1.0
        %v3780 = vadd.f32 %v3778, 1.0
        %v3781 = vrcp.pop %v3779
        %v3782 = vmul.f32 1.0, %v3781
        %v3783 = vrcp.pop %v3780
        %v3784 = vmul.f32 1.0, %v3783
        %v3785 = vxor.u32 %v3767, 2147483648
        %v3786 = vxor.u32 %v3768, 2147483648
        %v3787 = vmul.f32 %v3785, 1.442695
        %v3788 = vpow.pop %v3787
        %v3789 = vmul.f32 %v3786, 1.442695
        %v3790 = vpow.pop %v3789
        %v3791 = vadd.f32 %v3788, 1.0
        %v3792 = vadd.f32 %v3790, 1.0
        %v3793 = vrcp.pop %v3791
        %v3794 = vmul.f32 1.0, %v3793
        %v3795 = vrcp.pop %v3792
        %v3796 = vmul.f32 1.0, %v3795
        %v3797 = vtanh.pop %v3769
        %v3798 = vtanh.pop %v3770
        %v3799 = vxor.u32 %v3771, 2147483648
        %v3800 = vxor.u32 %v3772, 2147483648
        %v3801 = vmul.f32 %v3799, 1.442695
        %v3802 = vpow.pop %v3801
        %v3803 = vmul.f32 %v3800, 1.442695
        %v3804 = vpow.pop %v3803
        %v3805 = vadd.f32 %v3802, 1.0
        %v3806 = vadd.f32 %v3804, 1.0
        %v3807 = vrcp.pop %v3805
        %v3808 = vmul.f32 1.0, %v3807
        %v3809 = vrcp.pop %v3806
        %v3810 = vmul.f32 1.0, %v3809
        %v3811 = vmul.f32 %v3794, %v3591
        %v3812 = vmul.f32 %v3796, %v3592
        %v3813 = vmul.f32 %v3782, %v3797
        %v3814 = vmul.f32 %v3784, %v3798
        %v3815 = vadd.f32 %v3811, %v3813
        %v3816 = vadd.f32 %v3812, %v3814
        %v3817 = vtanh.pop %v3815
        %v3818 = vtanh.pop %v3816
        %v3819 = vmul.f32 %v3808, %v3817
        %v3820 = vmul.f32 %v3810, %v3818
        %3821 = vst [vmem:[#allocation2 + $0x70] sm:$0xff] %v3819
        %3822 = vst [vmem:[#allocation2 + $0x78] sm:$0xff] %v3820
        %p3823 = scmp.eq.s32.totalorder %s18, 4
        // Predicated region
        $region49: #{lstm_classifier_forward.1} parent=43 // pred_check
          %p3824 = pneg %p3823
        $region50: #{lstm_classifier_forward.1} parent=43 // pred_check_branch
          %3826 = sbr.rel (%p3824) target = $region52
        $region51: #{lstm_classifier_forward.1} parent=43 // pred_region
          %v3827 = vld [vmem:[%s4] sm:$0xff]
          %v3828 = vld [vmem:[%s4 + $0x8] sm:$0xff]
          %v3829 = vld [vmem:[%s4 + $0x10] sm:$0xff]
          %v3830 = vld [vmem:[%s4 + $0x18] sm:$0xff]
          %v3831 = vld [vmem:[%s4 + $0x20] sm:$0xff]
          %v3832 = vld [vmem:[%s4 + $0x28] sm:$0xff]
          %v3833 = vld [vmem:[%s4 + $0x30] sm:$0xff]
          %v3834 = vld [vmem:[%s4 + $0x38] sm:$0xff]
          %v3835 = vld [vmem:[%s4 + $0x40] sm:$0xff]
          %v3836 = vld [vmem:[%s4 + $0x48] sm:$0xff]
          %v3837 = vld [vmem:[%s4 + $0x50] sm:$0xff]
          %v3838 = vld [vmem:[%s4 + $0x58] sm:$0xff]
          %v3839 = vld [vmem:[%s4 + $0x60] sm:$0xff]
          %v3840 = vld [vmem:[%s4 + $0x68] sm:$0xff]
          %v3841 = vld [vmem:[%s4 + $0x70] sm:$0xff]
          %v3842 = vld [vmem:[%s4 + $0x78] sm:$0xff]
          %v3843 = vld [vmem:[%s4 + $0x80] sm:$0xff]
          %v3844 = vld [vmem:[%s4 + $0x88] sm:$0xff]
          %v3845 = vld [vmem:[%s4 + $0x90] sm:$0xff]
          %v3846 = vld [vmem:[%s4 + $0x98] sm:$0xff]
          %v3847 = vld [vmem:[%s4 + $0xa0] sm:$0xff]
          %v3848 = vld [vmem:[%s4 + $0xa8] sm:$0xff]
          %v3849 = vld [vmem:[%s4 + $0xb0] sm:$0xff]
          %v3850 = vld [vmem:[%s4 + $0xb8] sm:$0xff]
          %v3851 = vld [vmem:[%s4 + $0xc0] sm:$0xff]
          %v3852 = vld [vmem:[%s4 + $0xc8] sm:$0xff]
          %v3853 = vld [vmem:[%s4 + $0xd0] sm:$0xff]
          %v3854 = vld [vmem:[%s4 + $0xd8] sm:$0xff]
          %v3855 = vld [vmem:[%s4 + $0xe0] sm:$0xff]
          %v3856 = vld [vmem:[%s4 + $0xe8] sm:$0xff]
          %v3857 = vld [vmem:[%s4 + $0xf0] sm:$0xff]
          %v3858 = vld [vmem:[%s4 + $0xf8] sm:$0xff]
          %v3859 = vld [vmem:[%s5] sm:$0x1]
          %v3861 = vlaneseq
          %v3862 = vshrl.u32 %v3861, 7
          %v3863 = vsub.s32 0, %v3862
          %v3864 = vrot.slane %v3859, %v3863
          %3866 = vmatprep.subr.mxu0 0.0
          %3867 = vmatpush1.msra.mxu0 %v3842
          %3868 = vmatprep.subr.mxu0 0.0
          %3869 = vmatpush1.msra.mxu0 %v3841
          %3870 = vmatprep.subr.mxu0 0.0
          %3871 = vmatpush1.msra.mxu0 %v3840
          %3872 = vmatprep.subr.mxu0 0.0
          %3873 = vmatpush1.msra.mxu0 %v3839
          %3874 = vmatprep.subr.mxu0 0.0
          %3875 = vmatpush1.msra.mxu0 %v3838
          %3876 = vmatprep.subr.mxu0 0.0
          %3877 = vmatpush1.msra.mxu0 %v3837
          %3878 = vmatprep.subr.mxu0 0.0
          %3879 = vmatpush1.msra.mxu0 %v3836
          %3880 = vmatprep.subr.mxu0 0.0
          %3881 = vmatpush1.msra.mxu0 %v3835
          %3882 = vmatprep.subr.mxu0 0.0
          %3883 = vmatpush1.msra.mxu0 %v3834
          %3884 = vmatprep.subr.mxu0 0.0
          %3885 = vmatpush1.msra.mxu0 %v3833
          %3886 = vmatprep.subr.mxu0 0.0
          %3887 = vmatpush1.msra.mxu0 %v3832
          %3888 = vmatprep.subr.mxu0 0.0
          %3889 = vmatpush1.msra.mxu0 %v3831
          %3890 = vmatprep.subr.mxu0 0.0
          %3891 = vmatpush1.msra.mxu0 %v3830
          %3892 = vmatprep.subr.mxu0 0.0
          %3893 = vmatpush1.msra.mxu0 %v3829
          %3894 = vmatprep.subr.mxu0 0.0
          %3895 = vmatpush1.msra.mxu0 %v3828
          %3896 = vmatprep.subr.mxu0 0.0
          %3897 = vmatpush1.msra.mxu0 %v3827
          %3898 = vmatprep.subr.mxu0 0.0
          %3899 = vmatpush2.msra.mxu0 %v3858
          %3900 = vmatprep.subr.mxu0 0.0
          %3901 = vmatpush2.msra.mxu0 %v3857
          %3902 = vmatprep.subr.mxu0 0.0
          %3903 = vmatpush2.msra.mxu0 %v3856
          %3904 = vmatprep.subr.mxu0 0.0
          %3905 = vmatpush2.msra.mxu0 %v3855
          %3906 = vmatprep.subr.mxu0 0.0
          %3907 = vmatpush2.msra.mxu0 %v3854
          %3908 = vmatprep.subr.mxu0 0.0
          %3909 = vmatpush2.msra.mxu0 %v3853
          %3910 = vmatprep.subr.mxu0 0.0
          %3911 = vmatpush2.msra.mxu0 %v3852
          %3912 = vmatprep.subr.mxu0 0.0
          %3913 = vmatpush2.msra.mxu0 %v3851
          %3914 = vmatprep.subr.mxu0 0.0
          %3915 = vmatpush2.msra.mxu0 %v3850
          %3916 = vmatprep.subr.mxu0 0.0
          %3917 = vmatpush2.msra.mxu0 %v3849
          %3918 = vmatprep.subr.mxu0 0.0
          %3919 = vmatpush2.msra.mxu0 %v3848
          %3920 = vmatprep.subr.mxu0 0.0
          %3921 = vmatpush2.msra.mxu0 %v3847
          %3922 = vmatprep.subr.mxu0 0.0
          %3923 = vmatpush2.msra.mxu0 %v3846
          %3924 = vmatprep.subr.mxu0 0.0
          %3925 = vmatpush2.msra.mxu0 %v3845
          %3926 = vmatprep.subr.mxu0 0.0
          %3927 = vmatpush2.msra.mxu0 %v3844
          %3928 = vmatprep.subr.mxu0 0.0
          %3929 = vmatpush2.msra.mxu0 %v3843
          %3930 = vmatprep.mubr.f32.mxu0 %v3820
          %3931 = vmatmul.mubr.f32.gmra.mxu0 %v3819
          %v3932 = vpop.f32.mrf.mxu0
          %v3933 = vadd.f32 %v3864, %v3932
          %v3934 = vpop.f32.mrf.mxu0
          %3935 = vdwg.mxu0
          %vm3936 = vcmask 66560
          %3937 = vst.msk [vmem:[#allocation3] sm:$0x3] %vm3936, %v3933
        $region52: #{lstm_classifier_forward.1} parent=43 // pred_fallthru
          _
        // Predicated region
        $region53: #{lstm_classifier_forward.1} parent=43 // pred_check
          %p3938 = pneg %p172
        $region54: #{lstm_classifier_forward.1} parent=43 // pred_check_branch
          %3940 = sbr.rel (%p3938) target = $region56
        $region55: #{lstm_classifier_forward.1} parent=43 // pred_region
          %s3942 = ssub.s32 32, 32
          %3943 = vsyncadd [#allocation4], %s3942
          %s3945 = sshll.u32 [#allocation3], 4
          %s3946 = int_to_ptr.vmem [resolvable:$true] %s3945
          %3948 = dma.vmem_to_hbm [thread:$0]  %s3946, 32, %s6, [#allocation4]
        $region56: #{lstm_classifier_forward.1} parent=43 // pred_fallthru
          _
        // Predicated region
        $region57: #{lstm_classifier_forward.1} parent=43 // pred_check
          %p3949 = pneg %p172
        $region58: #{lstm_classifier_forward.1} parent=43 // pred_check_branch
          %3951 = sbr.rel (%p3949) target = $region60
        $region59: #{lstm_classifier_forward.1} parent=43 // pred_region
          %3952 = dma.done [#allocation4], 32
        $region60: #{lstm_classifier_forward.1} parent=43 // pred_fallthru
          _
      $region44: #{lstm_classifier_forward.1} parent=5 // pred_fallthru
        _
      %p3953 = scmp.le.s32.totalorder 2, %s13
      // Predicated region
      $region61: #{lstm_classifier_forward.1} parent=5 // pred_check
        %p3954 = pneg %p3953
      $region62: #{lstm_classifier_forward.1} parent=5 // pred_check_branch
        %3956 = sbr.rel (%p3954) target = $region64
      $region63: #{lstm_classifier_forward.1} parent=5 // pred_region
        %s3957 = ssub.s32 %s13, 2
      $region64: #{lstm_classifier_forward.1} parent=5 // pred_fallthru
        _
    $region6: #{lstm_classifier_forward.1} parent=1 // loop_footer
      %s17 = sadd.s32 1, %s13
    $region7: #{lstm_classifier_forward.1} parent=1 // loop_footer_branch
      %12 = sbr.rel target = $region3
    $region8: #{lstm_classifier_forward.1} parent=1 // loop_exit
      _
    %3958 = vsyncpa [#allocation4], 1
    %s3959 = scalar_lea.sflag [#allocation4], 1
    %3960 = vsyncpa %s3959, 1

</llo_original>
